<compile_context>
chip_gen: v7x
topology: tpu7x:2x2x1
jax: 0.10.0
libtpu: 0.0.40
codegen_flags: <defaults>
</compile_context>

<pallas_src>
import jax
import jax.numpy as jnp
from jax import lax
from jax.experimental import pallas as pl
from jax.experimental.pallas import tpu as pltpu


# --------------------------------------------------------------------------
# In-kernel helpers (traced inside the fused Pallas body)
# --------------------------------------------------------------------------

def _bn_relu(y, gamma, beta, eps=1e-5):
    """Training-mode BatchNorm (batch stats over rows) + ReLU, in-register.

    y: [M, C] f32 value, gamma/beta: [1, C].  Centered two-pass variance.
    """
    rows = y.shape[0]
    mean = jnp.sum(y, axis=0, keepdims=True) * (1.0 / rows)
    cen = y - mean
    var = jnp.sum(cen * cen, axis=0, keepdims=True) * (1.0 / rows)
    scale = gamma / jnp.sqrt(var + eps)
    return jnp.maximum(cen * scale + beta, 0.0)


def _conv3x3_same(buf_ref, src, w_ref, h_idx, w_idx, oh, ow):
    """3x3 / stride-1 / pad-1 conv over a VMEM-resident flat activation.

    src:     [M, Cin] value, rows ordered ((n*oh) + h)*ow + w.
    w_ref:   [9*Cin, Cout] ref, rows ordered (kh, kw, cin)  (HWIO reshape).
    buf_ref: [M + 2*(ow+1), Cin] VMEM scratch used to realise the row shifts.

    Implemented as 9 shifted MXU dots accumulated in f32; row / image
    boundaries are handled with per-tap masks built from h_idx/w_idx ([M,1]).
    """
    rows, cin = src.shape
    cout = w_ref.shape[1]
    pad = ow + 1

    buf_ref[...] = jnp.zeros_like(buf_ref)          # zero the halo rows
    buf_ref[pad:pad + rows, :] = src                # stage activation

    acc = jnp.zeros((rows, cout), jnp.float32)
    for di in range(3):
        for dj in range(3):
            off = (di - 1) * ow + (dj - 1)
            tap = buf_ref[pad + off:pad + off + rows, :]
            conds = []
            if di == 0:
                conds.append(h_idx >= 1)
            elif di == 2:
                conds.append(h_idx <= oh - 2)
            if dj == 0:
                conds.append(w_idx >= 1)
            elif dj == 2:
                conds.append(w_idx <= ow - 2)
            if conds:
                mask = conds[0]
                for c in conds[1:]:
                    mask = jnp.logical_and(mask, c)
                tap = jnp.where(mask, tap, 0.0)
            t = di * 3 + dj
            acc = acc + jnp.dot(tap, w_ref[t * cin:(t + 1) * cin, :],
                                preferred_element_type=jnp.float32)
    return acc


# --------------------------------------------------------------------------
# Fused kernel bodies (one per shortcut variant)
# --------------------------------------------------------------------------

def _identity_block_kernel(oh, ow):
    """in_c == out_c: conv1 (3x3/s1) and conv2 both computed in-kernel."""
    def kernel(x_ref, w1_ref, w2_ref, g1_ref, b1_ref, g2_ref, b2_ref,
               hi_ref, wi_ref, o_ref, buf1_ref, buf2_ref):
        h_idx = hi_ref[...]
        w_idx = wi_ref[...]
        x = x_ref[...]
        # conv1 (bias dropped: absorbed by train-mode BN) -> bn1 -> relu
        y1 = _conv3x3_same(buf1_ref, x, w1_ref, h_idx, w_idx, oh, ow)
        y1 = _bn_relu(y1, g1_ref[...], b1_ref[...])
        # conv2 -> bn2 -> relu  (y1 never leaves VMEM)
        y2 = _conv3x3_same(buf2_ref, y1, w2_ref, h_idx, w_idx, oh, ow)
        y2 = _bn_relu(y2, g2_ref[...], b2_ref[...])
        # identity shortcut + residual add; single HBM store of the result
        o_ref[...] = x + y2
    return kernel


def _projection_block_kernel(oh, ow):
    """in_c != out_c: conv1 is 3x3/stride-2 (patches pre-gathered in glue),
    shortcut is 1x1/stride-2 conv + BN + ReLU; conv2 is fully in-kernel."""
    def kernel(p1_ref, w1_ref, ps_ref, ws_ref, w2_ref,
               g1_ref, b1_ref, g2_ref, b2_ref, gs_ref, bs_ref,
               hi_ref, wi_ref, o_ref, buf_ref):
        h_idx = hi_ref[...]
        w_idx = wi_ref[...]
        # conv1 (stride 2) as one MXU matmul on pre-gathered patches
        y1 = jnp.dot(p1_ref[...], w1_ref[...],
                     preferred_element_type=jnp.float32)
        y1 = _bn_relu(y1, g1_ref[...], b1_ref[...])
        # conv2 (3x3 / s1 / p1) on the VMEM-resident y1
        y2 = _conv3x3_same(buf_ref, y1, w2_ref, h_idx, w_idx, oh, ow)
        y2 = _bn_relu(y2, g2_ref[...], b2_ref[...])
        # projection shortcut: 1x1 stride-2 conv -> BN -> ReLU
        ys = jnp.dot(ps_ref[...], ws_ref[...],
                     preferred_element_type=jnp.float32)
        res = _bn_relu(ys, gs_ref[...], bs_ref[...])
        o_ref[...] = res + y2
    return kernel


# --------------------------------------------------------------------------
# JAX glue
# --------------------------------------------------------------------------

def _im2col(x, kh, kw, stride, pad):
    """x: [N,H,W,C] -> patches [N*OH*OW, kh*kw*C] (row order kh, kw, c)."""
    N, H, W, C = x.shape
    xp = jnp.pad(x, ((0, 0), (pad, pad), (pad, pad), (0, 0)))
    OH = (H + 2 * pad - kh) // stride + 1
    OW = (W + 2 * pad - kw) // stride + 1
    cols = []
    for i in range(kh):
        for j in range(kw):
            cols.append(xp[:, i:i + stride * OH:stride,
                           j:j + stride * OW:stride, :])
    patches = jnp.stack(cols, axis=3)               # [N, OH, OW, kh*kw, C]
    return patches.reshape(N * OH * OW, kh * kw * C), OH, OW


def resblock2_forward(x_nchw, params, in_c, out_c):
    """Pallas implementation of ResBlock2.forward.  Input/output NCHW."""
    x = jnp.transpose(x_nchw, (0, 2, 3, 1)).astype(jnp.float32)   # NHWC
    N, H, W, _ = x.shape
    identity = (in_c == out_c)

    if identity:
        oh, ow = H, W
    else:                                   # conv1: k=3, s=2, p=1
        oh = (H + 2 - 3) // 2 + 1
        ow = (W + 2 - 3) // 2 + 1
    M = N * oh * ow
    halo = ow + 1

    # Per-row (h, w) coordinates for the in-kernel conv boundary masks.
    idx = jnp.arange(M, dtype=jnp.int32)
    h_idx = ((idx // ow) % oh).reshape(M, 1)
    w_idx = (idx % ow).reshape(M, 1)

    g1 = params["g1"].reshape(1, out_c)
    b1 = params["be1"].reshape(1, out_c)
    g2 = params["g2"].reshape(1, out_c)
    b2 = params["be2"].reshape(1, out_c)
    w2_mat = params["w2"].reshape(9 * out_c, out_c)
    w1_mat = params["w1"].reshape(9 * in_c, out_c)

    if identity:
        xflat = x.reshape(M, in_c)
        args = (xflat, w1_mat, w2_mat, g1, b1, g2, b2, h_idx, w_idx)
        kernel = _identity_block_kernel(oh, ow)
        scratch = [pltpu.VMEM((M + 2 * halo, in_c), jnp.float32),
                   pltpu.VMEM((M + 2 * halo, out_c), jnp.float32)]
    else:
        # TODO(synk): the strided (stride-2) 3x3 tap gather has no clean
        # in-kernel expression, so conv1 patches are pre-gathered in JAX glue.
        p1, _, _ = _im2col(x, 3, 3, 2, 1)                # [M, 9*in_c]
        ps = x[:, ::2, ::2, :].reshape(M, in_c)          # 1x1 / stride-2 taps
        ws_mat = params["ws"].reshape(in_c, out_c)
        gs = params["gs"].reshape(1, out_c)
        bs = params["bes"].reshape(1, out_c)
        args = (p1, w1_mat, ps, ws_mat, w2_mat,
                g1, b1, g2, b2, gs, bs, h_idx, w_idx)
        kernel = _projection_block_kernel(oh, ow)
        scratch = [pltpu.VMEM((M + 2 * halo, out_c), jnp.float32)]

    out2d = pl.pallas_call(
        kernel,
        out_shape=jax.ShapeDtypeStruct((M, out_c), jnp.float32),
        grid_spec=pltpu.PrefetchScalarGridSpec(
            num_scalar_prefetch=0,
            grid=(1,),                         # whole problem is VMEM-resident
            in_specs=[pl.BlockSpec(a.shape, lambda i: (0, 0)) for a in args],
            out_specs=pl.BlockSpec((M, out_c), lambda i: (0, 0)),
            scratch_shapes=scratch),
        compiler_params=pltpu.CompilerParams(
            dimension_semantics=("arbitrary",)),
    )(*args)

    out = out2d.reshape(N, oh, ow, out_c)
    return jnp.transpose(out, (0, 3, 1, 2))              # back to NCHW


# --------------------------------------------------------------------------
# Deterministic synthetic parameters (conv weights HWIO, BN gamma/beta).
# Conv biases are kept ONLY for the f32 reference: training-mode BN cancels
# them exactly, so the Pallas kernel skips the bias adds.
# --------------------------------------------------------------------------

def init_params(key, in_c, out_c):
    ks = jax.random.split(key, 10)

    def conv_w(k, kh, kw, ci, co):
        fan_in = kh * kw * ci
        return (jax.random.normal(k, (kh, kw, ci, co), jnp.float32)
                / jnp.sqrt(float(fan_in)))

    params = dict(
        w1=conv_w(ks[0], 3, 3, in_c, out_c),
        b1=0.1 * jax.random.normal(ks[1], (out_c,), jnp.float32),
        g1=1.0 + 0.1 * jax.random.normal(ks[2], (out_c,), jnp.float32),
        be1=0.1 * jax.random.normal(ks[3], (out_c,), jnp.float32),
        w2=conv_w(ks[4], 3, 3, out_c, out_c),
        b2=0.1 * jax.random.normal(ks[5], (out_c,), jnp.float32),
        g2=1.0 + 0.1 * jax.random.normal(ks[6], (out_c,), jnp.float32),
        be2=0.1 * jax.random.normal(ks[7], (out_c,), jnp.float32),
    )
    if in_c != out_c:
        params.update(
            ws=conv_w(ks[8], 1, 1, in_c, out_c),
            bs=0.1 * jax.random.normal(ks[9], (out_c,), jnp.float32),
            gs=jnp.ones((out_c,), jnp.float32),     # PyTorch BN default init
            bes=jnp.zeros((out_c,), jnp.float32),
        )
    return params


# --------------------------- pure-JAX reference ---------------------------

def ref_resblock2(x_nchw, params, in_c, out_c):
    stride1 = 1 if in_c == out_c else 2
    x = jnp.transpose(x_nchw, (0, 2, 3, 1)).astype(jnp.float32)

    def conv(h, w, b, stride, pad):
        y = lax.conv_general_dilated(
            h, w, (stride, stride), [(pad, pad), (pad, pad)],
            dimension_numbers=("NHWC", "HWIO", "NHWC"))
        return y + b

    def bn_relu_ref(y, gamma, beta, eps=1e-5):
        mean = jnp.mean(y, axis=(0, 1, 2))
        var = jnp.mean((y - mean) ** 2, axis=(0, 1, 2))
        return jnp.maximum((y - mean) / jnp.sqrt(var + eps) * gamma + beta, 0.0)

    out = bn_relu_ref(conv(x, params["w1"], params["b1"], stride1, 1),
                      params["g1"], params["be1"])
    out = bn_relu_ref(conv(out, params["w2"], params["b2"], 1, 1),
                      params["g2"], params["be2"])
    if in_c == out_c:
        sc = x
    else:
        sc = bn_relu_ref(conv(x, params["ws"], params["bs"], 2, 0),
                         params["gs"], params["bes"])
    return jnp.transpose(sc + out, (0, 3, 1, 2))


# --------------------------------- main ---------------------------------

if __name__ == "__main__":
    key = jax.random.PRNGKey(0)
    k1, k2, k3, k4 = jax.random.split(key, 4)

    fwd = jax.jit(resblock2_forward, static_argnums=(2, 3))

    # Case 1: in_c != out_c  (stride-2 conv1 + 1x1/stride-2 projection shortcut)
    in_c, out_c = 4, 8
    x = jax.random.normal(k1, (2, in_c, 16, 16), jnp.float32)
    params = init_params(k2, in_c, out_c)
    out = jax.block_until_ready(fwd(x, params, in_c, out_c))
    ref = ref_resblock2(x, params, in_c, out_c)
    assert out.shape == (2, out_c, 8, 8), out.shape
    assert jnp.allclose(out, ref, atol=1e-4, rtol=1e-4), \
        float(jnp.max(jnp.abs(out - ref)))

    # Case 2: in_c == out_c  (identity shortcut, stride 1, fully in-kernel convs)
    in_c2 = out_c2 = 8
    x2 = jax.random.normal(k3, (2, in_c2, 16, 16), jnp.float32)
    params2 = init_params(k4, in_c2, out_c2)
    out2 = jax.block_until_ready(fwd(x2, params2, in_c2, out_c2))
    ref2 = ref_resblock2(x2, params2, in_c2, out_c2)
    assert out2.shape == (2, out_c2, 16, 16), out2.shape
    assert jnp.allclose(out2, ref2, atol=1e-4, rtol=1e-4), \
        float(jnp.max(jnp.abs(out2 - ref2)))

    print("KERNEL_OK")
</pallas_src>

<mosaic_0001>
module attributes {stable_mosaic.version = 11 : i64} {
  func.func @kernel(%arg0: i32, %arg1: memref<128x36xf32, #tpu.memory_space<vmem>>, %arg2: memref<36x8xf32, #tpu.memory_space<vmem>>, %arg3: memref<128x4xf32, #tpu.memory_space<vmem>>, %arg4: memref<4x8xf32, #tpu.memory_space<vmem>>, %arg5: memref<72x8xf32, #tpu.memory_space<vmem>>, %arg6: memref<1x8xf32, #tpu.memory_space<vmem>>, %arg7: memref<1x8xf32, #tpu.memory_space<vmem>>, %arg8: memref<1x8xf32, #tpu.memory_space<vmem>>, %arg9: memref<1x8xf32, #tpu.memory_space<vmem>>, %arg10: memref<1x8xf32, #tpu.memory_space<vmem>>, %arg11: memref<1x8xf32, #tpu.memory_space<vmem>>, %arg12: memref<128x1xi32, #tpu.memory_space<vmem>>, %arg13: memref<128x1xi32, #tpu.memory_space<vmem>>, %arg14: memref<128x8xf32, #tpu.memory_space<vmem>>, %arg15: memref<146x8xf32, #tpu.memory_space<vmem>>) attributes {dimension_semantics = [#tpu.dimension_semantics<arbitrary>], iteration_bounds = array<i64: 1>, scalar_prefetch = 0 : i64, scratch_operands = 1 : i64, tpu.core_type = #tpu.core_type<tc>, window_params = [{pipeline_mode = #tpu.pipeline_mode<synchronous>, transform_indices = @transform_0, window_bounds = array<i64: 128, 36>}, {pipeline_mode = #tpu.pipeline_mode<synchronous>, transform_indices = @transform_1, window_bounds = array<i64: 36, 8>}, {pipeline_mode = #tpu.pipeline_mode<synchronous>, transform_indices = @transform_2, window_bounds = array<i64: 128, 4>}, {pipeline_mode = #tpu.pipeline_mode<synchronous>, transform_indices = @transform_3, window_bounds = array<i64: 4, 8>}, {pipeline_mode = #tpu.pipeline_mode<synchronous>, transform_indices = @transform_4, window_bounds = array<i64: 72, 8>}, {pipeline_mode = #tpu.pipeline_mode<synchronous>, transform_indices = @transform_5, window_bounds = array<i64: 1, 8>}, {pipeline_mode = #tpu.pipeline_mode<synchronous>, transform_indices = @transform_6, window_bounds = array<i64: 1, 8>}, {pipeline_mode = #tpu.pipeline_mode<synchronous>, transform_indices = @transform_7, window_bounds = array<i64: 1, 8>}, {pipeline_mode = #tpu.pipeline_mode<synchronous>, transform_indices = @transform_8, window_bounds = array<i64: 1, 8>}, {pipeline_mode = #tpu.pipeline_mode<synchronous>, transform_indices = @transform_9, window_bounds = array<i64: 1, 8>}, {pipeline_mode = #tpu.pipeline_mode<synchronous>, transform_indices = @transform_10, window_bounds = array<i64: 1, 8>}, {pipeline_mode = #tpu.pipeline_mode<synchronous>, transform_indices = @transform_11, window_bounds = array<i64: 128, 1>}, {pipeline_mode = #tpu.pipeline_mode<synchronous>, transform_indices = @transform_12, window_bounds = array<i64: 128, 1>}, {pipeline_mode = #tpu.pipeline_mode<synchronous>, transform_indices = @transform_13, window_bounds = array<i64: 128, 8>}]} {
    %c0 = arith.constant 0 : index
    %c0_0 = arith.constant 0 : index
    %0 = vector.load %arg12[%c0, %c0_0] : memref<128x1xi32, #tpu.memory_space<vmem>>, vector<128x1xi32>
    %c0_1 = arith.constant 0 : index
    %c0_2 = arith.constant 0 : index
    %1 = vector.load %arg13[%c0_1, %c0_2] : memref<128x1xi32, #tpu.memory_space<vmem>>, vector<128x1xi32>
    %c0_3 = arith.constant 0 : index
    %c0_4 = arith.constant 0 : index
    %2 = vector.load %arg1[%c0_3, %c0_4] : memref<128x36xf32, #tpu.memory_space<vmem>>, vector<128x36xf32>
    %c0_5 = arith.constant 0 : index
    %c0_6 = arith.constant 0 : index
    %3 = vector.load %arg2[%c0_5, %c0_6] : memref<36x8xf32, #tpu.memory_space<vmem>>, vector<36x8xf32>
    %cst = arith.constant dense<0.000000e+00> : vector<128x8xf32>
    %4 = tpu.matmul %2, %3, %cst {dimension_numbers = #tpu.dot_dimension_numbers<[1], [0], [0], [1], [0, 0, 1, 1], [], []>} : vector<128x36xf32>, vector<36x8xf32>, vector<128x8xf32> -> vector<128x8xf32>
    %c0_7 = arith.constant 0 : index
    %c0_8 = arith.constant 0 : index
    %5 = vector.load %arg6[%c0_7, %c0_8] : memref<1x8xf32, #tpu.memory_space<vmem>>, vector<1x8xf32>
    %c0_9 = arith.constant 0 : index
    %c0_10 = arith.constant 0 : index
    %6 = vector.load %arg7[%c0_9, %c0_10] : memref<1x8xf32, #tpu.memory_space<vmem>>, vector<1x8xf32>
    %cst_11 = arith.constant dense<0.000000e+00> : vector<8xf32>
    %7 = vector.multi_reduction <add>, %4, %cst_11 [0] : vector<128x8xf32> to vector<8xf32>
    %8 = vector.shape_cast %7 : vector<8xf32> to vector<1x8xf32>
    %cst_12 = arith.constant 7.812500e-03 : f32
    %9 = vector.broadcast %cst_12 : f32 to vector<1x8xf32>
    %10 = arith.mulf %8, %9 : vector<1x8xf32>
    %11 = vector.broadcast %10 : vector<1x8xf32> to vector<128x8xf32>
    %12 = arith.subf %4, %11 : vector<128x8xf32>
    %13 = arith.mulf %12, %12 : vector<128x8xf32>
    %cst_13 = arith.constant dense<0.000000e+00> : vector<8xf32>
    %14 = vector.multi_reduction <add>, %13, %cst_13 [0] : vector<128x8xf32> to vector<8xf32>
    %15 = vector.shape_cast %14 : vector<8xf32> to vector<1x8xf32>
    %cst_14 = arith.constant 7.812500e-03 : f32
    %16 = vector.broadcast %cst_14 : f32 to vector<1x8xf32>
    %17 = arith.mulf %15, %16 : vector<1x8xf32>
    %cst_15 = arith.constant 9.99999974E-6 : f32
    %18 = vector.broadcast %cst_15 : f32 to vector<1x8xf32>
    %19 = arith.addf %17, %18 : vector<1x8xf32>
    %20 = math.sqrt %19 : vector<1x8xf32>
    %21 = arith.divf %5, %20 : vector<1x8xf32>
    %22 = vector.broadcast %21 : vector<1x8xf32> to vector<128x8xf32>
    %23 = arith.mulf %12, %22 : vector<128x8xf32>
    %24 = vector.broadcast %6 : vector<1x8xf32> to vector<128x8xf32>
    %25 = arith.addf %23, %24 : vector<128x8xf32>
    %cst_16 = arith.constant 0.000000e+00 : f32
    %26 = vector.broadcast %cst_16 : f32 to vector<128x8xf32>
    %27 = arith.maximumf %25, %26 : vector<128x8xf32>
    %cst_17 = arith.constant 0.000000e+00 : f32
    %28 = vector.broadcast %cst_17 : f32 to vector<146x8xf32>
    %c0_18 = arith.constant 0 : index
    %c0_19 = arith.constant 0 : index
    %29 = vector.load %arg15[%c0_18, %c0_19] : memref<146x8xf32, #tpu.memory_space<vmem>>, vector<146x8xf32>
    tpu.vector_store %arg15[%c0_18, %c0_19], %28 {strides = array<i32>} : memref<146x8xf32, #tpu.memory_space<vmem>>, vector<146x8xf32>,
    %c9 = arith.constant 9 : index
    %c0_20 = arith.constant 0 : index
    %30 = vector.load %arg15[%c9, %c0_20] : memref<146x8xf32, #tpu.memory_space<vmem>>, vector<128x8xf32>
    tpu.vector_store %arg15[%c9, %c0_20], %27 {strides = array<i32>} : memref<146x8xf32, #tpu.memory_space<vmem>>, vector<128x8xf32>,
    %cst_21 = arith.constant 0.000000e+00 : f32
    %31 = vector.broadcast %cst_21 : f32 to vector<128x8xf32>
    %c0_22 = arith.constant 0 : index
    %c0_23 = arith.constant 0 : index
    %32 = vector.load %arg15[%c0_22, %c0_23] : memref<146x8xf32, #tpu.memory_space<vmem>>, vector<128x8xf32>
    %c1_i32 = arith.constant 1 : i32
    %33 = vector.broadcast %c1_i32 : i32 to vector<128x1xi32>
    %34 = arith.cmpi sge, %0, %33 : vector<128x1xi32>
    %c1_i32_24 = arith.constant 1 : i32
    %35 = vector.broadcast %c1_i32_24 : i32 to vector<128x1xi32>
    %36 = arith.cmpi sge, %1, %35 : vector<128x1xi32>
    %37 = arith.andi %34, %36 : vector<128x1xi1>
    %cst_25 = arith.constant 0.000000e+00 : f32
    %38 = vector.shape_cast %37 : vector<128x1xi1> to vector<128x1xi1>
    %39 = vector.broadcast %38 : vector<128x1xi1> to vector<128x8xi1>
    %40 = vector.broadcast %cst_25 : f32 to vector<128x8xf32>
    %41 = arith.select %39, %32, %40 : vector<128x8xi1>, vector<128x8xf32>
    %c0_26 = arith.constant 0 : index
    %c0_27 = arith.constant 0 : index
    %42 = vector.load %arg5[%c0_26, %c0_27] : memref<72x8xf32, #tpu.memory_space<vmem>>, vector<8x8xf32>
    %cst_28 = arith.constant dense<0.000000e+00> : vector<128x8xf32>
    %43 = tpu.matmul %41, %42, %cst_28 {dimension_numbers = #tpu.dot_dimension_numbers<[1], [0], [0], [1], [0, 0, 1, 1], [], []>} : vector<128x8xf32>, vector<8x8xf32>, vector<128x8xf32> -> vector<128x8xf32>
    %44 = arith.addf %31, %43 : vector<128x8xf32>
    %c1 = arith.constant 1 : index
    %c0_29 = arith.constant 0 : index
    %45 = vector.load %arg15[%c1, %c0_29] : memref<146x8xf32, #tpu.memory_space<vmem>>, vector<128x8xf32>
    %c1_i32_30 = arith.constant 1 : i32
    %46 = vector.broadcast %c1_i32_30 : i32 to vector<128x1xi32>
    %47 = arith.cmpi sge, %0, %46 : vector<128x1xi32>
    %cst_31 = arith.constant 0.000000e+00 : f32
    %48 = vector.shape_cast %47 : vector<128x1xi1> to vector<128x1xi1>
    %49 = vector.broadcast %48 : vector<128x1xi1> to vector<128x8xi1>
    %50 = vector.broadcast %cst_31 : f32 to vector<128x8xf32>
    %51 = arith.select %49, %45, %50 : vector<128x8xi1>, vector<128x8xf32>
    %c8 = arith.constant 8 : index
    %c0_32 = arith.constant 0 : index
    %52 = vector.load %arg5[%c8, %c0_32] : memref<72x8xf32, #tpu.memory_space<vmem>>, vector<8x8xf32>
    %cst_33 = arith.constant dense<0.000000e+00> : vector<128x8xf32>
    %53 = tpu.matmul %51, %52, %cst_33 {dimension_numbers = #tpu.dot_dimension_numbers<[1], [0], [0], [1], [0, 0, 1, 1], [], []>} : vector<128x8xf32>, vector<8x8xf32>, vector<128x8xf32> -> vector<128x8xf32>
    %54 = arith.addf %44, %53 : vector<128x8xf32>
    %c2 = arith.constant 2 : index
    %c0_34 = arith.constant 0 : index
    %55 = vector.load %arg15[%c2, %c0_34] : memref<146x8xf32, #tpu.memory_space<vmem>>, vector<128x8xf32>
    %c1_i32_35 = arith.constant 1 : i32
    %56 = vector.broadcast %c1_i32_35 : i32 to vector<128x1xi32>
    %57 = arith.cmpi sge, %0, %56 : vector<128x1xi32>
    %c6_i32 = arith.constant 6 : i32
    %58 = vector.broadcast %c6_i32 : i32 to vector<128x1xi32>
    %59 = arith.cmpi sle, %1, %58 : vector<128x1xi32>
    %60 = arith.andi %57, %59 : vector<128x1xi1>
    %cst_36 = arith.constant 0.000000e+00 : f32
    %61 = vector.shape_cast %60 : vector<128x1xi1> to vector<128x1xi1>
    %62 = vector.broadcast %61 : vector<128x1xi1> to vector<128x8xi1>
    %63 = vector.broadcast %cst_36 : f32 to vector<128x8xf32>
    %64 = arith.select %62, %55, %63 : vector<128x8xi1>, vector<128x8xf32>
    %c16 = arith.constant 16 : index
    %c0_37 = arith.constant 0 : index
    %65 = vector.load %arg5[%c16, %c0_37] : memref<72x8xf32, #tpu.memory_space<vmem>>, vector<8x8xf32>
    %cst_38 = arith.constant dense<0.000000e+00> : vector<128x8xf32>
    %66 = tpu.matmul %64, %65, %cst_38 {dimension_numbers = #tpu.dot_dimension_numbers<[1], [0], [0], [1], [0, 0, 1, 1], [], []>} : vector<128x8xf32>, vector<8x8xf32>, vector<128x8xf32> -> vector<128x8xf32>
    %67 = arith.addf %54, %66 : vector<128x8xf32>
    %c8_39 = arith.constant 8 : index
    %c0_40 = arith.constant 0 : index
    %68 = vector.load %arg15[%c8_39, %c0_40] : memref<146x8xf32, #tpu.memory_space<vmem>>, vector<128x8xf32>
    %c1_i32_41 = arith.constant 1 : i32
    %69 = vector.broadcast %c1_i32_41 : i32 to vector<128x1xi32>
    %70 = arith.cmpi sge, %1, %69 : vector<128x1xi32>
    %cst_42 = arith.constant 0.000000e+00 : f32
    %71 = vector.shape_cast %70 : vector<128x1xi1> to vector<128x1xi1>
    %72 = vector.broadcast %71 : vector<128x1xi1> to vector<128x8xi1>
    %73 = vector.broadcast %cst_42 : f32 to vector<128x8xf32>
    %74 = arith.select %72, %68, %73 : vector<128x8xi1>, vector<128x8xf32>
    %c24 = arith.constant 24 : index
    %c0_43 = arith.constant 0 : index
    %75 = vector.load %arg5[%c24, %c0_43] : memref<72x8xf32, #tpu.memory_space<vmem>>, vector<8x8xf32>
    %cst_44 = arith.constant dense<0.000000e+00> : vector<128x8xf32>
    %76 = tpu.matmul %74, %75, %cst_44 {dimension_numbers = #tpu.dot_dimension_numbers<[1], [0], [0], [1], [0, 0, 1, 1], [], []>} : vector<128x8xf32>, vector<8x8xf32>, vector<128x8xf32> -> vector<128x8xf32>
    %77 = arith.addf %67, %76 : vector<128x8xf32>
    %c9_45 = arith.constant 9 : index
    %c0_46 = arith.constant 0 : index
    %78 = vector.load %arg15[%c9_45, %c0_46] : memref<146x8xf32, #tpu.memory_space<vmem>>, vector<128x8xf32>
    %c32 = arith.constant 32 : index
    %c0_47 = arith.constant 0 : index
    %79 = vector.load %arg5[%c32, %c0_47] : memref<72x8xf32, #tpu.memory_space<vmem>>, vector<8x8xf32>
    %cst_48 = arith.constant dense<0.000000e+00> : vector<128x8xf32>
    %80 = tpu.matmul %78, %79, %cst_48 {dimension_numbers = #tpu.dot_dimension_numbers<[1], [0], [0], [1], [0, 0, 1, 1], [], []>} : vector<128x8xf32>, vector<8x8xf32>, vector<128x8xf32> -> vector<128x8xf32>
    %81 = arith.addf %77, %80 : vector<128x8xf32>
    %c10 = arith.constant 10 : index
    %c0_49 = arith.constant 0 : index
    %82 = vector.load %arg15[%c10, %c0_49] : memref<146x8xf32, #tpu.memory_space<vmem>>, vector<128x8xf32>
    %c6_i32_50 = arith.constant 6 : i32
    %83 = vector.broadcast %c6_i32_50 : i32 to vector<128x1xi32>
    %84 = arith.cmpi sle, %1, %83 : vector<128x1xi32>
    %cst_51 = arith.constant 0.000000e+00 : f32
    %85 = vector.shape_cast %84 : vector<128x1xi1> to vector<128x1xi1>
    %86 = vector.broadcast %85 : vector<128x1xi1> to vector<128x8xi1>
    %87 = vector.broadcast %cst_51 : f32 to vector<128x8xf32>
    %88 = arith.select %86, %82, %87 : vector<128x8xi1>, vector<128x8xf32>
    %c40 = arith.constant 40 : index
    %c0_52 = arith.constant 0 : index
    %89 = vector.load %arg5[%c40, %c0_52] : memref<72x8xf32, #tpu.memory_space<vmem>>, vector<8x8xf32>
    %cst_53 = arith.constant dense<0.000000e+00> : vector<128x8xf32>
    %90 = tpu.matmul %88, %89, %cst_53 {dimension_numbers = #tpu.dot_dimension_numbers<[1], [0], [0], [1], [0, 0, 1, 1], [], []>} : vector<128x8xf32>, vector<8x8xf32>, vector<128x8xf32> -> vector<128x8xf32>
    %91 = arith.addf %81, %90 : vector<128x8xf32>
    %c16_54 = arith.constant 16 : index
    %c0_55 = arith.constant 0 : index
    %92 = vector.load %arg15[%c16_54, %c0_55] : memref<146x8xf32, #tpu.memory_space<vmem>>, vector<128x8xf32>
    %c6_i32_56 = arith.constant 6 : i32
    %93 = vector.broadcast %c6_i32_56 : i32 to vector<128x1xi32>
    %94 = arith.cmpi sle, %0, %93 : vector<128x1xi32>
    %c1_i32_57 = arith.constant 1 : i32
    %95 = vector.broadcast %c1_i32_57 : i32 to vector<128x1xi32>
    %96 = arith.cmpi sge, %1, %95 : vector<128x1xi32>
    %97 = arith.andi %94, %96 : vector<128x1xi1>
    %cst_58 = arith.constant 0.000000e+00 : f32
    %98 = vector.shape_cast %97 : vector<128x1xi1> to vector<128x1xi1>
    %99 = vector.broadcast %98 : vector<128x1xi1> to vector<128x8xi1>
    %100 = vector.broadcast %cst_58 : f32 to vector<128x8xf32>
    %101 = arith.select %99, %92, %100 : vector<128x8xi1>, vector<128x8xf32>
    %c48 = arith.constant 48 : index
    %c0_59 = arith.constant 0 : index
    %102 = vector.load %arg5[%c48, %c0_59] : memref<72x8xf32, #tpu.memory_space<vmem>>, vector<8x8xf32>
    %cst_60 = arith.constant dense<0.000000e+00> : vector<128x8xf32>
    %103 = tpu.matmul %101, %102, %cst_60 {dimension_numbers = #tpu.dot_dimension_numbers<[1], [0], [0], [1], [0, 0, 1, 1], [], []>} : vector<128x8xf32>, vector<8x8xf32>, vector<128x8xf32> -> vector<128x8xf32>
    %104 = arith.addf %91, %103 : vector<128x8xf32>
    %c17 = arith.constant 17 : index
    %c0_61 = arith.constant 0 : index
    %105 = vector.load %arg15[%c17, %c0_61] : memref<146x8xf32, #tpu.memory_space<vmem>>, vector<128x8xf32>
    %c6_i32_62 = arith.constant 6 : i32
    %106 = vector.broadcast %c6_i32_62 : i32 to vector<128x1xi32>
    %107 = arith.cmpi sle, %0, %106 : vector<128x1xi32>
    %cst_63 = arith.constant 0.000000e+00 : f32
    %108 = vector.shape_cast %107 : vector<128x1xi1> to vector<128x1xi1>
    %109 = vector.broadcast %108 : vector<128x1xi1> to vector<128x8xi1>
    %110 = vector.broadcast %cst_63 : f32 to vector<128x8xf32>
    %111 = arith.select %109, %105, %110 : vector<128x8xi1>, vector<128x8xf32>
    %c56 = arith.constant 56 : index
    %c0_64 = arith.constant 0 : index
    %112 = vector.load %arg5[%c56, %c0_64] : memref<72x8xf32, #tpu.memory_space<vmem>>, vector<8x8xf32>
    %cst_65 = arith.constant dense<0.000000e+00> : vector<128x8xf32>
    %113 = tpu.matmul %111, %112, %cst_65 {dimension_numbers = #tpu.dot_dimension_numbers<[1], [0], [0], [1], [0, 0, 1, 1], [], []>} : vector<128x8xf32>, vector<8x8xf32>, vector<128x8xf32> -> vector<128x8xf32>
    %114 = arith.addf %104, %113 : vector<128x8xf32>
    %c18 = arith.constant 18 : index
    %c0_66 = arith.constant 0 : index
    %115 = vector.load %arg15[%c18, %c0_66] : memref<146x8xf32, #tpu.memory_space<vmem>>, vector<128x8xf32>
    %c6_i32_67 = arith.constant 6 : i32
    %116 = vector.broadcast %c6_i32_67 : i32 to vector<128x1xi32>
    %117 = arith.cmpi sle, %0, %116 : vector<128x1xi32>
    %c6_i32_68 = arith.constant 6 : i32
    %118 = vector.broadcast %c6_i32_68 : i32 to vector<128x1xi32>
    %119 = arith.cmpi sle, %1, %118 : vector<128x1xi32>
    %120 = arith.andi %117, %119 : vector<128x1xi1>
    %cst_69 = arith.constant 0.000000e+00 : f32
    %121 = vector.shape_cast %120 : vector<128x1xi1> to vector<128x1xi1>
    %122 = vector.broadcast %121 : vector<128x1xi1> to vector<128x8xi1>
    %123 = vector.broadcast %cst_69 : f32 to vector<128x8xf32>
    %124 = arith.select %122, %115, %123 : vector<128x8xi1>, vector<128x8xf32>
    %c64 = arith.constant 64 : index
    %c0_70 = arith.constant 0 : index
    %125 = vector.load %arg5[%c64, %c0_70] : memref<72x8xf32, #tpu.memory_space<vmem>>, vector<8x8xf32>
    %cst_71 = arith.constant dense<0.000000e+00> : vector<128x8xf32>
    %126 = tpu.matmul %124, %125, %cst_71 {dimension_numbers = #tpu.dot_dimension_numbers<[1], [0], [0], [1], [0, 0, 1, 1], [], []>} : vector<128x8xf32>, vector<8x8xf32>, vector<128x8xf32> -> vector<128x8xf32>
    %127 = arith.addf %114, %126 : vector<128x8xf32>
    %c0_72 = arith.constant 0 : index
    %c0_73 = arith.constant 0 : index
    %128 = vector.load %arg8[%c0_72, %c0_73] : memref<1x8xf32, #tpu.memory_space<vmem>>, vector<1x8xf32>
    %c0_74 = arith.constant 0 : index
    %c0_75 = arith.constant 0 : index
    %129 = vector.load %arg9[%c0_74, %c0_75] : memref<1x8xf32, #tpu.memory_space<vmem>>, vector<1x8xf32>
    %cst_76 = arith.constant dense<0.000000e+00> : vector<8xf32>
    %130 = vector.multi_reduction <add>, %127, %cst_76 [0] : vector<128x8xf32> to vector<8xf32>
    %131 = vector.shape_cast %130 : vector<8xf32> to vector<1x8xf32>
    %cst_77 = arith.constant 7.812500e-03 : f32
    %132 = vector.broadcast %cst_77 : f32 to vector<1x8xf32>
    %133 = arith.mulf %131, %132 : vector<1x8xf32>
    %134 = vector.broadcast %133 : vector<1x8xf32> to vector<128x8xf32>
    %135 = arith.subf %127, %134 : vector<128x8xf32>
    %136 = arith.mulf %135, %135 : vector<128x8xf32>
    %cst_78 = arith.constant dense<0.000000e+00> : vector<8xf32>
    %137 = vector.multi_reduction <add>, %136, %cst_78 [0] : vector<128x8xf32> to vector<8xf32>
    %138 = vector.shape_cast %137 : vector<8xf32> to vector<1x8xf32>
    %cst_79 = arith.constant 7.812500e-03 : f32
    %139 = vector.broadcast %cst_79 : f32 to vector<1x8xf32>
    %140 = arith.mulf %138, %139 : vector<1x8xf32>
    %cst_80 = arith.constant 9.99999974E-6 : f32
    %141 = vector.broadcast %cst_80 : f32 to vector<1x8xf32>
    %142 = arith.addf %140, %141 : vector<1x8xf32>
    %143 = math.sqrt %142 : vector<1x8xf32>
    %144 = arith.divf %128, %143 : vector<1x8xf32>
    %145 = vector.broadcast %144 : vector<1x8xf32> to vector<128x8xf32>
    %146 = arith.mulf %135, %145 : vector<128x8xf32>
    %147 = vector.broadcast %129 : vector<1x8xf32> to vector<128x8xf32>
    %148 = arith.addf %146, %147 : vector<128x8xf32>
    %cst_81 = arith.constant 0.000000e+00 : f32
    %149 = vector.broadcast %cst_81 : f32 to vector<128x8xf32>
    %150 = arith.maximumf %148, %149 : vector<128x8xf32>
    %c0_82 = arith.constant 0 : index
    %c0_83 = arith.constant 0 : index
    %151 = vector.load %arg3[%c0_82, %c0_83] : memref<128x4xf32, #tpu.memory_space<vmem>>, vector<128x4xf32>
    %c0_84 = arith.constant 0 : index
    %c0_85 = arith.constant 0 : index
    %152 = vector.load %arg4[%c0_84, %c0_85] : memref<4x8xf32, #tpu.memory_space<vmem>>, vector<4x8xf32>
    %cst_86 = arith.constant dense<0.000000e+00> : vector<128x8xf32>
    %153 = tpu.matmul %151, %152, %cst_86 {dimension_numbers = #tpu.dot_dimension_numbers<[1], [0], [0], [1], [0, 0, 1, 1], [], []>} : vector<128x4xf32>, vector<4x8xf32>, vector<128x8xf32> -> vector<128x8xf32>
    %c0_87 = arith.constant 0 : index
    %c0_88 = arith.constant 0 : index
    %154 = vector.load %arg10[%c0_87, %c0_88] : memref<1x8xf32, #tpu.memory_space<vmem>>, vector<1x8xf32>
    %c0_89 = arith.constant 0 : index
    %c0_90 = arith.constant 0 : index
    %155 = vector.load %arg11[%c0_89, %c0_90] : memref<1x8xf32, #tpu.memory_space<vmem>>, vector<1x8xf32>
    %cst_91 = arith.constant dense<0.000000e+00> : vector<8xf32>
    %156 = vector.multi_reduction <add>, %153, %cst_91 [0] : vector<128x8xf32> to vector<8xf32>
    %157 = vector.shape_cast %156 : vector<8xf32> to vector<1x8xf32>
    %cst_92 = arith.constant 7.812500e-03 : f32
    %158 = vector.broadcast %cst_92 : f32 to vector<1x8xf32>
    %159 = arith.mulf %157, %158 : vector<1x8xf32>
    %160 = vector.broadcast %159 : vector<1x8xf32> to vector<128x8xf32>
    %161 = arith.subf %153, %160 : vector<128x8xf32>
    %162 = arith.mulf %161, %161 : vector<128x8xf32>
    %cst_93 = arith.constant dense<0.000000e+00> : vector<8xf32>
    %163 = vector.multi_reduction <add>, %162, %cst_93 [0] : vector<128x8xf32> to vector<8xf32>
    %164 = vector.shape_cast %163 : vector<8xf32> to vector<1x8xf32>
    %cst_94 = arith.constant 7.812500e-03 : f32
    %165 = vector.broadcast %cst_94 : f32 to vector<1x8xf32>
    %166 = arith.mulf %164, %165 : vector<1x8xf32>
    %cst_95 = arith.constant 9.99999974E-6 : f32
    %167 = vector.broadcast %cst_95 : f32 to vector<1x8xf32>
    %168 = arith.addf %166, %167 : vector<1x8xf32>
    %169 = math.sqrt %168 : vector<1x8xf32>
    %170 = arith.divf %154, %169 : vector<1x8xf32>
    %171 = vector.broadcast %170 : vector<1x8xf32> to vector<128x8xf32>
    %172 = arith.mulf %161, %171 : vector<128x8xf32>
    %173 = vector.broadcast %155 : vector<1x8xf32> to vector<128x8xf32>
    %174 = arith.addf %172, %173 : vector<128x8xf32>
    %cst_96 = arith.constant 0.000000e+00 : f32
    %175 = vector.broadcast %cst_96 : f32 to vector<128x8xf32>
    %176 = arith.maximumf %174, %175 : vector<128x8xf32>
    %177 = arith.addf %176, %150 : vector<128x8xf32>
    %c0_97 = arith.constant 0 : index
    %c0_98 = arith.constant 0 : index
    %178 = vector.load %arg14[%c0_97, %c0_98] : memref<128x8xf32, #tpu.memory_space<vmem>>, vector<128x8xf32>
    tpu.vector_store %arg14[%c0_97, %c0_98], %177 {strides = array<i32>} : memref<128x8xf32, #tpu.memory_space<vmem>>, vector<128x8xf32>,
    return
  }
  func.func @transform_0(%arg0: i32) -> (i32, i32) {
    %c0_i32 = arith.constant 0 : i32
    %c0_i32_0 = arith.constant 0 : i32
    %c0_i32_1 = arith.constant 0 : i32
    return %c0_i32, %c0_i32_0 : i32, i32
  }
  func.func @transform_1(%arg0: i32) -> (i32, i32) {
    %c0_i32 = arith.constant 0 : i32
    %c0_i32_0 = arith.constant 0 : i32
    %c0_i32_1 = arith.constant 0 : i32
    return %c0_i32, %c0_i32_0 : i32, i32
  }
  func.func @transform_2(%arg0: i32) -> (i32, i32) {
    %c0_i32 = arith.constant 0 : i32
    %c0_i32_0 = arith.constant 0 : i32
    %c0_i32_1 = arith.constant 0 : i32
    return %c0_i32, %c0_i32_0 : i32, i32
  }
  func.func @transform_3(%arg0: i32) -> (i32, i32) {
    %c0_i32 = arith.constant 0 : i32
    %c0_i32_0 = arith.constant 0 : i32
    %c0_i32_1 = arith.constant 0 : i32
    return %c0_i32, %c0_i32_0 : i32, i32
  }
  func.func @transform_4(%arg0: i32) -> (i32, i32) {
    %c0_i32 = arith.constant 0 : i32
    %c0_i32_0 = arith.constant 0 : i32
    %c0_i32_1 = arith.constant 0 : i32
    return %c0_i32, %c0_i32_0 : i32, i32
  }
  func.func @transform_5(%arg0: i32) -> (i32, i32) {
    %c0_i32 = arith.constant 0 : i32
    %c0_i32_0 = arith.constant 0 : i32
    %c0_i32_1 = arith.constant 0 : i32
    return %c0_i32, %c0_i32_0 : i32, i32
  }
  func.func @transform_6(%arg0: i32) -> (i32, i32) {
    %c0_i32 = arith.constant 0 : i32
    %c0_i32_0 = arith.constant 0 : i32
    %c0_i32_1 = arith.constant 0 : i32
    return %c0_i32, %c0_i32_0 : i32, i32
  }
  func.func @transform_7(%arg0: i32) -> (i32, i32) {
    %c0_i32 = arith.constant 0 : i32
    %c0_i32_0 = arith.constant 0 : i32
    %c0_i32_1 = arith.constant 0 : i32
    return %c0_i32, %c0_i32_0 : i32, i32
  }
  func.func @transform_8(%arg0: i32) -> (i32, i32) {
    %c0_i32 = arith.constant 0 : i32
    %c0_i32_0 = arith.constant 0 : i32
    %c0_i32_1 = arith.constant 0 : i32
    return %c0_i32, %c0_i32_0 : i32, i32
  }
  func.func @transform_9(%arg0: i32) -> (i32, i32) {
    %c0_i32 = arith.constant 0 : i32
    %c0_i32_0 = arith.constant 0 : i32
    %c0_i32_1 = arith.constant 0 : i32
    return %c0_i32, %c0_i32_0 : i32, i32
  }
  func.func @transform_10(%arg0: i32) -> (i32, i32) {
    %c0_i32 = arith.constant 0 : i32
    %c0_i32_0 = arith.constant 0 : i32
    %c0_i32_1 = arith.constant 0 : i32
    return %c0_i32, %c0_i32_0 : i32, i32
  }
  func.func @transform_11(%arg0: i32) -> (i32, i32) {
    %c0_i32 = arith.constant 0 : i32
    %c0_i32_0 = arith.constant 0 : i32
    %c0_i32_1 = arith.constant 0 : i32
    return %c0_i32, %c0_i32_0 : i32, i32
  }
  func.func @transform_12(%arg0: i32) -> (i32, i32) {
    %c0_i32 = arith.constant 0 : i32
    %c0_i32_0 = arith.constant 0 : i32
    %c0_i32_1 = arith.constant 0 : i32
    return %c0_i32, %c0_i32_0 : i32, i32
  }
  func.func @transform_13(%arg0: i32) -> (i32, i32) {
    %c0_i32 = arith.constant 0 : i32
    %c0_i32_0 = arith.constant 0 : i32
    %c0_i32_1 = arith.constant 0 : i32
    return %c0_i32, %c0_i32_0 : i32, i32
  }
}

</mosaic_0001>

<llo_original>
// kernel: resblock2_forward.1
$region0: #{resblock2_forward.1}
  #allocation0 [shape = 'u32[]', space=smem, size = 0x4, offset = 0x4, fixed_abs, tag = 'smem constant byte address 0x4 - core index']
  #allocation1 [shape = 'u32[144,128]{1,0:T(1,128)}', space=vmem, size = 0x12000, scoped, tag = 'internal scratch']
  #allocation2 [shape = 'f32[146,8]{1,0:T(8,128)}', space=vmem, size = 0x13000, scoped, tag = 'scratch operand']
  %s0 = inlined_call_operand.vmem [shape: f32[128,36], index: 0, kind: input, shape index: {}]
  %s1 = inlined_call_operand.vmem [shape: f32[36,8], index: 1, kind: input, shape index: {}]
  %s2 = inlined_call_operand.vmem [shape: f32[128,4], index: 2, kind: input, shape index: {}]
  %s3 = inlined_call_operand.vmem [shape: f32[4,8], index: 3, kind: input, shape index: {}]
  %s4 = inlined_call_operand.vmem [shape: f32[72,8], index: 4, kind: input, shape index: {}]
  %s5 = inlined_call_operand.vmem [shape: f32[1,8], index: 5, kind: input, shape index: {}]
  %s6 = inlined_call_operand.vmem [shape: f32[1,8], index: 6, kind: input, shape index: {}]
  %s7 = inlined_call_operand.vmem [shape: f32[1,8], index: 7, kind: input, shape index: {}]
  %s8 = inlined_call_operand.vmem [shape: f32[1,8], index: 8, kind: input, shape index: {}]
  %s9 = inlined_call_operand.vmem [shape: f32[1,8], index: 9, kind: input, shape index: {}]
  %s10 = inlined_call_operand.vmem [shape: f32[1,8], index: 10, kind: input, shape index: {}]
  %s11 = inlined_call_operand.vmem [shape: s32[128,1], index: 11, kind: input, shape index: {}]
  %s12 = inlined_call_operand.vmem [shape: s32[128,1], index: 12, kind: input, shape index: {}]
  %s13 = inlined_call_operand.vmem [shape: f32[128,8], index: 13, kind: output, shape index: {}]
  %s14 = sld [smem:[#allocation0]]
  $region62: #{resblock2_forward.1} parent=0
    _
  %s16 = ssub.s32 1, %s14
  %s17 = scalar_select 0, %s16, %s14
  // Predicated region
  $region2: #{resblock2_forward.1} parent=0 // pred_check
    _
  $region3: #{resblock2_forward.1} parent=0 // pred_check_branch
    %19 = sbr.rel (0) target = $region5
  $region4: #{resblock2_forward.1} parent=0 // pred_region
    _
  $region5: #{resblock2_forward.1} parent=0 // pred_fallthru
    _
  // Predicated region
  $region6: #{resblock2_forward.1} parent=0 // pred_check
    _
  $region7: #{resblock2_forward.1} parent=0 // pred_check_branch
    %21 = sbr.rel (0) target = $region9
  $region8: #{resblock2_forward.1} parent=0 // pred_region
    _
  $region9: #{resblock2_forward.1} parent=0 // pred_fallthru
    _
  // Predicated region
  $region10: #{resblock2_forward.1} parent=0 // pred_check
    _
  $region11: #{resblock2_forward.1} parent=0 // pred_check_branch
    %23 = sbr.rel (0) target = $region13
  $region12: #{resblock2_forward.1} parent=0 // pred_region
    _
  $region13: #{resblock2_forward.1} parent=0 // pred_fallthru
    _
  // Predicated region
  $region14: #{resblock2_forward.1} parent=0 // pred_check
    _
  $region15: #{resblock2_forward.1} parent=0 // pred_check_branch
    %25 = sbr.rel (0) target = $region17
  $region16: #{resblock2_forward.1} parent=0 // pred_region
    _
  $region17: #{resblock2_forward.1} parent=0 // pred_fallthru
    _
  // Predicated region
  $region18: #{resblock2_forward.1} parent=0 // pred_check
    _
  $region19: #{resblock2_forward.1} parent=0 // pred_check_branch
    %27 = sbr.rel (0) target = $region21
  $region20: #{resblock2_forward.1} parent=0 // pred_region
    _
  $region21: #{resblock2_forward.1} parent=0 // pred_fallthru
    _
  // Predicated region
  $region22: #{resblock2_forward.1} parent=0 // pred_check
    _
  $region23: #{resblock2_forward.1} parent=0 // pred_check_branch
    %29 = sbr.rel (0) target = $region25
  $region24: #{resblock2_forward.1} parent=0 // pred_region
    _
  $region25: #{resblock2_forward.1} parent=0 // pred_fallthru
    _
  // Predicated region
  $region26: #{resblock2_forward.1} parent=0 // pred_check
    _
  $region27: #{resblock2_forward.1} parent=0 // pred_check_branch
    %31 = sbr.rel (0) target = $region29
  $region28: #{resblock2_forward.1} parent=0 // pred_region
    _
  $region29: #{resblock2_forward.1} parent=0 // pred_fallthru
    _
  // Predicated region
  $region30: #{resblock2_forward.1} parent=0 // pred_check
    _
  $region31: #{resblock2_forward.1} parent=0 // pred_check_branch
    %33 = sbr.rel (0) target = $region33
  $region32: #{resblock2_forward.1} parent=0 // pred_region
    _
  $region33: #{resblock2_forward.1} parent=0 // pred_fallthru
    _
  // Predicated region
  $region34: #{resblock2_forward.1} parent=0 // pred_check
    _
  $region35: #{resblock2_forward.1} parent=0 // pred_check_branch
    %35 = sbr.rel (0) target = $region37
  $region36: #{resblock2_forward.1} parent=0 // pred_region
    _
  $region37: #{resblock2_forward.1} parent=0 // pred_fallthru
    _
  // Predicated region
  $region38: #{resblock2_forward.1} parent=0 // pred_check
    _
  $region39: #{resblock2_forward.1} parent=0 // pred_check_branch
    %37 = sbr.rel (0) target = $region41
  $region40: #{resblock2_forward.1} parent=0 // pred_region
    _
  $region41: #{resblock2_forward.1} parent=0 // pred_fallthru
    _
  // Predicated region
  $region42: #{resblock2_forward.1} parent=0 // pred_check
    _
  $region43: #{resblock2_forward.1} parent=0 // pred_check_branch
    %39 = sbr.rel (0) target = $region45
  $region44: #{resblock2_forward.1} parent=0 // pred_region
    _
  $region45: #{resblock2_forward.1} parent=0 // pred_fallthru
    _
  // Predicated region
  $region46: #{resblock2_forward.1} parent=0 // pred_check
    _
  $region47: #{resblock2_forward.1} parent=0 // pred_check_branch
    %41 = sbr.rel (0) target = $region49
  $region48: #{resblock2_forward.1} parent=0 // pred_region
    _
  $region49: #{resblock2_forward.1} parent=0 // pred_fallthru
    _
  // Predicated region
  $region50: #{resblock2_forward.1} parent=0 // pred_check
    _
  $region51: #{resblock2_forward.1} parent=0 // pred_check_branch
    %43 = sbr.rel (0) target = $region53
  $region52: #{resblock2_forward.1} parent=0 // pred_region
    _
  $region53: #{resblock2_forward.1} parent=0 // pred_fallthru
    _
  %v44 = vld [vmem:[%s11] sm:$0xff]
  %v45 = vld [vmem:[%s11 + $0x8] sm:$0xff]
  %v46 = vld [vmem:[%s11 + $0x10] sm:$0xff]
  %v47 = vld [vmem:[%s11 + $0x18] sm:$0xff]
  %v48 = vld [vmem:[%s11 + $0x20] sm:$0xff]
  %v49 = vld [vmem:[%s11 + $0x28] sm:$0xff]
  %v50 = vld [vmem:[%s11 + $0x30] sm:$0xff]
  %v51 = vld [vmem:[%s11 + $0x38] sm:$0xff]
  %v52 = vld [vmem:[%s11 + $0x40] sm:$0xff]
  %v53 = vld [vmem:[%s11 + $0x48] sm:$0xff]
  %v54 = vld [vmem:[%s11 + $0x50] sm:$0xff]
  %v55 = vld [vmem:[%s11 + $0x58] sm:$0xff]
  %v56 = vld [vmem:[%s11 + $0x60] sm:$0xff]
  %v57 = vld [vmem:[%s11 + $0x68] sm:$0xff]
  %v58 = vld [vmem:[%s11 + $0x70] sm:$0xff]
  %v59 = vld [vmem:[%s11 + $0x78] sm:$0xff]
  %v60 = vld [vmem:[%s12] sm:$0xff]
  %v61 = vld [vmem:[%s12 + $0x8] sm:$0xff]
  %v62 = vld [vmem:[%s12 + $0x10] sm:$0xff]
  %v63 = vld [vmem:[%s12 + $0x18] sm:$0xff]
  %v64 = vld [vmem:[%s12 + $0x20] sm:$0xff]
  %v65 = vld [vmem:[%s12 + $0x28] sm:$0xff]
  %v66 = vld [vmem:[%s12 + $0x30] sm:$0xff]
  %v67 = vld [vmem:[%s12 + $0x38] sm:$0xff]
  %v68 = vld [vmem:[%s12 + $0x40] sm:$0xff]
  %v69 = vld [vmem:[%s12 + $0x48] sm:$0xff]
  %v70 = vld [vmem:[%s12 + $0x50] sm:$0xff]
  %v71 = vld [vmem:[%s12 + $0x58] sm:$0xff]
  %v72 = vld [vmem:[%s12 + $0x60] sm:$0xff]
  %v73 = vld [vmem:[%s12 + $0x68] sm:$0xff]
  %v74 = vld [vmem:[%s12 + $0x70] sm:$0xff]
  %v75 = vld [vmem:[%s12 + $0x78] sm:$0xff]
  %v76 = vld [vmem:[%s0] sm:$0xff]
  %v77 = vld [vmem:[%s0 + $0x8] sm:$0xff]
  %v78 = vld [vmem:[%s0 + $0x10] sm:$0xff]
  %v79 = vld [vmem:[%s0 + $0x18] sm:$0xff]
  %v80 = vld [vmem:[%s0 + $0x20] sm:$0xff]
  %v81 = vld [vmem:[%s0 + $0x28] sm:$0xff]
  %v82 = vld [vmem:[%s0 + $0x30] sm:$0xff]
  %v83 = vld [vmem:[%s0 + $0x38] sm:$0xff]
  %v84 = vld [vmem:[%s0 + $0x40] sm:$0xff]
  %v85 = vld [vmem:[%s0 + $0x48] sm:$0xff]
  %v86 = vld [vmem:[%s0 + $0x50] sm:$0xff]
  %v87 = vld [vmem:[%s0 + $0x58] sm:$0xff]
  %v88 = vld [vmem:[%s0 + $0x60] sm:$0xff]
  %v89 = vld [vmem:[%s0 + $0x68] sm:$0xff]
  %v90 = vld [vmem:[%s0 + $0x70] sm:$0xff]
  %v91 = vld [vmem:[%s0 + $0x78] sm:$0xff]
  %v92 = vld [vmem:[%s1] sm:$0xff]
  %v93 = vld [vmem:[%s1 + $0x8] sm:$0xff]
  %v94 = vld [vmem:[%s1 + $0x10] sm:$0xff]
  %v95 = vld [vmem:[%s1 + $0x18] sm:$0xff]
  %v96 = vld [vmem:[%s1 + $0x20] sm:$0xf]
  %vm97 = vcmask 293888
  %v99 = vsel %vm97, %v76, 0
  %v102 = vsel %vm97, %v77, 0
  %v105 = vsel %vm97, %v78, 0
  %v108 = vsel %vm97, %v79, 0
  %v111 = vsel %vm97, %v80, 0
  %v114 = vsel %vm97, %v81, 0
  %v117 = vsel %vm97, %v82, 0
  %v120 = vsel %vm97, %v83, 0
  %v123 = vsel %vm97, %v84, 0
  %v126 = vsel %vm97, %v85, 0
  %v129 = vsel %vm97, %v86, 0
  %v132 = vsel %vm97, %v87, 0
  %v135 = vsel %vm97, %v88, 0
  %v138 = vsel %vm97, %v89, 0
  %v141 = vsel %vm97, %v90, 0
  %v144 = vsel %vm97, %v91, 0
  %vm146 = vcmask 1043456
  %v148 = vsel %vm146, %v96, 0
  %150 = vmatprep.subr.mxu0 0.0
  %151 = vmatpush1.msra.mxu0 %v92
  %152 = vmatprep.subr.mxu0 0.0
  %153 = vmatpush1.msra.mxu0 %v93
  %154 = vmatprep.subr.mxu0 0.0
  %155 = vmatpush1.msra.mxu0 %v94
  %156 = vmatprep.subr.mxu0 0.0
  %157 = vmatpush1.msra.mxu0 %v95
  %158 = vmatprep.subr.mxu0 0.0
  %159 = vmatpush1.msra.mxu0 %v148
  %160 = vmatprep.subr.mxu0 0.0
  %161 = vmatpush1.msra.mxu0 0.0
  %162 = vmatprep.subr.mxu0 0.0
  %163 = vmatpush1.msra.mxu0 0.0
  %164 = vmatprep.subr.mxu0 0.0
  %165 = vmatpush1.msra.mxu0 0.0
  %166 = vmatprep.subr.mxu0 0.0
  %167 = vmatpush1.msra.mxu0 0.0
  %168 = vmatprep.subr.mxu0 0.0
  %169 = vmatpush1.msra.mxu0 0.0
  %170 = vmatprep.subr.mxu0 0.0
  %171 = vmatpush1.msra.mxu0 0.0
  %172 = vmatprep.subr.mxu0 0.0
  %173 = vmatpush1.msra.mxu0 0.0
  %174 = vmatprep.subr.mxu0 0.0
  %175 = vmatpush1.msra.mxu0 0.0
  %176 = vmatprep.subr.mxu0 0.0
  %177 = vmatpush1.msra.mxu0 0.0
  %178 = vmatprep.subr.mxu0 0.0
  %179 = vmatpush1.msra.mxu0 0.0
  %180 = vmatprep.subr.mxu0 0.0
  %181 = vmatpush1.msra.mxu0 0.0
  %182 = vmatprep.subr.mxu0 0.0
  %183 = vmatpush1.msra.mxu0 0.0
  %184 = vmatprep.subr.mxu0 0.0
  %185 = vmatpush1.msra.mxu0 0.0
  %186 = vmatprep.subr.mxu0 0.0
  %187 = vmatpush1.msra.mxu0 0.0
  %188 = vmatprep.subr.mxu0 0.0
  %189 = vmatpush1.msra.mxu0 0.0
  %190 = vmatprep.subr.mxu0 0.0
  %191 = vmatpush1.msra.mxu0 0.0
  %192 = vmatprep.subr.mxu0 0.0
  %193 = vmatpush1.msra.mxu0 0.0
  %194 = vmatprep.subr.mxu0 0.0
  %195 = vmatpush1.msra.mxu0 0.0
  %196 = vmatprep.subr.mxu0 0.0
  %197 = vmatpush1.msra.mxu0 0.0
  %198 = vmatprep.subr.mxu0 0.0
  %199 = vmatpush1.msra.mxu0 0.0
  %200 = vmatprep.subr.mxu0 0.0
  %201 = vmatpush1.msra.mxu0 0.0
  %202 = vmatprep.subr.mxu0 0.0
  %203 = vmatpush1.msra.mxu0 0.0
  %204 = vmatprep.subr.mxu0 0.0
  %205 = vmatpush1.msra.mxu0 0.0
  %206 = vmatprep.subr.mxu0 0.0
  %207 = vmatpush1.msra.mxu0 0.0
  %208 = vmatprep.subr.mxu0 0.0
  %209 = vmatpush1.msra.mxu0 0.0
  %210 = vmatprep.subr.mxu0 0.0
  %211 = vmatpush1.msra.mxu0 0.0
  %212 = vmatprep.subr.mxu0 0.0
  %213 = vmatpush1.msra.mxu0 0.0
  %214 = vmatprep.mubr.f32.mxu0 0.0
  %215 = vmatmul.mubr.f32.gmra.mrb[0].mxu0 %v99
  %v216 = vpop.f32.mrb[0].mxu0
  %v217 = vadd.f32 0.0, %v216
  %v218 = vpop.f32.mrb[0].mxu0
  %219 = vmatprep.mubr.f32.mxu0 0.0
  %220 = vmatmul.mubr.f32.gmra.mrb[0].mxu0 %v102
  %v221 = vpop.f32.mrb[0].mxu0
  %v222 = vadd.f32 0.0, %v221
  %v223 = vpop.f32.mrb[0].mxu0
  %224 = vmatprep.mubr.f32.mxu0 0.0
  %225 = vmatmul.mubr.f32.gmra.mrb[0].mxu0 %v105
  %v226 = vpop.f32.mrb[0].mxu0
  %v227 = vadd.f32 0.0, %v226
  %v228 = vpop.f32.mrb[0].mxu0
  %229 = vmatprep.mubr.f32.mxu0 0.0
  %230 = vmatmul.mubr.f32.gmra.mrb[0].mxu0 %v108
  %v231 = vpop.f32.mrb[0].mxu0
  %v232 = vadd.f32 0.0, %v231
  %v233 = vpop.f32.mrb[0].mxu0
  %234 = vmatprep.mubr.f32.mxu0 0.0
  %235 = vmatmul.mubr.f32.gmra.mrb[0].mxu0 %v111
  %v236 = vpop.f32.mrb[0].mxu0
  %v237 = vadd.f32 0.0, %v236
  %v238 = vpop.f32.mrb[0].mxu0
  %239 = vmatprep.mubr.f32.mxu0 0.0
  %240 = vmatmul.mubr.f32.gmra.mrb[0].mxu0 %v114
  %v241 = vpop.f32.mrb[0].mxu0
  %v242 = vadd.f32 0.0, %v241
  %v243 = vpop.f32.mrb[0].mxu0
  %244 = vmatprep.mubr.f32.mxu0 0.0
  %245 = vmatmul.mubr.f32.gmra.mrb[0].mxu0 %v117
  %v246 = vpop.f32.mrb[0].mxu0
  %v247 = vadd.f32 0.0, %v246
  %v248 = vpop.f32.mrb[0].mxu0
  %249 = vmatprep.mubr.f32.mxu0 0.0
  %250 = vmatmul.mubr.f32.gmra.mrb[0].mxu0 %v120
  %v251 = vpop.f32.mrb[0].mxu0
  %v252 = vadd.f32 0.0, %v251
  %v253 = vpop.f32.mrb[0].mxu0
  %254 = vmatprep.mubr.f32.mxu0 0.0
  %255 = vmatmul.mubr.f32.gmra.mrb[0].mxu0 %v123
  %v256 = vpop.f32.mrb[0].mxu0
  %v257 = vadd.f32 0.0, %v256
  %v258 = vpop.f32.mrb[0].mxu0
  %259 = vmatprep.mubr.f32.mxu0 0.0
  %260 = vmatmul.mubr.f32.gmra.mrb[0].mxu0 %v126
  %v261 = vpop.f32.mrb[0].mxu0
  %v262 = vadd.f32 0.0, %v261
  %v263 = vpop.f32.mrb[0].mxu0
  %264 = vmatprep.mubr.f32.mxu0 0.0
  %265 = vmatmul.mubr.f32.gmra.mrb[0].mxu0 %v129
  %v266 = vpop.f32.mrb[0].mxu0
  %v267 = vadd.f32 0.0, %v266
  %v268 = vpop.f32.mrb[0].mxu0
  %269 = vmatprep.mubr.f32.mxu0 0.0
  %270 = vmatmul.mubr.f32.gmra.mrb[0].mxu0 %v132
  %v271 = vpop.f32.mrb[0].mxu0
  %v272 = vadd.f32 0.0, %v271
  %v273 = vpop.f32.mrb[0].mxu0
  %274 = vmatprep.mubr.f32.mxu0 0.0
  %275 = vmatmul.mubr.f32.gmra.mrb[0].mxu0 %v135
  %v276 = vpop.f32.mrb[0].mxu0
  %v277 = vadd.f32 0.0, %v276
  %v278 = vpop.f32.mrb[0].mxu0
  %279 = vmatprep.mubr.f32.mxu0 0.0
  %280 = vmatmul.mubr.f32.gmra.mrb[0].mxu0 %v138
  %v281 = vpop.f32.mrb[0].mxu0
  %v282 = vadd.f32 0.0, %v281
  %v283 = vpop.f32.mrb[0].mxu0
  %284 = vmatprep.mubr.f32.mxu0 0.0
  %285 = vmatmul.mubr.f32.gmra.mrb[0].mxu0 %v141
  %v286 = vpop.f32.mrb[0].mxu0
  %v287 = vadd.f32 0.0, %v286
  %v288 = vpop.f32.mrb[0].mxu0
  %289 = vmatprep.mubr.f32.mxu0 0.0
  %290 = vmatmul.mubr.f32.gmra.mrb[0].mxu0 %v144
  %v291 = vpop.f32.mrb[0].mxu0
  %v292 = vadd.f32 0.0, %v291
  %v293 = vpop.f32.mrb[0].mxu0
  %294 = vdwg.mxu0
  %v295 = vld [vmem:[%s5] sm:$0x1]
  %v296 = vld [vmem:[%s6] sm:$0x1]
  %vm297 = vcmask 64512
  %v298 = vsel %vm297, %v217, 0.0
  %v299 = vsel %vm297, %v222, 0.0
  %v300 = vadd.f32 %v298, %v299
  %v301 = vsel %vm297, %v227, 0.0
  %v302 = vadd.f32 %v300, %v301
  %v303 = vsel %vm297, %v232, 0.0
  %v304 = vadd.f32 %v302, %v303
  %v305 = vsel %vm297, %v237, 0.0
  %v306 = vadd.f32 %v304, %v305
  %v307 = vsel %vm297, %v242, 0.0
  %v308 = vadd.f32 %v306, %v307
  %v309 = vsel %vm297, %v247, 0.0
  %v310 = vadd.f32 %v308, %v309
  %v311 = vsel %vm297, %v252, 0.0
  %v312 = vadd.f32 %v310, %v311
  %v313 = vsel %vm297, %v257, 0.0
  %v314 = vadd.f32 %v312, %v313
  %v315 = vsel %vm297, %v262, 0.0
  %v316 = vadd.f32 %v314, %v315
  %v317 = vsel %vm297, %v267, 0.0
  %v318 = vadd.f32 %v316, %v317
  %v319 = vsel %vm297, %v272, 0.0
  %v320 = vadd.f32 %v318, %v319
  %v321 = vsel %vm297, %v277, 0.0
  %v322 = vadd.f32 %v320, %v321
  %v323 = vsel %vm297, %v282, 0.0
  %v324 = vadd.f32 %v322, %v323
  %v325 = vsel %vm297, %v287, 0.0
  %v326 = vadd.f32 %v324, %v325
  %v327 = vsel %vm297, %v292, 0.0
  %v328 = vadd.f32 %v326, %v327
  %v329 = vrot.slane %v328, 4
  %v330 = vadd.f32 %v328, %v329
  %v331 = vrot.slane %v330, 2
  %v332 = vadd.f32 %v330, %v331
  %v333 = vrot.slane %v332, 1
  %v334 = vadd.f32 %v332, %v333
  %v335 = vmul.f32 %v334, 0.0078125
  %v336 = vsub.f32 %v217, %v335
  %v337 = vsub.f32 %v222, %v335
  %v338 = vsub.f32 %v227, %v335
  %v339 = vsub.f32 %v232, %v335
  %v340 = vsub.f32 %v237, %v335
  %v341 = vsub.f32 %v242, %v335
  %v342 = vsub.f32 %v247, %v335
  %v343 = vsub.f32 %v252, %v335
  %v344 = vsub.f32 %v257, %v335
  %v345 = vsub.f32 %v262, %v335
  %v346 = vsub.f32 %v267, %v335
  %v347 = vsub.f32 %v272, %v335
  %v348 = vsub.f32 %v277, %v335
  %v349 = vsub.f32 %v282, %v335
  %v350 = vsub.f32 %v287, %v335
  %v351 = vsub.f32 %v292, %v335
  %v352 = vmul.f32 %v336, %v336
  %v353 = vmul.f32 %v337, %v337
  %v354 = vmul.f32 %v338, %v338
  %v355 = vmul.f32 %v339, %v339
  %v356 = vmul.f32 %v340, %v340
  %v357 = vmul.f32 %v341, %v341
  %v358 = vmul.f32 %v342, %v342
  %v359 = vmul.f32 %v343, %v343
  %v360 = vmul.f32 %v344, %v344
  %v361 = vmul.f32 %v345, %v345
  %v362 = vmul.f32 %v346, %v346
  %v363 = vmul.f32 %v347, %v347
  %v364 = vmul.f32 %v348, %v348
  %v365 = vmul.f32 %v349, %v349
  %v366 = vmul.f32 %v350, %v350
  %v367 = vmul.f32 %v351, %v351
  %v368 = vsel %vm297, %v352, 0.0
  %v369 = vsel %vm297, %v353, 0.0
  %v370 = vadd.f32 %v368, %v369
  %v371 = vsel %vm297, %v354, 0.0
  %v372 = vadd.f32 %v370, %v371
  %v373 = vsel %vm297, %v355, 0.0
  %v374 = vadd.f32 %v372, %v373
  %v375 = vsel %vm297, %v356, 0.0
  %v376 = vadd.f32 %v374, %v375
  %v377 = vsel %vm297, %v357, 0.0
  %v378 = vadd.f32 %v376, %v377
  %v379 = vsel %vm297, %v358, 0.0
  %v380 = vadd.f32 %v378, %v379
  %v381 = vsel %vm297, %v359, 0.0
  %v382 = vadd.f32 %v380, %v381
  %v383 = vsel %vm297, %v360, 0.0
  %v384 = vadd.f32 %v382, %v383
  %v385 = vsel %vm297, %v361, 0.0
  %v386 = vadd.f32 %v384, %v385
  %v387 = vsel %vm297, %v362, 0.0
  %v388 = vadd.f32 %v386, %v387
  %v389 = vsel %vm297, %v363, 0.0
  %v390 = vadd.f32 %v388, %v389
  %v391 = vsel %vm297, %v364, 0.0
  %v392 = vadd.f32 %v390, %v391
  %v393 = vsel %vm297, %v365, 0.0
  %v394 = vadd.f32 %v392, %v393
  %v395 = vsel %vm297, %v366, 0.0
  %v396 = vadd.f32 %v394, %v395
  %v397 = vsel %vm297, %v367, 0.0
  %v398 = vadd.f32 %v396, %v397
  %v399 = vrot.slane %v398, 4
  %v400 = vadd.f32 %v398, %v399
  %v401 = vrot.slane %v400, 2
  %v402 = vadd.f32 %v400, %v401
  %v403 = vrot.slane %v402, 1
  %v404 = vadd.f32 %v402, %v403
  %v405 = vmul.f32 %v404, 0.0078125
  %v406 = vadd.f32 %v405, 1e-05
  %v407 = vrsqrt.pop %v406
  %v408 = vmul.f32 %v406, %v407
  %vm409 = vcmp.eq.f32.partialorder %v406, inf
  %v410 = vsel %vm409, %v406, %v408
  %vm411 = vcmp.eq.f32.partialorder %v406, 0.0
  %v412 = vand.u32 %v406, 2147483648
  %v413 = vsel %vm411, %v412, %v410
  %v414 = vrcp.pop %v413
  %v415 = vmul.f32 %v295, %v414
  %v417 = vlaneseq
  %v418 = vshrl.u32 %v417, 7
  %v419 = vsub.s32 0, %v418
  %v420 = vrot.slane %v415, %v419
  %v422 = vmul.f32 %v336, %v420
  %v423 = vmul.f32 %v337, %v420
  %v424 = vmul.f32 %v338, %v420
  %v425 = vmul.f32 %v339, %v420
  %v426 = vmul.f32 %v340, %v420
  %v427 = vmul.f32 %v341, %v420
  %v428 = vmul.f32 %v342, %v420
  %v429 = vmul.f32 %v343, %v420
  %v430 = vmul.f32 %v344, %v420
  %v431 = vmul.f32 %v345, %v420
  %v432 = vmul.f32 %v346, %v420
  %v433 = vmul.f32 %v347, %v420
  %v434 = vmul.f32 %v348, %v420
  %v435 = vmul.f32 %v349, %v420
  %v436 = vmul.f32 %v350, %v420
  %v437 = vmul.f32 %v351, %v420
  %v439 = vlaneseq
  %v440 = vshrl.u32 %v439, 7
  %v441 = vsub.s32 0, %v440
  %v442 = vrot.slane %v296, %v441
  %v444 = vadd.f32 %v422, %v442
  %v445 = vadd.f32 %v423, %v442
  %v446 = vadd.f32 %v424, %v442
  %v447 = vadd.f32 %v425, %v442
  %v448 = vadd.f32 %v426, %v442
  %v449 = vadd.f32 %v427, %v442
  %v450 = vadd.f32 %v428, %v442
  %v451 = vadd.f32 %v429, %v442
  %v452 = vadd.f32 %v430, %v442
  %v453 = vadd.f32 %v431, %v442
  %v454 = vadd.f32 %v432, %v442
  %v455 = vadd.f32 %v433, %v442
  %v456 = vadd.f32 %v434, %v442
  %v457 = vadd.f32 %v435, %v442
  %v458 = vadd.f32 %v436, %v442
  %v459 = vadd.f32 %v437, %v442
  %v460 = vmax.f32 %v444, 0.0
  %v461 = vmax.f32 %v445, 0.0
  %v462 = vmax.f32 %v446, 0.0
  %v463 = vmax.f32 %v447, 0.0
  %v464 = vmax.f32 %v448, 0.0
  %v465 = vmax.f32 %v449, 0.0
  %v466 = vmax.f32 %v450, 0.0
  %v467 = vmax.f32 %v451, 0.0
  %v468 = vmax.f32 %v452, 0.0
  %v469 = vmax.f32 %v453, 0.0
  %v470 = vmax.f32 %v454, 0.0
  %v471 = vmax.f32 %v455, 0.0
  %v472 = vmax.f32 %v456, 0.0
  %v473 = vmax.f32 %v457, 0.0
  %v474 = vmax.f32 %v458, 0.0
  %v475 = vmax.f32 %v459, 0.0
  %476 = vst.msk [vmem:[#allocation2] sm:$0xff] %vm297, 0.0
  %477 = vst.msk [vmem:[#allocation2 + $0x8] sm:$0xff] %vm297, 0.0
  %478 = vst.msk [vmem:[#allocation2 + $0x10] sm:$0xff] %vm297, 0.0
  %479 = vst.msk [vmem:[#allocation2 + $0x18] sm:$0xff] %vm297, 0.0
  %480 = vst.msk [vmem:[#allocation2 + $0x20] sm:$0xff] %vm297, 0.0
  %481 = vst.msk [vmem:[#allocation2 + $0x28] sm:$0xff] %vm297, 0.0
  %482 = vst.msk [vmem:[#allocation2 + $0x30] sm:$0xff] %vm297, 0.0
  %483 = vst.msk [vmem:[#allocation2 + $0x38] sm:$0xff] %vm297, 0.0
  %484 = vst.msk [vmem:[#allocation2 + $0x40] sm:$0xff] %vm297, 0.0
  %485 = vst.msk [vmem:[#allocation2 + $0x48] sm:$0xff] %vm297, 0.0
  %486 = vst.msk [vmem:[#allocation2 + $0x50] sm:$0xff] %vm297, 0.0
  %487 = vst.msk [vmem:[#allocation2 + $0x58] sm:$0xff] %vm297, 0.0
  %488 = vst.msk [vmem:[#allocation2 + $0x60] sm:$0xff] %vm297, 0.0
  %489 = vst.msk [vmem:[#allocation2 + $0x68] sm:$0xff] %vm297, 0.0
  %490 = vst.msk [vmem:[#allocation2 + $0x70] sm:$0xff] %vm297, 0.0
  %491 = vst.msk [vmem:[#allocation2 + $0x78] sm:$0xff] %vm297, 0.0
  %492 = vst.msk [vmem:[#allocation2 + $0x80] sm:$0xff] %vm297, 0.0
  %493 = vst.msk [vmem:[#allocation2 + $0x88] sm:$0xff] %vm297, 0.0
  %vm494 = vcmask 58368
  %495 = vst.msk [vmem:[#allocation2 + $0x90] sm:$0x3] %vm494, 0.0
  %496 = vst.msk [vmem:[#allocation2 + $0x9] sm:$0xff] %vm297, %v460
  %497 = vst.msk [vmem:[#allocation2 + $0x11] sm:$0xff] %vm297, %v461
  %498 = vst.msk [vmem:[#allocation2 + $0x19] sm:$0xff] %vm297, %v462
  %499 = vst.msk [vmem:[#allocation2 + $0x21] sm:$0xff] %vm297, %v463
  %500 = vst.msk [vmem:[#allocation2 + $0x29] sm:$0xff] %vm297, %v464
  %501 = vst.msk [vmem:[#allocation2 + $0x31] sm:$0xff] %vm297, %v465
  %502 = vst.msk [vmem:[#allocation2 + $0x39] sm:$0xff] %vm297, %v466
  %503 = vst.msk [vmem:[#allocation2 + $0x41] sm:$0xff] %vm297, %v467
  %504 = vst.msk [vmem:[#allocation2 + $0x49] sm:$0xff] %vm297, %v468
  %505 = vst.msk [vmem:[#allocation2 + $0x51] sm:$0xff] %vm297, %v469
  %506 = vst.msk [vmem:[#allocation2 + $0x59] sm:$0xff] %vm297, %v470
  %507 = vst.msk [vmem:[#allocation2 + $0x61] sm:$0xff] %vm297, %v471
  %508 = vst.msk [vmem:[#allocation2 + $0x69] sm:$0xff] %vm297, %v472
  %509 = vst.msk [vmem:[#allocation2 + $0x71] sm:$0xff] %vm297, %v473
  %510 = vst.msk [vmem:[#allocation2 + $0x79] sm:$0xff] %vm297, %v474
  %511 = vst.msk [vmem:[#allocation2 + $0x81] sm:$0xff] %vm297, %v475
  %v512 = vld [vmem:[#allocation2] sm:$0xff]
  %v513 = vld [vmem:[#allocation2 + $0x8] sm:$0xff]
  %v514 = vld [vmem:[#allocation2 + $0x10] sm:$0xff]
  %v515 = vld [vmem:[#allocation2 + $0x18] sm:$0xff]
  %v516 = vld [vmem:[#allocation2 + $0x20] sm:$0xff]
  %v517 = vld [vmem:[#allocation2 + $0x28] sm:$0xff]
  %v518 = vld [vmem:[#allocation2 + $0x30] sm:$0xff]
  %v519 = vld [vmem:[#allocation2 + $0x38] sm:$0xff]
  %v520 = vld [vmem:[#allocation2 + $0x40] sm:$0xff]
  %v521 = vld [vmem:[#allocation2 + $0x48] sm:$0xff]
  %v522 = vld [vmem:[#allocation2 + $0x50] sm:$0xff]
  %v523 = vld [vmem:[#allocation2 + $0x58] sm:$0xff]
  %v524 = vld [vmem:[#allocation2 + $0x60] sm:$0xff]
  %v525 = vld [vmem:[#allocation2 + $0x68] sm:$0xff]
  %v526 = vld [vmem:[#allocation2 + $0x70] sm:$0xff]
  %v527 = vld [vmem:[#allocation2 + $0x78] sm:$0xff]
  %vm528 = vcmp.ge.s32.totalorder %v44, 1
  %vm529 = vcmp.ge.s32.totalorder %v45, 1
  %vm530 = vcmp.ge.s32.totalorder %v46, 1
  %vm531 = vcmp.ge.s32.totalorder %v47, 1
  %vm532 = vcmp.ge.s32.totalorder %v48, 1
  %vm533 = vcmp.ge.s32.totalorder %v49, 1
  %vm534 = vcmp.ge.s32.totalorder %v50, 1
  %vm535 = vcmp.ge.s32.totalorder %v51, 1
  %vm536 = vcmp.ge.s32.totalorder %v52, 1
  %vm537 = vcmp.ge.s32.totalorder %v53, 1
  %vm538 = vcmp.ge.s32.totalorder %v54, 1
  %vm539 = vcmp.ge.s32.totalorder %v55, 1
  %vm540 = vcmp.ge.s32.totalorder %v56, 1
  %vm541 = vcmp.ge.s32.totalorder %v57, 1
  %vm542 = vcmp.ge.s32.totalorder %v58, 1
  %vm543 = vcmp.ge.s32.totalorder %v59, 1
  %vm544 = vcmp.ge.s32.totalorder %v60, 1
  %vm545 = vcmp.ge.s32.totalorder %v61, 1
  %vm546 = vcmp.ge.s32.totalorder %v62, 1
  %vm547 = vcmp.ge.s32.totalorder %v63, 1
  %vm548 = vcmp.ge.s32.totalorder %v64, 1
  %vm549 = vcmp.ge.s32.totalorder %v65, 1
  %vm550 = vcmp.ge.s32.totalorder %v66, 1
  %vm551 = vcmp.ge.s32.totalorder %v67, 1
  %vm552 = vcmp.ge.s32.totalorder %v68, 1
  %vm553 = vcmp.ge.s32.totalorder %v69, 1
  %vm554 = vcmp.ge.s32.totalorder %v70, 1
  %vm555 = vcmp.ge.s32.totalorder %v71, 1
  %vm556 = vcmp.ge.s32.totalorder %v72, 1
  %vm557 = vcmp.ge.s32.totalorder %v73, 1
  %vm558 = vcmp.ge.s32.totalorder %v74, 1
  %vm559 = vcmp.ge.s32.totalorder %v75, 1
  %vm560 = vmand %vm528, %vm544
  %vm561 = vmand %vm529, %vm545
  %vm562 = vmand %vm530, %vm546
  %vm563 = vmand %vm531, %vm547
  %vm564 = vmand %vm532, %vm548
  %vm565 = vmand %vm533, %vm549
  %vm566 = vmand %vm534, %vm550
  %vm567 = vmand %vm535, %vm551
  %vm568 = vmand %vm536, %vm552
  %vm569 = vmand %vm537, %vm553
  %vm570 = vmand %vm538, %vm554
  %vm571 = vmand %vm539, %vm555
  %vm572 = vmand %vm540, %vm556
  %vm573 = vmand %vm541, %vm557
  %vm574 = vmand %vm542, %vm558
  %vm575 = vmand %vm543, %vm559
  %v576 = vsel %vm560, 1, 0
  %v577 = vsel %vm561, 1, 0
  %v578 = vsel %vm562, 1, 0
  %v579 = vsel %vm563, 1, 0
  %v580 = vsel %vm564, 1, 0
  %v581 = vsel %vm565, 1, 0
  %v582 = vsel %vm566, 1, 0
  %v583 = vsel %vm567, 1, 0
  %v584 = vsel %vm568, 1, 0
  %v585 = vsel %vm569, 1, 0
  %v586 = vsel %vm570, 1, 0
  %v587 = vsel %vm571, 1, 0
  %v588 = vsel %vm572, 1, 0
  %v589 = vsel %vm573, 1, 0
  %v590 = vsel %vm574, 1, 0
  %v591 = vsel %vm575, 1, 0
  %592 = vset.pattern.permute.xlu0 0
  %593 = vperm.xlu0 %592, %v576
  %v594 = vpop.permute.xlu0 %593
  %595 = vset.pattern.permute.xlu0 0
  %596 = vperm.xlu0 %595, %v577
  %v597 = vpop.permute.xlu0 %596
  %598 = vset.pattern.permute.xlu0 0
  %599 = vperm.xlu0 %598, %v578
  %v600 = vpop.permute.xlu0 %599
  %601 = vset.pattern.permute.xlu0 0
  %602 = vperm.xlu0 %601, %v579
  %v603 = vpop.permute.xlu0 %602
  %604 = vset.pattern.permute.xlu0 0
  %605 = vperm.xlu0 %604, %v580
  %v606 = vpop.permute.xlu0 %605
  %607 = vset.pattern.permute.xlu0 0
  %608 = vperm.xlu0 %607, %v581
  %v609 = vpop.permute.xlu0 %608
  %610 = vset.pattern.permute.xlu0 0
  %611 = vperm.xlu0 %610, %v582
  %v612 = vpop.permute.xlu0 %611
  %613 = vset.pattern.permute.xlu0 0
  %614 = vperm.xlu0 %613, %v583
  %v615 = vpop.permute.xlu0 %614
  %616 = vset.pattern.permute.xlu0 0
  %617 = vperm.xlu0 %616, %v584
  %v618 = vpop.permute.xlu0 %617
  %619 = vset.pattern.permute.xlu0 0
  %620 = vperm.xlu0 %619, %v585
  %v621 = vpop.permute.xlu0 %620
  %622 = vset.pattern.permute.xlu0 0
  %623 = vperm.xlu0 %622, %v586
  %v624 = vpop.permute.xlu0 %623
  %625 = vset.pattern.permute.xlu0 0
  %626 = vperm.xlu0 %625, %v587
  %v627 = vpop.permute.xlu0 %626
  %628 = vset.pattern.permute.xlu0 0
  %629 = vperm.xlu0 %628, %v588
  %v630 = vpop.permute.xlu0 %629
  %631 = vset.pattern.permute.xlu0 0
  %632 = vperm.xlu0 %631, %v589
  %v633 = vpop.permute.xlu0 %632
  %634 = vset.pattern.permute.xlu0 0
  %635 = vperm.xlu0 %634, %v590
  %v636 = vpop.permute.xlu0 %635
  %637 = vset.pattern.permute.xlu0 0
  %638 = vperm.xlu0 %637, %v591
  %v639 = vpop.permute.xlu0 %638
  %vm640 = vcmp.eq.s32.totalorder %v594, 1
  %vm641 = vcmp.eq.s32.totalorder %v597, 1
  %vm642 = vcmp.eq.s32.totalorder %v600, 1
  %vm643 = vcmp.eq.s32.totalorder %v603, 1
  %vm644 = vcmp.eq.s32.totalorder %v606, 1
  %vm645 = vcmp.eq.s32.totalorder %v609, 1
  %vm646 = vcmp.eq.s32.totalorder %v612, 1
  %vm647 = vcmp.eq.s32.totalorder %v615, 1
  %vm648 = vcmp.eq.s32.totalorder %v618, 1
  %vm649 = vcmp.eq.s32.totalorder %v621, 1
  %vm650 = vcmp.eq.s32.totalorder %v624, 1
  %vm651 = vcmp.eq.s32.totalorder %v627, 1
  %vm652 = vcmp.eq.s32.totalorder %v630, 1
  %vm653 = vcmp.eq.s32.totalorder %v633, 1
  %vm654 = vcmp.eq.s32.totalorder %v636, 1
  %vm655 = vcmp.eq.s32.totalorder %v639, 1
  %v656 = vsel %vm640, %v512, 0.0
  %v657 = vsel %vm641, %v513, 0.0
  %v658 = vsel %vm642, %v514, 0.0
  %v659 = vsel %vm643, %v515, 0.0
  %v660 = vsel %vm644, %v516, 0.0
  %v661 = vsel %vm645, %v517, 0.0
  %v662 = vsel %vm646, %v518, 0.0
  %v663 = vsel %vm647, %v519, 0.0
  %v664 = vsel %vm648, %v520, 0.0
  %v665 = vsel %vm649, %v521, 0.0
  %v666 = vsel %vm650, %v522, 0.0
  %v667 = vsel %vm651, %v523, 0.0
  %v668 = vsel %vm652, %v524, 0.0
  %v669 = vsel %vm653, %v525, 0.0
  %v670 = vsel %vm654, %v526, 0.0
  %v671 = vsel %vm655, %v527, 0.0
  %v672 = vld [vmem:[%s4] sm:$0xff]
  %v673 = vld [vmem:[#allocation2 + $0x1] sm:$0xff]
  %v674 = vld [vmem:[#allocation2 + $0x9] sm:$0xff]
  %v675 = vld [vmem:[#allocation2 + $0x11] sm:$0xff]
  %v676 = vld [vmem:[#allocation2 + $0x19] sm:$0xff]
  %v677 = vld [vmem:[#allocation2 + $0x21] sm:$0xff]
  %v678 = vld [vmem:[#allocation2 + $0x29] sm:$0xff]
  %v679 = vld [vmem:[#allocation2 + $0x31] sm:$0xff]
  %v680 = vld [vmem:[#allocation2 + $0x39] sm:$0xff]
  %v681 = vld [vmem:[#allocation2 + $0x41] sm:$0xff]
  %v682 = vld [vmem:[#allocation2 + $0x49] sm:$0xff]
  %v683 = vld [vmem:[#allocation2 + $0x51] sm:$0xff]
  %v684 = vld [vmem:[#allocation2 + $0x59] sm:$0xff]
  %v685 = vld [vmem:[#allocation2 + $0x61] sm:$0xff]
  %v686 = vld [vmem:[#allocation2 + $0x69] sm:$0xff]
  %v687 = vld [vmem:[#allocation2 + $0x71] sm:$0xff]
  %v688 = vld [vmem:[#allocation2 + $0x79] sm:$0xff]
  %v689 = vsel %vm528, 1, 0
  %v690 = vsel %vm529, 1, 0
  %v691 = vsel %vm530, 1, 0
  %v692 = vsel %vm531, 1, 0
  %v693 = vsel %vm532, 1, 0
  %v694 = vsel %vm533, 1, 0
  %v695 = vsel %vm534, 1, 0
  %v696 = vsel %vm535, 1, 0
  %v697 = vsel %vm536, 1, 0
  %v698 = vsel %vm537, 1, 0
  %v699 = vsel %vm538, 1, 0
  %v700 = vsel %vm539, 1, 0
  %v701 = vsel %vm540, 1, 0
  %v702 = vsel %vm541, 1, 0
  %v703 = vsel %vm542, 1, 0
  %v704 = vsel %vm543, 1, 0
  %705 = vset.pattern.permute.xlu0 0
  %706 = vperm.xlu0 %705, %v689
  %v707 = vpop.permute.xlu0 %706
  %708 = vset.pattern.permute.xlu0 0
  %709 = vperm.xlu0 %708, %v690
  %v710 = vpop.permute.xlu0 %709
  %711 = vset.pattern.permute.xlu0 0
  %712 = vperm.xlu0 %711, %v691
  %v713 = vpop.permute.xlu0 %712
  %714 = vset.pattern.permute.xlu0 0
  %715 = vperm.xlu0 %714, %v692
  %v716 = vpop.permute.xlu0 %715
  %717 = vset.pattern.permute.xlu0 0
  %718 = vperm.xlu0 %717, %v693
  %v719 = vpop.permute.xlu0 %718
  %720 = vset.pattern.permute.xlu0 0
  %721 = vperm.xlu0 %720, %v694
  %v722 = vpop.permute.xlu0 %721
  %723 = vset.pattern.permute.xlu0 0
  %724 = vperm.xlu0 %723, %v695
  %v725 = vpop.permute.xlu0 %724
  %726 = vset.pattern.permute.xlu0 0
  %727 = vperm.xlu0 %726, %v696
  %v728 = vpop.permute.xlu0 %727
  %729 = vset.pattern.permute.xlu0 0
  %730 = vperm.xlu0 %729, %v697
  %v731 = vpop.permute.xlu0 %730
  %732 = vset.pattern.permute.xlu0 0
  %733 = vperm.xlu0 %732, %v698
  %v734 = vpop.permute.xlu0 %733
  %735 = vset.pattern.permute.xlu0 0
  %736 = vperm.xlu0 %735, %v699
  %v737 = vpop.permute.xlu0 %736
  %738 = vset.pattern.permute.xlu0 0
  %739 = vperm.xlu0 %738, %v700
  %v740 = vpop.permute.xlu0 %739
  %741 = vset.pattern.permute.xlu0 0
  %742 = vperm.xlu0 %741, %v701
  %v743 = vpop.permute.xlu0 %742
  %744 = vset.pattern.permute.xlu0 0
  %745 = vperm.xlu0 %744, %v702
  %v746 = vpop.permute.xlu0 %745
  %747 = vset.pattern.permute.xlu0 0
  %748 = vperm.xlu0 %747, %v703
  %v749 = vpop.permute.xlu0 %748
  %750 = vset.pattern.permute.xlu0 0
  %751 = vperm.xlu0 %750, %v704
  %v752 = vpop.permute.xlu0 %751
  %vm753 = vcmp.eq.s32.totalorder %v707, 1
  %vm754 = vcmp.eq.s32.totalorder %v710, 1
  %vm755 = vcmp.eq.s32.totalorder %v713, 1
  %vm756 = vcmp.eq.s32.totalorder %v716, 1
  %vm757 = vcmp.eq.s32.totalorder %v719, 1
  %vm758 = vcmp.eq.s32.totalorder %v722, 1
  %vm759 = vcmp.eq.s32.totalorder %v725, 1
  %vm760 = vcmp.eq.s32.totalorder %v728, 1
  %vm761 = vcmp.eq.s32.totalorder %v731, 1
  %vm762 = vcmp.eq.s32.totalorder %v734, 1
  %vm763 = vcmp.eq.s32.totalorder %v737, 1
  %vm764 = vcmp.eq.s32.totalorder %v740, 1
  %vm765 = vcmp.eq.s32.totalorder %v743, 1
  %vm766 = vcmp.eq.s32.totalorder %v746, 1
  %vm767 = vcmp.eq.s32.totalorder %v749, 1
  %vm768 = vcmp.eq.s32.totalorder %v752, 1
  %v769 = vsel %vm753, %v673, 0.0
  %v770 = vsel %vm754, %v674, 0.0
  %v771 = vsel %vm755, %v675, 0.0
  %v772 = vsel %vm756, %v676, 0.0
  %v773 = vsel %vm757, %v677, 0.0
  %v774 = vsel %vm758, %v678, 0.0
  %v775 = vsel %vm759, %v679, 0.0
  %v776 = vsel %vm760, %v680, 0.0
  %v777 = vsel %vm761, %v681, 0.0
  %v778 = vsel %vm762, %v682, 0.0
  %v779 = vsel %vm763, %v683, 0.0
  %v780 = vsel %vm764, %v684, 0.0
  %v781 = vsel %vm765, %v685, 0.0
  %v782 = vsel %vm766, %v686, 0.0
  %v783 = vsel %vm767, %v687, 0.0
  %v784 = vsel %vm768, %v688, 0.0
  %v785 = vld [vmem:[%s4 + $0x8] sm:$0xff]
  %v787 = vsel %vm297, %v769, 0
  %v790 = vsel %vm297, %v770, 0
  %v793 = vsel %vm297, %v771, 0
  %v796 = vsel %vm297, %v772, 0
  %v799 = vsel %vm297, %v773, 0
  %v802 = vsel %vm297, %v774, 0
  %v805 = vsel %vm297, %v775, 0
  %v808 = vsel %vm297, %v776, 0
  %v811 = vsel %vm297, %v777, 0
  %v814 = vsel %vm297, %v778, 0
  %v817 = vsel %vm297, %v779, 0
  %v820 = vsel %vm297, %v780, 0
  %v823 = vsel %vm297, %v781, 0
  %v826 = vsel %vm297, %v782, 0
  %v829 = vsel %vm297, %v783, 0
  %v832 = vsel %vm297, %v784, 0
  %834 = vmatprep.subr.mxu0 0.0
  %835 = vmatpush1.msra.mxu0 %v785
  %836 = vmatprep.subr.mxu0 0.0
  %837 = vmatpush1.msra.mxu0 0.0
  %838 = vmatprep.subr.mxu0 0.0
  %839 = vmatpush1.msra.mxu0 0.0
  %840 = vmatprep.subr.mxu0 0.0
  %841 = vmatpush1.msra.mxu0 0.0
  %842 = vmatprep.subr.mxu0 0.0
  %843 = vmatpush1.msra.mxu0 0.0
  %844 = vmatprep.subr.mxu0 0.0
  %845 = vmatpush1.msra.mxu0 0.0
  %846 = vmatprep.subr.mxu0 0.0
  %847 = vmatpush1.msra.mxu0 0.0
  %848 = vmatprep.subr.mxu0 0.0
  %849 = vmatpush1.msra.mxu0 0.0
  %850 = vmatprep.subr.mxu0 0.0
  %851 = vmatpush1.msra.mxu0 0.0
  %852 = vmatprep.subr.mxu0 0.0
  %853 = vmatpush1.msra.mxu0 0.0
  %854 = vmatprep.subr.mxu0 0.0
  %855 = vmatpush1.msra.mxu0 0.0
  %856 = vmatprep.subr.mxu0 0.0
  %857 = vmatpush1.msra.mxu0 0.0
  %858 = vmatprep.subr.mxu0 0.0
  %859 = vmatpush1.msra.mxu0 0.0
  %860 = vmatprep.subr.mxu0 0.0
  %861 = vmatpush1.msra.mxu0 0.0
  %862 = vmatprep.subr.mxu0 0.0
  %863 = vmatpush1.msra.mxu0 0.0
  %864 = vmatprep.subr.mxu0 0.0
  %865 = vmatpush1.msra.mxu0 0.0
  %866 = vmatprep.subr.mxu0 0.0
  %867 = vmatpush1.msra.mxu0 0.0
  %868 = vmatprep.subr.mxu0 0.0
  %869 = vmatpush1.msra.mxu0 0.0
  %870 = vmatprep.subr.mxu0 0.0
  %871 = vmatpush1.msra.mxu0 0.0
  %872 = vmatprep.subr.mxu0 0.0
  %873 = vmatpush1.msra.mxu0 0.0
  %874 = vmatprep.subr.mxu0 0.0
  %875 = vmatpush1.msra.mxu0 0.0
  %876 = vmatprep.subr.mxu0 0.0
  %877 = vmatpush1.msra.mxu0 0.0
  %878 = vmatprep.subr.mxu0 0.0
  %879 = vmatpush1.msra.mxu0 0.0
  %880 = vmatprep.subr.mxu0 0.0
  %881 = vmatpush1.msra.mxu0 0.0
  %882 = vmatprep.subr.mxu0 0.0
  %883 = vmatpush1.msra.mxu0 0.0
  %884 = vmatprep.subr.mxu0 0.0
  %885 = vmatpush1.msra.mxu0 0.0
  %886 = vmatprep.subr.mxu0 0.0
  %887 = vmatpush1.msra.mxu0 0.0
  %888 = vmatprep.subr.mxu0 0.0
  %889 = vmatpush1.msra.mxu0 0.0
  %890 = vmatprep.subr.mxu0 0.0
  %891 = vmatpush1.msra.mxu0 0.0
  %892 = vmatprep.subr.mxu0 0.0
  %893 = vmatpush1.msra.mxu0 0.0
  %894 = vmatprep.subr.mxu0 0.0
  %895 = vmatpush1.msra.mxu0 0.0
  %896 = vmatprep.subr.mxu0 0.0
  %897 = vmatpush1.msra.mxu0 0.0
  %898 = vmatprep.mubr.f32.mxu0 0.0
  %899 = vmatmul.mubr.f32.gmra.mrb[0].mxu0 %v787
  %v900 = vpop.f32.mrb[0].mxu0
  %v901 = vadd.f32 0.0, %v900
  %v902 = vpop.f32.mrb[0].mxu0
  %903 = vmatprep.mubr.f32.mxu0 0.0
  %904 = vmatmul.mubr.f32.gmra.mrb[0].mxu0 %v790
  %v905 = vpop.f32.mrb[0].mxu0
  %v906 = vadd.f32 0.0, %v905
  %v907 = vpop.f32.mrb[0].mxu0
  %908 = vmatprep.mubr.f32.mxu0 0.0
  %909 = vmatmul.mubr.f32.gmra.mrb[0].mxu0 %v793
  %v910 = vpop.f32.mrb[0].mxu0
  %v911 = vadd.f32 0.0, %v910
  %v912 = vpop.f32.mrb[0].mxu0
  %913 = vmatprep.mubr.f32.mxu0 0.0
  %914 = vmatmul.mubr.f32.gmra.mrb[0].mxu0 %v796
  %v915 = vpop.f32.mrb[0].mxu0
  %v916 = vadd.f32 0.0, %v915
  %v917 = vpop.f32.mrb[0].mxu0
  %918 = vmatprep.mubr.f32.mxu0 0.0
  %919 = vmatmul.mubr.f32.gmra.mrb[0].mxu0 %v799
  %v920 = vpop.f32.mrb[0].mxu0
  %v921 = vadd.f32 0.0, %v920
  %v922 = vpop.f32.mrb[0].mxu0
  %923 = vmatprep.mubr.f32.mxu0 0.0
  %924 = vmatmul.mubr.f32.gmra.mrb[0].mxu0 %v802
  %v925 = vpop.f32.mrb[0].mxu0
  %v926 = vadd.f32 0.0, %v925
  %v927 = vpop.f32.mrb[0].mxu0
  %928 = vmatprep.mubr.f32.mxu0 0.0
  %929 = vmatmul.mubr.f32.gmra.mrb[0].mxu0 %v805
  %v930 = vpop.f32.mrb[0].mxu0
  %v931 = vadd.f32 0.0, %v930
  %v932 = vpop.f32.mrb[0].mxu0
  %933 = vmatprep.mubr.f32.mxu0 0.0
  %934 = vmatmul.mubr.f32.gmra.mrb[0].mxu0 %v808
  %v935 = vpop.f32.mrb[0].mxu0
  %v936 = vadd.f32 0.0, %v935
  %v937 = vpop.f32.mrb[0].mxu0
  %938 = vmatprep.mubr.f32.mxu0 0.0
  %939 = vmatmul.mubr.f32.gmra.mrb[0].mxu0 %v811
  %v940 = vpop.f32.mrb[0].mxu0
  %v941 = vadd.f32 0.0, %v940
  %v942 = vpop.f32.mrb[0].mxu0
  %943 = vmatprep.mubr.f32.mxu0 0.0
  %944 = vmatmul.mubr.f32.gmra.mrb[0].mxu0 %v814
  %v945 = vpop.f32.mrb[0].mxu0
  %v946 = vadd.f32 0.0, %v945
  %v947 = vpop.f32.mrb[0].mxu0
  %948 = vmatprep.mubr.f32.mxu0 0.0
  %949 = vmatmul.mubr.f32.gmra.mrb[0].mxu0 %v817
  %v950 = vpop.f32.mrb[0].mxu0
  %v951 = vadd.f32 0.0, %v950
  %v952 = vpop.f32.mrb[0].mxu0
  %953 = vmatprep.mubr.f32.mxu0 0.0
  %954 = vmatmul.mubr.f32.gmra.mrb[0].mxu0 %v820
  %v955 = vpop.f32.mrb[0].mxu0
  %v956 = vadd.f32 0.0, %v955
  %v957 = vpop.f32.mrb[0].mxu0
  %958 = vmatprep.mubr.f32.mxu0 0.0
  %959 = vmatmul.mubr.f32.gmra.mrb[0].mxu0 %v823
  %v960 = vpop.f32.mrb[0].mxu0
  %v961 = vadd.f32 0.0, %v960
  %v962 = vpop.f32.mrb[0].mxu0
  %963 = vmatprep.mubr.f32.mxu0 0.0
  %964 = vmatmul.mubr.f32.gmra.mrb[0].mxu0 %v826
  %v965 = vpop.f32.mrb[0].mxu0
  %v966 = vadd.f32 0.0, %v965
  %v967 = vpop.f32.mrb[0].mxu0
  %968 = vmatprep.mubr.f32.mxu0 0.0
  %969 = vmatmul.mubr.f32.gmra.mrb[0].mxu0 %v829
  %v970 = vpop.f32.mrb[0].mxu0
  %v971 = vadd.f32 0.0, %v970
  %v972 = vpop.f32.mrb[0].mxu0
  %973 = vmatprep.mubr.f32.mxu0 0.0
  %974 = vmatmul.mubr.f32.gmra.mrb[0].mxu0 %v832
  %v975 = vpop.f32.mrb[0].mxu0
  %v976 = vadd.f32 0.0, %v975
  %v977 = vpop.f32.mrb[0].mxu0
  %978 = vdwg.mxu0
  %v980 = vsel %vm297, %v656, 0
  %v983 = vsel %vm297, %v657, 0
  %v986 = vsel %vm297, %v658, 0
  %v989 = vsel %vm297, %v659, 0
  %v992 = vsel %vm297, %v660, 0
  %v995 = vsel %vm297, %v661, 0
  %v998 = vsel %vm297, %v662, 0
  %v1001 = vsel %vm297, %v663, 0
  %v1004 = vsel %vm297, %v664, 0
  %v1007 = vsel %vm297, %v665, 0
  %v1010 = vsel %vm297, %v666, 0
  %v1013 = vsel %vm297, %v667, 0
  %v1016 = vsel %vm297, %v668, 0
  %v1019 = vsel %vm297, %v669, 0
  %v1022 = vsel %vm297, %v670, 0
  %v1025 = vsel %vm297, %v671, 0
  %1027 = vmatprep.subr.mxu0 0.0
  %1028 = vmatpush1.msra.mxu0 %v672
  %1029 = vmatprep.subr.mxu0 0.0
  %1030 = vmatpush1.msra.mxu0 0.0
  %1031 = vmatprep.subr.mxu0 0.0
  %1032 = vmatpush1.msra.mxu0 0.0
  %1033 = vmatprep.subr.mxu0 0.0
  %1034 = vmatpush1.msra.mxu0 0.0
  %1035 = vmatprep.subr.mxu0 0.0
  %1036 = vmatpush1.msra.mxu0 0.0
  %1037 = vmatprep.subr.mxu0 0.0
  %1038 = vmatpush1.msra.mxu0 0.0
  %1039 = vmatprep.subr.mxu0 0.0
  %1040 = vmatpush1.msra.mxu0 0.0
  %1041 = vmatprep.subr.mxu0 0.0
  %1042 = vmatpush1.msra.mxu0 0.0
  %1043 = vmatprep.subr.mxu0 0.0
  %1044 = vmatpush1.msra.mxu0 0.0
  %1045 = vmatprep.subr.mxu0 0.0
  %1046 = vmatpush1.msra.mxu0 0.0
  %1047 = vmatprep.subr.mxu0 0.0
  %1048 = vmatpush1.msra.mxu0 0.0
  %1049 = vmatprep.subr.mxu0 0.0
  %1050 = vmatpush1.msra.mxu0 0.0
  %1051 = vmatprep.subr.mxu0 0.0
  %1052 = vmatpush1.msra.mxu0 0.0
  %1053 = vmatprep.subr.mxu0 0.0
  %1054 = vmatpush1.msra.mxu0 0.0
  %1055 = vmatprep.subr.mxu0 0.0
  %1056 = vmatpush1.msra.mxu0 0.0
  %1057 = vmatprep.subr.mxu0 0.0
  %1058 = vmatpush1.msra.mxu0 0.0
  %1059 = vmatprep.subr.mxu0 0.0
  %1060 = vmatpush1.msra.mxu0 0.0
  %1061 = vmatprep.subr.mxu0 0.0
  %1062 = vmatpush1.msra.mxu0 0.0
  %1063 = vmatprep.subr.mxu0 0.0
  %1064 = vmatpush1.msra.mxu0 0.0
  %1065 = vmatprep.subr.mxu0 0.0
  %1066 = vmatpush1.msra.mxu0 0.0
  %1067 = vmatprep.subr.mxu0 0.0
  %1068 = vmatpush1.msra.mxu0 0.0
  %1069 = vmatprep.subr.mxu0 0.0
  %1070 = vmatpush1.msra.mxu0 0.0
  %1071 = vmatprep.subr.mxu0 0.0
  %1072 = vmatpush1.msra.mxu0 0.0
  %1073 = vmatprep.subr.mxu0 0.0
  %1074 = vmatpush1.msra.mxu0 0.0
  %1075 = vmatprep.subr.mxu0 0.0
  %1076 = vmatpush1.msra.mxu0 0.0
  %1077 = vmatprep.subr.mxu0 0.0
  %1078 = vmatpush1.msra.mxu0 0.0
  %1079 = vmatprep.subr.mxu0 0.0
  %1080 = vmatpush1.msra.mxu0 0.0
  %1081 = vmatprep.subr.mxu0 0.0
  %1082 = vmatpush1.msra.mxu0 0.0
  %1083 = vmatprep.subr.mxu0 0.0
  %1084 = vmatpush1.msra.mxu0 0.0
  %1085 = vmatprep.subr.mxu0 0.0
  %1086 = vmatpush1.msra.mxu0 0.0
  %1087 = vmatprep.subr.mxu0 0.0
  %1088 = vmatpush1.msra.mxu0 0.0
  %1089 = vmatprep.subr.mxu0 0.0
  %1090 = vmatpush1.msra.mxu0 0.0
  %1091 = vmatprep.mubr.f32.mxu0 0.0
  %1092 = vmatmul.mubr.f32.gmra.mrb[0].mxu0 %v980
  %v1093 = vpop.f32.mrb[0].mxu0
  %v1094 = vadd.f32 %v901, %v1093
  %v1095 = vpop.f32.mrb[0].mxu0
  %1096 = vmatprep.mubr.f32.mxu0 0.0
  %1097 = vmatmul.mubr.f32.gmra.mrb[0].mxu0 %v983
  %v1098 = vpop.f32.mrb[0].mxu0
  %v1099 = vadd.f32 %v906, %v1098
  %v1100 = vpop.f32.mrb[0].mxu0
  %1101 = vmatprep.mubr.f32.mxu0 0.0
  %1102 = vmatmul.mubr.f32.gmra.mrb[0].mxu0 %v986
  %v1103 = vpop.f32.mrb[0].mxu0
  %v1104 = vadd.f32 %v911, %v1103
  %v1105 = vpop.f32.mrb[0].mxu0
  %1106 = vmatprep.mubr.f32.mxu0 0.0
  %1107 = vmatmul.mubr.f32.gmra.mrb[0].mxu0 %v989
  %v1108 = vpop.f32.mrb[0].mxu0
  %v1109 = vadd.f32 %v916, %v1108
  %v1110 = vpop.f32.mrb[0].mxu0
  %1111 = vmatprep.mubr.f32.mxu0 0.0
  %1112 = vmatmul.mubr.f32.gmra.mrb[0].mxu0 %v992
  %v1113 = vpop.f32.mrb[0].mxu0
  %v1114 = vadd.f32 %v921, %v1113
  %v1115 = vpop.f32.mrb[0].mxu0
  %1116 = vmatprep.mubr.f32.mxu0 0.0
  %1117 = vmatmul.mubr.f32.gmra.mrb[0].mxu0 %v995
  %v1118 = vpop.f32.mrb[0].mxu0
  %v1119 = vadd.f32 %v926, %v1118
  %v1120 = vpop.f32.mrb[0].mxu0
  %1121 = vmatprep.mubr.f32.mxu0 0.0
  %1122 = vmatmul.mubr.f32.gmra.mrb[0].mxu0 %v998
  %v1123 = vpop.f32.mrb[0].mxu0
  %v1124 = vadd.f32 %v931, %v1123
  %v1125 = vpop.f32.mrb[0].mxu0
  %1126 = vmatprep.mubr.f32.mxu0 0.0
  %1127 = vmatmul.mubr.f32.gmra.mrb[0].mxu0 %v1001
  %v1128 = vpop.f32.mrb[0].mxu0
  %v1129 = vadd.f32 %v936, %v1128
  %v1130 = vpop.f32.mrb[0].mxu0
  %1131 = vmatprep.mubr.f32.mxu0 0.0
  %1132 = vmatmul.mubr.f32.gmra.mrb[0].mxu0 %v1004
  %v1133 = vpop.f32.mrb[0].mxu0
  %v1134 = vadd.f32 %v941, %v1133
  %v1135 = vpop.f32.mrb[0].mxu0
  %1136 = vmatprep.mubr.f32.mxu0 0.0
  %1137 = vmatmul.mubr.f32.gmra.mrb[0].mxu0 %v1007
  %v1138 = vpop.f32.mrb[0].mxu0
  %v1139 = vadd.f32 %v946, %v1138
  %v1140 = vpop.f32.mrb[0].mxu0
  %1141 = vmatprep.mubr.f32.mxu0 0.0
  %1142 = vmatmul.mubr.f32.gmra.mrb[0].mxu0 %v1010
  %v1143 = vpop.f32.mrb[0].mxu0
  %v1144 = vadd.f32 %v951, %v1143
  %v1145 = vpop.f32.mrb[0].mxu0
  %1146 = vmatprep.mubr.f32.mxu0 0.0
  %1147 = vmatmul.mubr.f32.gmra.mrb[0].mxu0 %v1013
  %v1148 = vpop.f32.mrb[0].mxu0
  %v1149 = vadd.f32 %v956, %v1148
  %v1150 = vpop.f32.mrb[0].mxu0
  %1151 = vmatprep.mubr.f32.mxu0 0.0
  %1152 = vmatmul.mubr.f32.gmra.mrb[0].mxu0 %v1016
  %v1153 = vpop.f32.mrb[0].mxu0
  %v1154 = vadd.f32 %v961, %v1153
  %v1155 = vpop.f32.mrb[0].mxu0
  %1156 = vmatprep.mubr.f32.mxu0 0.0
  %1157 = vmatmul.mubr.f32.gmra.mrb[0].mxu0 %v1019
  %v1158 = vpop.f32.mrb[0].mxu0
  %v1159 = vadd.f32 %v966, %v1158
  %v1160 = vpop.f32.mrb[0].mxu0
  %1161 = vmatprep.mubr.f32.mxu0 0.0
  %1162 = vmatmul.mubr.f32.gmra.mrb[0].mxu0 %v1022
  %v1163 = vpop.f32.mrb[0].mxu0
  %v1164 = vadd.f32 %v971, %v1163
  %v1165 = vpop.f32.mrb[0].mxu0
  %1166 = vmatprep.mubr.f32.mxu0 0.0
  %1167 = vmatmul.mubr.f32.gmra.mrb[0].mxu0 %v1025
  %v1168 = vpop.f32.mrb[0].mxu0
  %v1169 = vadd.f32 %v976, %v1168
  %v1170 = vpop.f32.mrb[0].mxu0
  %1171 = vdwg.mxu0
  %v1172 = vld [vmem:[#allocation2 + $0x2] sm:$0xff]
  %v1173 = vld [vmem:[#allocation2 + $0xa] sm:$0xff]
  %v1174 = vld [vmem:[#allocation2 + $0x12] sm:$0xff]
  %v1175 = vld [vmem:[#allocation2 + $0x1a] sm:$0xff]
  %v1176 = vld [vmem:[#allocation2 + $0x22] sm:$0xff]
  %v1177 = vld [vmem:[#allocation2 + $0x2a] sm:$0xff]
  %v1178 = vld [vmem:[#allocation2 + $0x32] sm:$0xff]
  %v1179 = vld [vmem:[#allocation2 + $0x3a] sm:$0xff]
  %v1180 = vld [vmem:[#allocation2 + $0x42] sm:$0xff]
  %v1181 = vld [vmem:[#allocation2 + $0x4a] sm:$0xff]
  %v1182 = vld [vmem:[#allocation2 + $0x52] sm:$0xff]
  %v1183 = vld [vmem:[#allocation2 + $0x5a] sm:$0xff]
  %v1184 = vld [vmem:[#allocation2 + $0x62] sm:$0xff]
  %v1185 = vld [vmem:[#allocation2 + $0x6a] sm:$0xff]
  %v1186 = vld [vmem:[#allocation2 + $0x72] sm:$0xff]
  %v1187 = vld [vmem:[#allocation2 + $0x7a] sm:$0xff]
  %vm1188 = vcmp.le.s32.totalorder %v60, 6
  %vm1189 = vcmp.le.s32.totalorder %v61, 6
  %vm1190 = vcmp.le.s32.totalorder %v62, 6
  %vm1191 = vcmp.le.s32.totalorder %v63, 6
  %vm1192 = vcmp.le.s32.totalorder %v64, 6
  %vm1193 = vcmp.le.s32.totalorder %v65, 6
  %vm1194 = vcmp.le.s32.totalorder %v66, 6
  %vm1195 = vcmp.le.s32.totalorder %v67, 6
  %vm1196 = vcmp.le.s32.totalorder %v68, 6
  %vm1197 = vcmp.le.s32.totalorder %v69, 6
  %vm1198 = vcmp.le.s32.totalorder %v70, 6
  %vm1199 = vcmp.le.s32.totalorder %v71, 6
  %vm1200 = vcmp.le.s32.totalorder %v72, 6
  %vm1201 = vcmp.le.s32.totalorder %v73, 6
  %vm1202 = vcmp.le.s32.totalorder %v74, 6
  %vm1203 = vcmp.le.s32.totalorder %v75, 6
  %vm1204 = vmand %vm528, %vm1188
  %vm1205 = vmand %vm529, %vm1189
  %vm1206 = vmand %vm530, %vm1190
  %vm1207 = vmand %vm531, %vm1191
  %vm1208 = vmand %vm532, %vm1192
  %vm1209 = vmand %vm533, %vm1193
  %vm1210 = vmand %vm534, %vm1194
  %vm1211 = vmand %vm535, %vm1195
  %vm1212 = vmand %vm536, %vm1196
  %vm1213 = vmand %vm537, %vm1197
  %vm1214 = vmand %vm538, %vm1198
  %vm1215 = vmand %vm539, %vm1199
  %vm1216 = vmand %vm540, %vm1200
  %vm1217 = vmand %vm541, %vm1201
  %vm1218 = vmand %vm542, %vm1202
  %vm1219 = vmand %vm543, %vm1203
  %v1220 = vsel %vm1204, 1, 0
  %v1221 = vsel %vm1205, 1, 0
  %v1222 = vsel %vm1206, 1, 0
  %v1223 = vsel %vm1207, 1, 0
  %v1224 = vsel %vm1208, 1, 0
  %v1225 = vsel %vm1209, 1, 0
  %v1226 = vsel %vm1210, 1, 0
  %v1227 = vsel %vm1211, 1, 0
  %v1228 = vsel %vm1212, 1, 0
  %v1229 = vsel %vm1213, 1, 0
  %v1230 = vsel %vm1214, 1, 0
  %v1231 = vsel %vm1215, 1, 0
  %v1232 = vsel %vm1216, 1, 0
  %v1233 = vsel %vm1217, 1, 0
  %v1234 = vsel %vm1218, 1, 0
  %v1235 = vsel %vm1219, 1, 0
  %1236 = vset.pattern.permute.xlu0 0
  %1237 = vperm.xlu0 %1236, %v1220
  %v1238 = vpop.permute.xlu0 %1237
  %1239 = vset.pattern.permute.xlu0 0
  %1240 = vperm.xlu0 %1239, %v1221
  %v1241 = vpop.permute.xlu0 %1240
  %1242 = vset.pattern.permute.xlu0 0
  %1243 = vperm.xlu0 %1242, %v1222
  %v1244 = vpop.permute.xlu0 %1243
  %1245 = vset.pattern.permute.xlu0 0
  %1246 = vperm.xlu0 %1245, %v1223
  %v1247 = vpop.permute.xlu0 %1246
  %1248 = vset.pattern.permute.xlu0 0
  %1249 = vperm.xlu0 %1248, %v1224
  %v1250 = vpop.permute.xlu0 %1249
  %1251 = vset.pattern.permute.xlu0 0
  %1252 = vperm.xlu0 %1251, %v1225
  %v1253 = vpop.permute.xlu0 %1252
  %1254 = vset.pattern.permute.xlu0 0
  %1255 = vperm.xlu0 %1254, %v1226
  %v1256 = vpop.permute.xlu0 %1255
  %1257 = vset.pattern.permute.xlu0 0
  %1258 = vperm.xlu0 %1257, %v1227
  %v1259 = vpop.permute.xlu0 %1258
  %1260 = vset.pattern.permute.xlu0 0
  %1261 = vperm.xlu0 %1260, %v1228
  %v1262 = vpop.permute.xlu0 %1261
  %1263 = vset.pattern.permute.xlu0 0
  %1264 = vperm.xlu0 %1263, %v1229
  %v1265 = vpop.permute.xlu0 %1264
  %1266 = vset.pattern.permute.xlu0 0
  %1267 = vperm.xlu0 %1266, %v1230
  %v1268 = vpop.permute.xlu0 %1267
  %1269 = vset.pattern.permute.xlu0 0
  %1270 = vperm.xlu0 %1269, %v1231
  %v1271 = vpop.permute.xlu0 %1270
  %1272 = vset.pattern.permute.xlu0 0
  %1273 = vperm.xlu0 %1272, %v1232
  %v1274 = vpop.permute.xlu0 %1273
  %1275 = vset.pattern.permute.xlu0 0
  %1276 = vperm.xlu0 %1275, %v1233
  %v1277 = vpop.permute.xlu0 %1276
  %1278 = vset.pattern.permute.xlu0 0
  %1279 = vperm.xlu0 %1278, %v1234
  %v1280 = vpop.permute.xlu0 %1279
  %1281 = vset.pattern.permute.xlu0 0
  %1282 = vperm.xlu0 %1281, %v1235
  %v1283 = vpop.permute.xlu0 %1282
  %vm1284 = vcmp.eq.s32.totalorder %v1238, 1
  %vm1285 = vcmp.eq.s32.totalorder %v1241, 1
  %vm1286 = vcmp.eq.s32.totalorder %v1244, 1
  %vm1287 = vcmp.eq.s32.totalorder %v1247, 1
  %vm1288 = vcmp.eq.s32.totalorder %v1250, 1
  %vm1289 = vcmp.eq.s32.totalorder %v1253, 1
  %vm1290 = vcmp.eq.s32.totalorder %v1256, 1
  %vm1291 = vcmp.eq.s32.totalorder %v1259, 1
  %vm1292 = vcmp.eq.s32.totalorder %v1262, 1
  %vm1293 = vcmp.eq.s32.totalorder %v1265, 1
  %vm1294 = vcmp.eq.s32.totalorder %v1268, 1
  %vm1295 = vcmp.eq.s32.totalorder %v1271, 1
  %vm1296 = vcmp.eq.s32.totalorder %v1274, 1
  %vm1297 = vcmp.eq.s32.totalorder %v1277, 1
  %vm1298 = vcmp.eq.s32.totalorder %v1280, 1
  %vm1299 = vcmp.eq.s32.totalorder %v1283, 1
  %v1300 = vsel %vm1284, %v1172, 0.0
  %v1301 = vsel %vm1285, %v1173, 0.0
  %v1302 = vsel %vm1286, %v1174, 0.0
  %v1303 = vsel %vm1287, %v1175, 0.0
  %v1304 = vsel %vm1288, %v1176, 0.0
  %v1305 = vsel %vm1289, %v1177, 0.0
  %v1306 = vsel %vm1290, %v1178, 0.0
  %v1307 = vsel %vm1291, %v1179, 0.0
  %v1308 = vsel %vm1292, %v1180, 0.0
  %v1309 = vsel %vm1293, %v1181, 0.0
  %v1310 = vsel %vm1294, %v1182, 0.0
  %v1311 = vsel %vm1295, %v1183, 0.0
  %v1312 = vsel %vm1296, %v1184, 0.0
  %v1313 = vsel %vm1297, %v1185, 0.0
  %v1314 = vsel %vm1298, %v1186, 0.0
  %v1315 = vsel %vm1299, %v1187, 0.0
  %v1316 = vld [vmem:[%s4 + $0x10] sm:$0xff]
  %v1318 = vsel %vm297, %v1300, 0
  %v1321 = vsel %vm297, %v1301, 0
  %v1324 = vsel %vm297, %v1302, 0
  %v1327 = vsel %vm297, %v1303, 0
  %v1330 = vsel %vm297, %v1304, 0
  %v1333 = vsel %vm297, %v1305, 0
  %v1336 = vsel %vm297, %v1306, 0
  %v1339 = vsel %vm297, %v1307, 0
  %v1342 = vsel %vm297, %v1308, 0
  %v1345 = vsel %vm297, %v1309, 0
  %v1348 = vsel %vm297, %v1310, 0
  %v1351 = vsel %vm297, %v1311, 0
  %v1354 = vsel %vm297, %v1312, 0
  %v1357 = vsel %vm297, %v1313, 0
  %v1360 = vsel %vm297, %v1314, 0
  %v1363 = vsel %vm297, %v1315, 0
  %1365 = vmatprep.subr.mxu0 0.0
  %1366 = vmatpush1.msra.mxu0 %v1316
  %1367 = vmatprep.subr.mxu0 0.0
  %1368 = vmatpush1.msra.mxu0 0.0
  %1369 = vmatprep.subr.mxu0 0.0
  %1370 = vmatpush1.msra.mxu0 0.0
  %1371 = vmatprep.subr.mxu0 0.0
  %1372 = vmatpush1.msra.mxu0 0.0
  %1373 = vmatprep.subr.mxu0 0.0
  %1374 = vmatpush1.msra.mxu0 0.0
  %1375 = vmatprep.subr.mxu0 0.0
  %1376 = vmatpush1.msra.mxu0 0.0
  %1377 = vmatprep.subr.mxu0 0.0
  %1378 = vmatpush1.msra.mxu0 0.0
  %1379 = vmatprep.subr.mxu0 0.0
  %1380 = vmatpush1.msra.mxu0 0.0
  %1381 = vmatprep.subr.mxu0 0.0
  %1382 = vmatpush1.msra.mxu0 0.0
  %1383 = vmatprep.subr.mxu0 0.0
  %1384 = vmatpush1.msra.mxu0 0.0
  %1385 = vmatprep.subr.mxu0 0.0
  %1386 = vmatpush1.msra.mxu0 0.0
  %1387 = vmatprep.subr.mxu0 0.0
  %1388 = vmatpush1.msra.mxu0 0.0
  %1389 = vmatprep.subr.mxu0 0.0
  %1390 = vmatpush1.msra.mxu0 0.0
  %1391 = vmatprep.subr.mxu0 0.0
  %1392 = vmatpush1.msra.mxu0 0.0
  %1393 = vmatprep.subr.mxu0 0.0
  %1394 = vmatpush1.msra.mxu0 0.0
  %1395 = vmatprep.subr.mxu0 0.0
  %1396 = vmatpush1.msra.mxu0 0.0
  %1397 = vmatprep.subr.mxu0 0.0
  %1398 = vmatpush1.msra.mxu0 0.0
  %1399 = vmatprep.subr.mxu0 0.0
  %1400 = vmatpush1.msra.mxu0 0.0
  %1401 = vmatprep.subr.mxu0 0.0
  %1402 = vmatpush1.msra.mxu0 0.0
  %1403 = vmatprep.subr.mxu0 0.0
  %1404 = vmatpush1.msra.mxu0 0.0
  %1405 = vmatprep.subr.mxu0 0.0
  %1406 = vmatpush1.msra.mxu0 0.0
  %1407 = vmatprep.subr.mxu0 0.0
  %1408 = vmatpush1.msra.mxu0 0.0
  %1409 = vmatprep.subr.mxu0 0.0
  %1410 = vmatpush1.msra.mxu0 0.0
  %1411 = vmatprep.subr.mxu0 0.0
  %1412 = vmatpush1.msra.mxu0 0.0
  %1413 = vmatprep.subr.mxu0 0.0
  %1414 = vmatpush1.msra.mxu0 0.0
  %1415 = vmatprep.subr.mxu0 0.0
  %1416 = vmatpush1.msra.mxu0 0.0
  %1417 = vmatprep.subr.mxu0 0.0
  %1418 = vmatpush1.msra.mxu0 0.0
  %1419 = vmatprep.subr.mxu0 0.0
  %1420 = vmatpush1.msra.mxu0 0.0
  %1421 = vmatprep.subr.mxu0 0.0
  %1422 = vmatpush1.msra.mxu0 0.0
  %1423 = vmatprep.subr.mxu0 0.0
  %1424 = vmatpush1.msra.mxu0 0.0
  %1425 = vmatprep.subr.mxu0 0.0
  %1426 = vmatpush1.msra.mxu0 0.0
  %1427 = vmatprep.subr.mxu0 0.0
  %1428 = vmatpush1.msra.mxu0 0.0
  %1429 = vmatprep.mubr.f32.mxu0 0.0
  %1430 = vmatmul.mubr.f32.gmra.mrb[0].mxu0 %v1318
  %v1431 = vpop.f32.mrb[0].mxu0
  %v1432 = vadd.f32 0.0, %v1431
  %v1433 = vpop.f32.mrb[0].mxu0
  %1434 = vmatprep.mubr.f32.mxu0 0.0
  %1435 = vmatmul.mubr.f32.gmra.mrb[0].mxu0 %v1321
  %v1436 = vpop.f32.mrb[0].mxu0
  %v1437 = vadd.f32 0.0, %v1436
  %v1438 = vpop.f32.mrb[0].mxu0
  %1439 = vmatprep.mubr.f32.mxu0 0.0
  %1440 = vmatmul.mubr.f32.gmra.mrb[0].mxu0 %v1324
  %v1441 = vpop.f32.mrb[0].mxu0
  %v1442 = vadd.f32 0.0, %v1441
  %v1443 = vpop.f32.mrb[0].mxu0
  %1444 = vmatprep.mubr.f32.mxu0 0.0
  %1445 = vmatmul.mubr.f32.gmra.mrb[0].mxu0 %v1327
  %v1446 = vpop.f32.mrb[0].mxu0
  %v1447 = vadd.f32 0.0, %v1446
  %v1448 = vpop.f32.mrb[0].mxu0
  %1449 = vmatprep.mubr.f32.mxu0 0.0
  %1450 = vmatmul.mubr.f32.gmra.mrb[0].mxu0 %v1330
  %v1451 = vpop.f32.mrb[0].mxu0
  %v1452 = vadd.f32 0.0, %v1451
  %v1453 = vpop.f32.mrb[0].mxu0
  %1454 = vmatprep.mubr.f32.mxu0 0.0
  %1455 = vmatmul.mubr.f32.gmra.mrb[0].mxu0 %v1333
  %v1456 = vpop.f32.mrb[0].mxu0
  %v1457 = vadd.f32 0.0, %v1456
  %v1458 = vpop.f32.mrb[0].mxu0
  %1459 = vmatprep.mubr.f32.mxu0 0.0
  %1460 = vmatmul.mubr.f32.gmra.mrb[0].mxu0 %v1336
  %v1461 = vpop.f32.mrb[0].mxu0
  %v1462 = vadd.f32 0.0, %v1461
  %v1463 = vpop.f32.mrb[0].mxu0
  %1464 = vmatprep.mubr.f32.mxu0 0.0
  %1465 = vmatmul.mubr.f32.gmra.mrb[0].mxu0 %v1339
  %v1466 = vpop.f32.mrb[0].mxu0
  %v1467 = vadd.f32 0.0, %v1466
  %v1468 = vpop.f32.mrb[0].mxu0
  %1469 = vmatprep.mubr.f32.mxu0 0.0
  %1470 = vmatmul.mubr.f32.gmra.mrb[0].mxu0 %v1342
  %v1471 = vpop.f32.mrb[0].mxu0
  %v1472 = vadd.f32 0.0, %v1471
  %v1473 = vpop.f32.mrb[0].mxu0
  %1474 = vmatprep.mubr.f32.mxu0 0.0
  %1475 = vmatmul.mubr.f32.gmra.mrb[0].mxu0 %v1345
  %v1476 = vpop.f32.mrb[0].mxu0
  %v1477 = vadd.f32 0.0, %v1476
  %v1478 = vpop.f32.mrb[0].mxu0
  %1479 = vmatprep.mubr.f32.mxu0 0.0
  %1480 = vmatmul.mubr.f32.gmra.mrb[0].mxu0 %v1348
  %v1481 = vpop.f32.mrb[0].mxu0
  %v1482 = vadd.f32 0.0, %v1481
  %v1483 = vpop.f32.mrb[0].mxu0
  %1484 = vmatprep.mubr.f32.mxu0 0.0
  %1485 = vmatmul.mubr.f32.gmra.mrb[0].mxu0 %v1351
  %v1486 = vpop.f32.mrb[0].mxu0
  %v1487 = vadd.f32 0.0, %v1486
  %v1488 = vpop.f32.mrb[0].mxu0
  %1489 = vmatprep.mubr.f32.mxu0 0.0
  %1490 = vmatmul.mubr.f32.gmra.mrb[0].mxu0 %v1354
  %v1491 = vpop.f32.mrb[0].mxu0
  %v1492 = vadd.f32 0.0, %v1491
  %v1493 = vpop.f32.mrb[0].mxu0
  %1494 = vmatprep.mubr.f32.mxu0 0.0
  %1495 = vmatmul.mubr.f32.gmra.mrb[0].mxu0 %v1357
  %v1496 = vpop.f32.mrb[0].mxu0
  %v1497 = vadd.f32 0.0, %v1496
  %v1498 = vpop.f32.mrb[0].mxu0
  %1499 = vmatprep.mubr.f32.mxu0 0.0
  %1500 = vmatmul.mubr.f32.gmra.mrb[0].mxu0 %v1360
  %v1501 = vpop.f32.mrb[0].mxu0
  %v1502 = vadd.f32 0.0, %v1501
  %v1503 = vpop.f32.mrb[0].mxu0
  %1504 = vmatprep.mubr.f32.mxu0 0.0
  %1505 = vmatmul.mubr.f32.gmra.mrb[0].mxu0 %v1363
  %v1506 = vpop.f32.mrb[0].mxu0
  %v1507 = vadd.f32 0.0, %v1506
  %v1508 = vpop.f32.mrb[0].mxu0
  %1509 = vdwg.mxu0
  %v1510 = vadd.f32 %v1094, %v1432
  %v1511 = vadd.f32 %v1099, %v1437
  %v1512 = vadd.f32 %v1104, %v1442
  %v1513 = vadd.f32 %v1109, %v1447
  %v1514 = vadd.f32 %v1114, %v1452
  %v1515 = vadd.f32 %v1119, %v1457
  %v1516 = vadd.f32 %v1124, %v1462
  %v1517 = vadd.f32 %v1129, %v1467
  %v1518 = vadd.f32 %v1134, %v1472
  %v1519 = vadd.f32 %v1139, %v1477
  %v1520 = vadd.f32 %v1144, %v1482
  %v1521 = vadd.f32 %v1149, %v1487
  %v1522 = vadd.f32 %v1154, %v1492
  %v1523 = vadd.f32 %v1159, %v1497
  %v1524 = vadd.f32 %v1164, %v1502
  %v1525 = vadd.f32 %v1169, %v1507
  %v1526 = vld [vmem:[#allocation2 + $0x8] sm:$0xff]
  %v1527 = vld [vmem:[#allocation2 + $0x10] sm:$0xff]
  %v1528 = vld [vmem:[#allocation2 + $0x18] sm:$0xff]
  %v1529 = vld [vmem:[#allocation2 + $0x20] sm:$0xff]
  %v1530 = vld [vmem:[#allocation2 + $0x28] sm:$0xff]
  %v1531 = vld [vmem:[#allocation2 + $0x30] sm:$0xff]
  %v1532 = vld [vmem:[#allocation2 + $0x38] sm:$0xff]
  %v1533 = vld [vmem:[#allocation2 + $0x40] sm:$0xff]
  %v1534 = vld [vmem:[#allocation2 + $0x48] sm:$0xff]
  %v1535 = vld [vmem:[#allocation2 + $0x50] sm:$0xff]
  %v1536 = vld [vmem:[#allocation2 + $0x58] sm:$0xff]
  %v1537 = vld [vmem:[#allocation2 + $0x60] sm:$0xff]
  %v1538 = vld [vmem:[#allocation2 + $0x68] sm:$0xff]
  %v1539 = vld [vmem:[#allocation2 + $0x70] sm:$0xff]
  %v1540 = vld [vmem:[#allocation2 + $0x78] sm:$0xff]
  %v1541 = vld [vmem:[#allocation2 + $0x80] sm:$0xff]
  %v1542 = vsel %vm544, 1, 0
  %v1543 = vsel %vm545, 1, 0
  %v1544 = vsel %vm546, 1, 0
  %v1545 = vsel %vm547, 1, 0
  %v1546 = vsel %vm548, 1, 0
  %v1547 = vsel %vm549, 1, 0
  %v1548 = vsel %vm550, 1, 0
  %v1549 = vsel %vm551, 1, 0
  %v1550 = vsel %vm552, 1, 0
  %v1551 = vsel %vm553, 1, 0
  %v1552 = vsel %vm554, 1, 0
  %v1553 = vsel %vm555, 1, 0
  %v1554 = vsel %vm556, 1, 0
  %v1555 = vsel %vm557, 1, 0
  %v1556 = vsel %vm558, 1, 0
  %v1557 = vsel %vm559, 1, 0
  %1558 = vset.pattern.permute.xlu0 0
  %1559 = vperm.xlu0 %1558, %v1542
  %v1560 = vpop.permute.xlu0 %1559
  %1561 = vset.pattern.permute.xlu0 0
  %1562 = vperm.xlu0 %1561, %v1543
  %v1563 = vpop.permute.xlu0 %1562
  %1564 = vset.pattern.permute.xlu0 0
  %1565 = vperm.xlu0 %1564, %v1544
  %v1566 = vpop.permute.xlu0 %1565
  %1567 = vset.pattern.permute.xlu0 0
  %1568 = vperm.xlu0 %1567, %v1545
  %v1569 = vpop.permute.xlu0 %1568
  %1570 = vset.pattern.permute.xlu0 0
  %1571 = vperm.xlu0 %1570, %v1546
  %v1572 = vpop.permute.xlu0 %1571
  %1573 = vset.pattern.permute.xlu0 0
  %1574 = vperm.xlu0 %1573, %v1547
  %v1575 = vpop.permute.xlu0 %1574
  %1576 = vset.pattern.permute.xlu0 0
  %1577 = vperm.xlu0 %1576, %v1548
  %v1578 = vpop.permute.xlu0 %1577
  %1579 = vset.pattern.permute.xlu0 0
  %1580 = vperm.xlu0 %1579, %v1549
  %v1581 = vpop.permute.xlu0 %1580
  %1582 = vset.pattern.permute.xlu0 0
  %1583 = vperm.xlu0 %1582, %v1550
  %v1584 = vpop.permute.xlu0 %1583
  %1585 = vset.pattern.permute.xlu0 0
  %1586 = vperm.xlu0 %1585, %v1551
  %v1587 = vpop.permute.xlu0 %1586
  %1588 = vset.pattern.permute.xlu0 0
  %1589 = vperm.xlu0 %1588, %v1552
  %v1590 = vpop.permute.xlu0 %1589
  %1591 = vset.pattern.permute.xlu0 0
  %1592 = vperm.xlu0 %1591, %v1553
  %v1593 = vpop.permute.xlu0 %1592
  %1594 = vset.pattern.permute.xlu0 0
  %1595 = vperm.xlu0 %1594, %v1554
  %v1596 = vpop.permute.xlu0 %1595
  %1597 = vset.pattern.permute.xlu0 0
  %1598 = vperm.xlu0 %1597, %v1555
  %v1599 = vpop.permute.xlu0 %1598
  %1600 = vset.pattern.permute.xlu0 0
  %1601 = vperm.xlu0 %1600, %v1556
  %v1602 = vpop.permute.xlu0 %1601
  %1603 = vset.pattern.permute.xlu0 0
  %1604 = vperm.xlu0 %1603, %v1557
  %v1605 = vpop.permute.xlu0 %1604
  %vm1606 = vcmp.eq.s32.totalorder %v1560, 1
  %vm1607 = vcmp.eq.s32.totalorder %v1563, 1
  %vm1608 = vcmp.eq.s32.totalorder %v1566, 1
  %vm1609 = vcmp.eq.s32.totalorder %v1569, 1
  %vm1610 = vcmp.eq.s32.totalorder %v1572, 1
  %vm1611 = vcmp.eq.s32.totalorder %v1575, 1
  %vm1612 = vcmp.eq.s32.totalorder %v1578, 1
  %vm1613 = vcmp.eq.s32.totalorder %v1581, 1
  %vm1614 = vcmp.eq.s32.totalorder %v1584, 1
  %vm1615 = vcmp.eq.s32.totalorder %v1587, 1
  %vm1616 = vcmp.eq.s32.totalorder %v1590, 1
  %vm1617 = vcmp.eq.s32.totalorder %v1593, 1
  %vm1618 = vcmp.eq.s32.totalorder %v1596, 1
  %vm1619 = vcmp.eq.s32.totalorder %v1599, 1
  %vm1620 = vcmp.eq.s32.totalorder %v1602, 1
  %vm1621 = vcmp.eq.s32.totalorder %v1605, 1
  %v1622 = vsel %vm1606, %v1526, 0.0
  %v1623 = vsel %vm1607, %v1527, 0.0
  %v1624 = vsel %vm1608, %v1528, 0.0
  %v1625 = vsel %vm1609, %v1529, 0.0
  %v1626 = vsel %vm1610, %v1530, 0.0
  %v1627 = vsel %vm1611, %v1531, 0.0
  %v1628 = vsel %vm1612, %v1532, 0.0
  %v1629 = vsel %vm1613, %v1533, 0.0
  %v1630 = vsel %vm1614, %v1534, 0.0
  %v1631 = vsel %vm1615, %v1535, 0.0
  %v1632 = vsel %vm1616, %v1536, 0.0
  %v1633 = vsel %vm1617, %v1537, 0.0
  %v1634 = vsel %vm1618, %v1538, 0.0
  %v1635 = vsel %vm1619, %v1539, 0.0
  %v1636 = vsel %vm1620, %v1540, 0.0
  %v1637 = vsel %vm1621, %v1541, 0.0
  %v1638 = vld [vmem:[%s4 + $0x18] sm:$0xff]
  %v1640 = vsel %vm297, %v1622, 0
  %v1643 = vsel %vm297, %v1623, 0
  %v1646 = vsel %vm297, %v1624, 0
  %v1649 = vsel %vm297, %v1625, 0
  %v1652 = vsel %vm297, %v1626, 0
  %v1655 = vsel %vm297, %v1627, 0
  %v1658 = vsel %vm297, %v1628, 0
  %v1661 = vsel %vm297, %v1629, 0
  %v1664 = vsel %vm297, %v1630, 0
  %v1667 = vsel %vm297, %v1631, 0
  %v1670 = vsel %vm297, %v1632, 0
  %v1673 = vsel %vm297, %v1633, 0
  %v1676 = vsel %vm297, %v1634, 0
  %v1679 = vsel %vm297, %v1635, 0
  %v1682 = vsel %vm297, %v1636, 0
  %v1685 = vsel %vm297, %v1637, 0
  %1687 = vmatprep.subr.mxu0 0.0
  %1688 = vmatpush1.msra.mxu0 %v1638
  %1689 = vmatprep.subr.mxu0 0.0
  %1690 = vmatpush1.msra.mxu0 0.0
  %1691 = vmatprep.subr.mxu0 0.0
  %1692 = vmatpush1.msra.mxu0 0.0
  %1693 = vmatprep.subr.mxu0 0.0
  %1694 = vmatpush1.msra.mxu0 0.0
  %1695 = vmatprep.subr.mxu0 0.0
  %1696 = vmatpush1.msra.mxu0 0.0
  %1697 = vmatprep.subr.mxu0 0.0
  %1698 = vmatpush1.msra.mxu0 0.0
  %1699 = vmatprep.subr.mxu0 0.0
  %1700 = vmatpush1.msra.mxu0 0.0
  %1701 = vmatprep.subr.mxu0 0.0
  %1702 = vmatpush1.msra.mxu0 0.0
  %1703 = vmatprep.subr.mxu0 0.0
  %1704 = vmatpush1.msra.mxu0 0.0
  %1705 = vmatprep.subr.mxu0 0.0
  %1706 = vmatpush1.msra.mxu0 0.0
  %1707 = vmatprep.subr.mxu0 0.0
  %1708 = vmatpush1.msra.mxu0 0.0
  %1709 = vmatprep.subr.mxu0 0.0
  %1710 = vmatpush1.msra.mxu0 0.0
  %1711 = vmatprep.subr.mxu0 0.0
  %1712 = vmatpush1.msra.mxu0 0.0
  %1713 = vmatprep.subr.mxu0 0.0
  %1714 = vmatpush1.msra.mxu0 0.0
  %1715 = vmatprep.subr.mxu0 0.0
  %1716 = vmatpush1.msra.mxu0 0.0
  %1717 = vmatprep.subr.mxu0 0.0
  %1718 = vmatpush1.msra.mxu0 0.0
  %1719 = vmatprep.subr.mxu0 0.0
  %1720 = vmatpush1.msra.mxu0 0.0
  %1721 = vmatprep.subr.mxu0 0.0
  %1722 = vmatpush1.msra.mxu0 0.0
  %1723 = vmatprep.subr.mxu0 0.0
  %1724 = vmatpush1.msra.mxu0 0.0
  %1725 = vmatprep.subr.mxu0 0.0
  %1726 = vmatpush1.msra.mxu0 0.0
  %1727 = vmatprep.subr.mxu0 0.0
  %1728 = vmatpush1.msra.mxu0 0.0
  %1729 = vmatprep.subr.mxu0 0.0
  %1730 = vmatpush1.msra.mxu0 0.0
  %1731 = vmatprep.subr.mxu0 0.0
  %1732 = vmatpush1.msra.mxu0 0.0
  %1733 = vmatprep.subr.mxu0 0.0
  %1734 = vmatpush1.msra.mxu0 0.0
  %1735 = vmatprep.subr.mxu0 0.0
  %1736 = vmatpush1.msra.mxu0 0.0
  %1737 = vmatprep.subr.mxu0 0.0
  %1738 = vmatpush1.msra.mxu0 0.0
  %1739 = vmatprep.subr.mxu0 0.0
  %1740 = vmatpush1.msra.mxu0 0.0
  %1741 = vmatprep.subr.mxu0 0.0
  %1742 = vmatpush1.msra.mxu0 0.0
  %1743 = vmatprep.subr.mxu0 0.0
  %1744 = vmatpush1.msra.mxu0 0.0
  %1745 = vmatprep.subr.mxu0 0.0
  %1746 = vmatpush1.msra.mxu0 0.0
  %1747 = vmatprep.subr.mxu0 0.0
  %1748 = vmatpush1.msra.mxu0 0.0
  %1749 = vmatprep.subr.mxu0 0.0
  %1750 = vmatpush1.msra.mxu0 0.0
  %1751 = vmatprep.mubr.f32.mxu0 0.0
  %1752 = vmatmul.mubr.f32.gmra.mrb[0].mxu0 %v1640
  %v1753 = vpop.f32.mrb[0].mxu0
  %v1754 = vadd.f32 0.0, %v1753
  %v1755 = vpop.f32.mrb[0].mxu0
  %1756 = vmatprep.mubr.f32.mxu0 0.0
  %1757 = vmatmul.mubr.f32.gmra.mrb[0].mxu0 %v1643
  %v1758 = vpop.f32.mrb[0].mxu0
  %v1759 = vadd.f32 0.0, %v1758
  %v1760 = vpop.f32.mrb[0].mxu0
  %1761 = vmatprep.mubr.f32.mxu0 0.0
  %1762 = vmatmul.mubr.f32.gmra.mrb[0].mxu0 %v1646
  %v1763 = vpop.f32.mrb[0].mxu0
  %v1764 = vadd.f32 0.0, %v1763
  %v1765 = vpop.f32.mrb[0].mxu0
  %1766 = vmatprep.mubr.f32.mxu0 0.0
  %1767 = vmatmul.mubr.f32.gmra.mrb[0].mxu0 %v1649
  %v1768 = vpop.f32.mrb[0].mxu0
  %v1769 = vadd.f32 0.0, %v1768
  %v1770 = vpop.f32.mrb[0].mxu0
  %1771 = vmatprep.mubr.f32.mxu0 0.0
  %1772 = vmatmul.mubr.f32.gmra.mrb[0].mxu0 %v1652
  %v1773 = vpop.f32.mrb[0].mxu0
  %v1774 = vadd.f32 0.0, %v1773
  %v1775 = vpop.f32.mrb[0].mxu0
  %1776 = vmatprep.mubr.f32.mxu0 0.0
  %1777 = vmatmul.mubr.f32.gmra.mrb[0].mxu0 %v1655
  %v1778 = vpop.f32.mrb[0].mxu0
  %v1779 = vadd.f32 0.0, %v1778
  %v1780 = vpop.f32.mrb[0].mxu0
  %1781 = vmatprep.mubr.f32.mxu0 0.0
  %1782 = vmatmul.mubr.f32.gmra.mrb[0].mxu0 %v1658
  %v1783 = vpop.f32.mrb[0].mxu0
  %v1784 = vadd.f32 0.0, %v1783
  %v1785 = vpop.f32.mrb[0].mxu0
  %1786 = vmatprep.mubr.f32.mxu0 0.0
  %1787 = vmatmul.mubr.f32.gmra.mrb[0].mxu0 %v1661
  %v1788 = vpop.f32.mrb[0].mxu0
  %v1789 = vadd.f32 0.0, %v1788
  %v1790 = vpop.f32.mrb[0].mxu0
  %1791 = vmatprep.mubr.f32.mxu0 0.0
  %1792 = vmatmul.mubr.f32.gmra.mrb[0].mxu0 %v1664
  %v1793 = vpop.f32.mrb[0].mxu0
  %v1794 = vadd.f32 0.0, %v1793
  %v1795 = vpop.f32.mrb[0].mxu0
  %1796 = vmatprep.mubr.f32.mxu0 0.0
  %1797 = vmatmul.mubr.f32.gmra.mrb[0].mxu0 %v1667
  %v1798 = vpop.f32.mrb[0].mxu0
  %v1799 = vadd.f32 0.0, %v1798
  %v1800 = vpop.f32.mrb[0].mxu0
  %1801 = vmatprep.mubr.f32.mxu0 0.0
  %1802 = vmatmul.mubr.f32.gmra.mrb[0].mxu0 %v1670
  %v1803 = vpop.f32.mrb[0].mxu0
  %v1804 = vadd.f32 0.0, %v1803
  %v1805 = vpop.f32.mrb[0].mxu0
  %1806 = vmatprep.mubr.f32.mxu0 0.0
  %1807 = vmatmul.mubr.f32.gmra.mrb[0].mxu0 %v1673
  %v1808 = vpop.f32.mrb[0].mxu0
  %v1809 = vadd.f32 0.0, %v1808
  %v1810 = vpop.f32.mrb[0].mxu0
  %1811 = vmatprep.mubr.f32.mxu0 0.0
  %1812 = vmatmul.mubr.f32.gmra.mrb[0].mxu0 %v1676
  %v1813 = vpop.f32.mrb[0].mxu0
  %v1814 = vadd.f32 0.0, %v1813
  %v1815 = vpop.f32.mrb[0].mxu0
  %1816 = vmatprep.mubr.f32.mxu0 0.0
  %1817 = vmatmul.mubr.f32.gmra.mrb[0].mxu0 %v1679
  %v1818 = vpop.f32.mrb[0].mxu0
  %v1819 = vadd.f32 0.0, %v1818
  %v1820 = vpop.f32.mrb[0].mxu0
  %1821 = vmatprep.mubr.f32.mxu0 0.0
  %1822 = vmatmul.mubr.f32.gmra.mrb[0].mxu0 %v1682
  %v1823 = vpop.f32.mrb[0].mxu0
  %v1824 = vadd.f32 0.0, %v1823
  %v1825 = vpop.f32.mrb[0].mxu0
  %1826 = vmatprep.mubr.f32.mxu0 0.0
  %1827 = vmatmul.mubr.f32.gmra.mrb[0].mxu0 %v1685
  %v1828 = vpop.f32.mrb[0].mxu0
  %v1829 = vadd.f32 0.0, %v1828
  %v1830 = vpop.f32.mrb[0].mxu0
  %1831 = vdwg.mxu0
  %v1832 = vadd.f32 %v1510, %v1754
  %v1833 = vadd.f32 %v1511, %v1759
  %v1834 = vadd.f32 %v1512, %v1764
  %v1835 = vadd.f32 %v1513, %v1769
  %v1836 = vadd.f32 %v1514, %v1774
  %v1837 = vadd.f32 %v1515, %v1779
  %v1838 = vadd.f32 %v1516, %v1784
  %v1839 = vadd.f32 %v1517, %v1789
  %v1840 = vadd.f32 %v1518, %v1794
  %v1841 = vadd.f32 %v1519, %v1799
  %v1842 = vadd.f32 %v1520, %v1804
  %v1843 = vadd.f32 %v1521, %v1809
  %v1844 = vadd.f32 %v1522, %v1814
  %v1845 = vadd.f32 %v1523, %v1819
  %v1846 = vadd.f32 %v1524, %v1824
  %v1847 = vadd.f32 %v1525, %v1829
  %v1848 = vld [vmem:[#allocation2 + $0x9] sm:$0xff]
  %v1849 = vld [vmem:[#allocation2 + $0x11] sm:$0xff]
  %v1850 = vld [vmem:[#allocation2 + $0x19] sm:$0xff]
  %v1851 = vld [vmem:[#allocation2 + $0x21] sm:$0xff]
  %v1852 = vld [vmem:[#allocation2 + $0x29] sm:$0xff]
  %v1853 = vld [vmem:[#allocation2 + $0x31] sm:$0xff]
  %v1854 = vld [vmem:[#allocation2 + $0x39] sm:$0xff]
  %v1855 = vld [vmem:[#allocation2 + $0x41] sm:$0xff]
  %v1856 = vld [vmem:[#allocation2 + $0x49] sm:$0xff]
  %v1857 = vld [vmem:[#allocation2 + $0x51] sm:$0xff]
  %v1858 = vld [vmem:[#allocation2 + $0x59] sm:$0xff]
  %v1859 = vld [vmem:[#allocation2 + $0x61] sm:$0xff]
  %v1860 = vld [vmem:[#allocation2 + $0x69] sm:$0xff]
  %v1861 = vld [vmem:[#allocation2 + $0x71] sm:$0xff]
  %v1862 = vld [vmem:[#allocation2 + $0x79] sm:$0xff]
  %v1863 = vld [vmem:[#allocation2 + $0x81] sm:$0xff]
  %v1864 = vld [vmem:[%s4 + $0x20] sm:$0xff]
  %v1866 = vsel %vm297, %v1848, 0
  %v1869 = vsel %vm297, %v1849, 0
  %v1872 = vsel %vm297, %v1850, 0
  %v1875 = vsel %vm297, %v1851, 0
  %v1878 = vsel %vm297, %v1852, 0
  %v1881 = vsel %vm297, %v1853, 0
  %v1884 = vsel %vm297, %v1854, 0
  %v1887 = vsel %vm297, %v1855, 0
  %v1890 = vsel %vm297, %v1856, 0
  %v1893 = vsel %vm297, %v1857, 0
  %v1896 = vsel %vm297, %v1858, 0
  %v1899 = vsel %vm297, %v1859, 0
  %v1902 = vsel %vm297, %v1860, 0
  %v1905 = vsel %vm297, %v1861, 0
  %v1908 = vsel %vm297, %v1862, 0
  %v1911 = vsel %vm297, %v1863, 0
  %1913 = vmatprep.subr.mxu0 0.0
  %1914 = vmatpush1.msra.mxu0 %v1864
  %1915 = vmatprep.subr.mxu0 0.0
  %1916 = vmatpush1.msra.mxu0 0.0
  %1917 = vmatprep.subr.mxu0 0.0
  %1918 = vmatpush1.msra.mxu0 0.0
  %1919 = vmatprep.subr.mxu0 0.0
  %1920 = vmatpush1.msra.mxu0 0.0
  %1921 = vmatprep.subr.mxu0 0.0
  %1922 = vmatpush1.msra.mxu0 0.0
  %1923 = vmatprep.subr.mxu0 0.0
  %1924 = vmatpush1.msra.mxu0 0.0
  %1925 = vmatprep.subr.mxu0 0.0
  %1926 = vmatpush1.msra.mxu0 0.0
  %1927 = vmatprep.subr.mxu0 0.0
  %1928 = vmatpush1.msra.mxu0 0.0
  %1929 = vmatprep.subr.mxu0 0.0
  %1930 = vmatpush1.msra.mxu0 0.0
  %1931 = vmatprep.subr.mxu0 0.0
  %1932 = vmatpush1.msra.mxu0 0.0
  %1933 = vmatprep.subr.mxu0 0.0
  %1934 = vmatpush1.msra.mxu0 0.0
  %1935 = vmatprep.subr.mxu0 0.0
  %1936 = vmatpush1.msra.mxu0 0.0
  %1937 = vmatprep.subr.mxu0 0.0
  %1938 = vmatpush1.msra.mxu0 0.0
  %1939 = vmatprep.subr.mxu0 0.0
  %1940 = vmatpush1.msra.mxu0 0.0
  %1941 = vmatprep.subr.mxu0 0.0
  %1942 = vmatpush1.msra.mxu0 0.0
  %1943 = vmatprep.subr.mxu0 0.0
  %1944 = vmatpush1.msra.mxu0 0.0
  %1945 = vmatprep.subr.mxu0 0.0
  %1946 = vmatpush1.msra.mxu0 0.0
  %1947 = vmatprep.subr.mxu0 0.0
  %1948 = vmatpush1.msra.mxu0 0.0
  %1949 = vmatprep.subr.mxu0 0.0
  %1950 = vmatpush1.msra.mxu0 0.0
  %1951 = vmatprep.subr.mxu0 0.0
  %1952 = vmatpush1.msra.mxu0 0.0
  %1953 = vmatprep.subr.mxu0 0.0
  %1954 = vmatpush1.msra.mxu0 0.0
  %1955 = vmatprep.subr.mxu0 0.0
  %1956 = vmatpush1.msra.mxu0 0.0
  %1957 = vmatprep.subr.mxu0 0.0
  %1958 = vmatpush1.msra.mxu0 0.0
  %1959 = vmatprep.subr.mxu0 0.0
  %1960 = vmatpush1.msra.mxu0 0.0
  %1961 = vmatprep.subr.mxu0 0.0
  %1962 = vmatpush1.msra.mxu0 0.0
  %1963 = vmatprep.subr.mxu0 0.0
  %1964 = vmatpush1.msra.mxu0 0.0
  %1965 = vmatprep.subr.mxu0 0.0
  %1966 = vmatpush1.msra.mxu0 0.0
  %1967 = vmatprep.subr.mxu0 0.0
  %1968 = vmatpush1.msra.mxu0 0.0
  %1969 = vmatprep.subr.mxu0 0.0
  %1970 = vmatpush1.msra.mxu0 0.0
  %1971 = vmatprep.subr.mxu0 0.0
  %1972 = vmatpush1.msra.mxu0 0.0
  %1973 = vmatprep.subr.mxu0 0.0
  %1974 = vmatpush1.msra.mxu0 0.0
  %1975 = vmatprep.subr.mxu0 0.0
  %1976 = vmatpush1.msra.mxu0 0.0
  %1977 = vmatprep.mubr.f32.mxu0 0.0
  %1978 = vmatmul.mubr.f32.gmra.mrb[0].mxu0 %v1866
  %v1979 = vpop.f32.mrb[0].mxu0
  %v1980 = vadd.f32 0.0, %v1979
  %v1981 = vpop.f32.mrb[0].mxu0
  %1982 = vmatprep.mubr.f32.mxu0 0.0
  %1983 = vmatmul.mubr.f32.gmra.mrb[0].mxu0 %v1869
  %v1984 = vpop.f32.mrb[0].mxu0
  %v1985 = vadd.f32 0.0, %v1984
  %v1986 = vpop.f32.mrb[0].mxu0
  %1987 = vmatprep.mubr.f32.mxu0 0.0
  %1988 = vmatmul.mubr.f32.gmra.mrb[0].mxu0 %v1872
  %v1989 = vpop.f32.mrb[0].mxu0
  %v1990 = vadd.f32 0.0, %v1989
  %v1991 = vpop.f32.mrb[0].mxu0
  %1992 = vmatprep.mubr.f32.mxu0 0.0
  %1993 = vmatmul.mubr.f32.gmra.mrb[0].mxu0 %v1875
  %v1994 = vpop.f32.mrb[0].mxu0
  %v1995 = vadd.f32 0.0, %v1994
  %v1996 = vpop.f32.mrb[0].mxu0
  %1997 = vmatprep.mubr.f32.mxu0 0.0
  %1998 = vmatmul.mubr.f32.gmra.mrb[0].mxu0 %v1878
  %v1999 = vpop.f32.mrb[0].mxu0
  %v2000 = vadd.f32 0.0, %v1999
  %v2001 = vpop.f32.mrb[0].mxu0
  %2002 = vmatprep.mubr.f32.mxu0 0.0
  %2003 = vmatmul.mubr.f32.gmra.mrb[0].mxu0 %v1881
  %v2004 = vpop.f32.mrb[0].mxu0
  %v2005 = vadd.f32 0.0, %v2004
  %v2006 = vpop.f32.mrb[0].mxu0
  %2007 = vmatprep.mubr.f32.mxu0 0.0
  %2008 = vmatmul.mubr.f32.gmra.mrb[0].mxu0 %v1884
  %v2009 = vpop.f32.mrb[0].mxu0
  %v2010 = vadd.f32 0.0, %v2009
  %v2011 = vpop.f32.mrb[0].mxu0
  %2012 = vmatprep.mubr.f32.mxu0 0.0
  %2013 = vmatmul.mubr.f32.gmra.mrb[0].mxu0 %v1887
  %v2014 = vpop.f32.mrb[0].mxu0
  %v2015 = vadd.f32 0.0, %v2014
  %v2016 = vpop.f32.mrb[0].mxu0
  %2017 = vmatprep.mubr.f32.mxu0 0.0
  %2018 = vmatmul.mubr.f32.gmra.mrb[0].mxu0 %v1890
  %v2019 = vpop.f32.mrb[0].mxu0
  %v2020 = vadd.f32 0.0, %v2019
  %v2021 = vpop.f32.mrb[0].mxu0
  %2022 = vmatprep.mubr.f32.mxu0 0.0
  %2023 = vmatmul.mubr.f32.gmra.mrb[0].mxu0 %v1893
  %v2024 = vpop.f32.mrb[0].mxu0
  %v2025 = vadd.f32 0.0, %v2024
  %v2026 = vpop.f32.mrb[0].mxu0
  %2027 = vmatprep.mubr.f32.mxu0 0.0
  %2028 = vmatmul.mubr.f32.gmra.mrb[0].mxu0 %v1896
  %v2029 = vpop.f32.mrb[0].mxu0
  %v2030 = vadd.f32 0.0, %v2029
  %v2031 = vpop.f32.mrb[0].mxu0
  %2032 = vmatprep.mubr.f32.mxu0 0.0
  %2033 = vmatmul.mubr.f32.gmra.mrb[0].mxu0 %v1899
  %v2034 = vpop.f32.mrb[0].mxu0
  %v2035 = vadd.f32 0.0, %v2034
  %v2036 = vpop.f32.mrb[0].mxu0
  %2037 = vmatprep.mubr.f32.mxu0 0.0
  %2038 = vmatmul.mubr.f32.gmra.mrb[0].mxu0 %v1902
  %v2039 = vpop.f32.mrb[0].mxu0
  %v2040 = vadd.f32 0.0, %v2039
  %v2041 = vpop.f32.mrb[0].mxu0
  %2042 = vmatprep.mubr.f32.mxu0 0.0
  %2043 = vmatmul.mubr.f32.gmra.mrb[0].mxu0 %v1905
  %v2044 = vpop.f32.mrb[0].mxu0
  %v2045 = vadd.f32 0.0, %v2044
  %v2046 = vpop.f32.mrb[0].mxu0
  %2047 = vmatprep.mubr.f32.mxu0 0.0
  %2048 = vmatmul.mubr.f32.gmra.mrb[0].mxu0 %v1908
  %v2049 = vpop.f32.mrb[0].mxu0
  %v2050 = vadd.f32 0.0, %v2049
  %v2051 = vpop.f32.mrb[0].mxu0
  %2052 = vmatprep.mubr.f32.mxu0 0.0
  %2053 = vmatmul.mubr.f32.gmra.mrb[0].mxu0 %v1911
  %v2054 = vpop.f32.mrb[0].mxu0
  %v2055 = vadd.f32 0.0, %v2054
  %v2056 = vpop.f32.mrb[0].mxu0
  %2057 = vdwg.mxu0
  %v2058 = vadd.f32 %v1832, %v1980
  %v2059 = vadd.f32 %v1833, %v1985
  %v2060 = vadd.f32 %v1834, %v1990
  %v2061 = vadd.f32 %v1835, %v1995
  %v2062 = vadd.f32 %v1836, %v2000
  %v2063 = vadd.f32 %v1837, %v2005
  %v2064 = vadd.f32 %v1838, %v2010
  %v2065 = vadd.f32 %v1839, %v2015
  %v2066 = vadd.f32 %v1840, %v2020
  %v2067 = vadd.f32 %v1841, %v2025
  %v2068 = vadd.f32 %v1842, %v2030
  %v2069 = vadd.f32 %v1843, %v2035
  %v2070 = vadd.f32 %v1844, %v2040
  %v2071 = vadd.f32 %v1845, %v2045
  %v2072 = vadd.f32 %v1846, %v2050
  %v2073 = vadd.f32 %v1847, %v2055
  %v2074 = vld [vmem:[#allocation2 + $0xa] sm:$0xff]
  %v2075 = vld [vmem:[#allocation2 + $0x12] sm:$0xff]
  %v2076 = vld [vmem:[#allocation2 + $0x1a] sm:$0xff]
  %v2077 = vld [vmem:[#allocation2 + $0x22] sm:$0xff]
  %v2078 = vld [vmem:[#allocation2 + $0x2a] sm:$0xff]
  %v2079 = vld [vmem:[#allocation2 + $0x32] sm:$0xff]
  %v2080 = vld [vmem:[#allocation2 + $0x3a] sm:$0xff]
  %v2081 = vld [vmem:[#allocation2 + $0x42] sm:$0xff]
  %v2082 = vld [vmem:[#allocation2 + $0x4a] sm:$0xff]
  %v2083 = vld [vmem:[#allocation2 + $0x52] sm:$0xff]
  %v2084 = vld [vmem:[#allocation2 + $0x5a] sm:$0xff]
  %v2085 = vld [vmem:[#allocation2 + $0x62] sm:$0xff]
  %v2086 = vld [vmem:[#allocation2 + $0x6a] sm:$0xff]
  %v2087 = vld [vmem:[#allocation2 + $0x72] sm:$0xff]
  %v2088 = vld [vmem:[#allocation2 + $0x7a] sm:$0xff]
  %v2089 = vld [vmem:[#allocation2 + $0x82] sm:$0xff]
  %v2090 = vsel %vm1188, 1, 0
  %v2091 = vsel %vm1189, 1, 0
  %v2092 = vsel %vm1190, 1, 0
  %v2093 = vsel %vm1191, 1, 0
  %v2094 = vsel %vm1192, 1, 0
  %v2095 = vsel %vm1193, 1, 0
  %v2096 = vsel %vm1194, 1, 0
  %v2097 = vsel %vm1195, 1, 0
  %v2098 = vsel %vm1196, 1, 0
  %v2099 = vsel %vm1197, 1, 0
  %v2100 = vsel %vm1198, 1, 0
  %v2101 = vsel %vm1199, 1, 0
  %v2102 = vsel %vm1200, 1, 0
  %v2103 = vsel %vm1201, 1, 0
  %v2104 = vsel %vm1202, 1, 0
  %v2105 = vsel %vm1203, 1, 0
  %2106 = vset.pattern.permute.xlu0 0
  %2107 = vperm.xlu0 %2106, %v2090
  %v2108 = vpop.permute.xlu0 %2107
  %2109 = vset.pattern.permute.xlu0 0
  %2110 = vperm.xlu0 %2109, %v2091
  %v2111 = vpop.permute.xlu0 %2110
  %2112 = vset.pattern.permute.xlu0 0
  %2113 = vperm.xlu0 %2112, %v2092
  %v2114 = vpop.permute.xlu0 %2113
  %2115 = vset.pattern.permute.xlu0 0
  %2116 = vperm.xlu0 %2115, %v2093
  %v2117 = vpop.permute.xlu0 %2116
  %2118 = vset.pattern.permute.xlu0 0
  %2119 = vperm.xlu0 %2118, %v2094
  %v2120 = vpop.permute.xlu0 %2119
  %2121 = vset.pattern.permute.xlu0 0
  %2122 = vperm.xlu0 %2121, %v2095
  %v2123 = vpop.permute.xlu0 %2122
  %2124 = vset.pattern.permute.xlu0 0
  %2125 = vperm.xlu0 %2124, %v2096
  %v2126 = vpop.permute.xlu0 %2125
  %2127 = vset.pattern.permute.xlu0 0
  %2128 = vperm.xlu0 %2127, %v2097
  %v2129 = vpop.permute.xlu0 %2128
  %2130 = vset.pattern.permute.xlu0 0
  %2131 = vperm.xlu0 %2130, %v2098
  %v2132 = vpop.permute.xlu0 %2131
  %2133 = vset.pattern.permute.xlu0 0
  %2134 = vperm.xlu0 %2133, %v2099
  %v2135 = vpop.permute.xlu0 %2134
  %2136 = vset.pattern.permute.xlu0 0
  %2137 = vperm.xlu0 %2136, %v2100
  %v2138 = vpop.permute.xlu0 %2137
  %2139 = vset.pattern.permute.xlu0 0
  %2140 = vperm.xlu0 %2139, %v2101
  %v2141 = vpop.permute.xlu0 %2140
  %2142 = vset.pattern.permute.xlu0 0
  %2143 = vperm.xlu0 %2142, %v2102
  %v2144 = vpop.permute.xlu0 %2143
  %2145 = vset.pattern.permute.xlu0 0
  %2146 = vperm.xlu0 %2145, %v2103
  %v2147 = vpop.permute.xlu0 %2146
  %2148 = vset.pattern.permute.xlu0 0
  %2149 = vperm.xlu0 %2148, %v2104
  %v2150 = vpop.permute.xlu0 %2149
  %2151 = vset.pattern.permute.xlu0 0
  %2152 = vperm.xlu0 %2151, %v2105
  %v2153 = vpop.permute.xlu0 %2152
  %vm2154 = vcmp.eq.s32.totalorder %v2108, 1
  %vm2155 = vcmp.eq.s32.totalorder %v2111, 1
  %vm2156 = vcmp.eq.s32.totalorder %v2114, 1
  %vm2157 = vcmp.eq.s32.totalorder %v2117, 1
  %vm2158 = vcmp.eq.s32.totalorder %v2120, 1
  %vm2159 = vcmp.eq.s32.totalorder %v2123, 1
  %vm2160 = vcmp.eq.s32.totalorder %v2126, 1
  %vm2161 = vcmp.eq.s32.totalorder %v2129, 1
  %vm2162 = vcmp.eq.s32.totalorder %v2132, 1
  %vm2163 = vcmp.eq.s32.totalorder %v2135, 1
  %vm2164 = vcmp.eq.s32.totalorder %v2138, 1
  %vm2165 = vcmp.eq.s32.totalorder %v2141, 1
  %vm2166 = vcmp.eq.s32.totalorder %v2144, 1
  %vm2167 = vcmp.eq.s32.totalorder %v2147, 1
  %vm2168 = vcmp.eq.s32.totalorder %v2150, 1
  %vm2169 = vcmp.eq.s32.totalorder %v2153, 1
  %v2170 = vsel %vm2154, %v2074, 0.0
  %v2171 = vsel %vm2155, %v2075, 0.0
  %v2172 = vsel %vm2156, %v2076, 0.0
  %v2173 = vsel %vm2157, %v2077, 0.0
  %v2174 = vsel %vm2158, %v2078, 0.0
  %v2175 = vsel %vm2159, %v2079, 0.0
  %v2176 = vsel %vm2160, %v2080, 0.0
  %v2177 = vsel %vm2161, %v2081, 0.0
  %v2178 = vsel %vm2162, %v2082, 0.0
  %v2179 = vsel %vm2163, %v2083, 0.0
  %v2180 = vsel %vm2164, %v2084, 0.0
  %v2181 = vsel %vm2165, %v2085, 0.0
  %v2182 = vsel %vm2166, %v2086, 0.0
  %v2183 = vsel %vm2167, %v2087, 0.0
  %v2184 = vsel %vm2168, %v2088, 0.0
  %v2185 = vsel %vm2169, %v2089, 0.0
  %v2186 = vld [vmem:[%s4 + $0x28] sm:$0xff]
  %v2188 = vsel %vm297, %v2170, 0
  %v2191 = vsel %vm297, %v2171, 0
  %v2194 = vsel %vm297, %v2172, 0
  %v2197 = vsel %vm297, %v2173, 0
  %v2200 = vsel %vm297, %v2174, 0
  %v2203 = vsel %vm297, %v2175, 0
  %v2206 = vsel %vm297, %v2176, 0
  %v2209 = vsel %vm297, %v2177, 0
  %v2212 = vsel %vm297, %v2178, 0
  %v2215 = vsel %vm297, %v2179, 0
  %v2218 = vsel %vm297, %v2180, 0
  %v2221 = vsel %vm297, %v2181, 0
  %v2224 = vsel %vm297, %v2182, 0
  %v2227 = vsel %vm297, %v2183, 0
  %v2230 = vsel %vm297, %v2184, 0
  %v2233 = vsel %vm297, %v2185, 0
  %2235 = vmatprep.subr.mxu0 0.0
  %2236 = vmatpush1.msra.mxu0 %v2186
  %2237 = vmatprep.subr.mxu0 0.0
  %2238 = vmatpush1.msra.mxu0 0.0
  %2239 = vmatprep.subr.mxu0 0.0
  %2240 = vmatpush1.msra.mxu0 0.0
  %2241 = vmatprep.subr.mxu0 0.0
  %2242 = vmatpush1.msra.mxu0 0.0
  %2243 = vmatprep.subr.mxu0 0.0
  %2244 = vmatpush1.msra.mxu0 0.0
  %2245 = vmatprep.subr.mxu0 0.0
  %2246 = vmatpush1.msra.mxu0 0.0
  %2247 = vmatprep.subr.mxu0 0.0
  %2248 = vmatpush1.msra.mxu0 0.0
  %2249 = vmatprep.subr.mxu0 0.0
  %2250 = vmatpush1.msra.mxu0 0.0
  %2251 = vmatprep.subr.mxu0 0.0
  %2252 = vmatpush1.msra.mxu0 0.0
  %2253 = vmatprep.subr.mxu0 0.0
  %2254 = vmatpush1.msra.mxu0 0.0
  %2255 = vmatprep.subr.mxu0 0.0
  %2256 = vmatpush1.msra.mxu0 0.0
  %2257 = vmatprep.subr.mxu0 0.0
  %2258 = vmatpush1.msra.mxu0 0.0
  %2259 = vmatprep.subr.mxu0 0.0
  %2260 = vmatpush1.msra.mxu0 0.0
  %2261 = vmatprep.subr.mxu0 0.0
  %2262 = vmatpush1.msra.mxu0 0.0
  %2263 = vmatprep.subr.mxu0 0.0
  %2264 = vmatpush1.msra.mxu0 0.0
  %2265 = vmatprep.subr.mxu0 0.0
  %2266 = vmatpush1.msra.mxu0 0.0
  %2267 = vmatprep.subr.mxu0 0.0
  %2268 = vmatpush1.msra.mxu0 0.0
  %2269 = vmatprep.subr.mxu0 0.0
  %2270 = vmatpush1.msra.mxu0 0.0
  %2271 = vmatprep.subr.mxu0 0.0
  %2272 = vmatpush1.msra.mxu0 0.0
  %2273 = vmatprep.subr.mxu0 0.0
  %2274 = vmatpush1.msra.mxu0 0.0
  %2275 = vmatprep.subr.mxu0 0.0
  %2276 = vmatpush1.msra.mxu0 0.0
  %2277 = vmatprep.subr.mxu0 0.0
  %2278 = vmatpush1.msra.mxu0 0.0
  %2279 = vmatprep.subr.mxu0 0.0
  %2280 = vmatpush1.msra.mxu0 0.0
  %2281 = vmatprep.subr.mxu0 0.0
  %2282 = vmatpush1.msra.mxu0 0.0
  %2283 = vmatprep.subr.mxu0 0.0
  %2284 = vmatpush1.msra.mxu0 0.0
  %2285 = vmatprep.subr.mxu0 0.0
  %2286 = vmatpush1.msra.mxu0 0.0
  %2287 = vmatprep.subr.mxu0 0.0
  %2288 = vmatpush1.msra.mxu0 0.0
  %2289 = vmatprep.subr.mxu0 0.0
  %2290 = vmatpush1.msra.mxu0 0.0
  %2291 = vmatprep.subr.mxu0 0.0
  %2292 = vmatpush1.msra.mxu0 0.0
  %2293 = vmatprep.subr.mxu0 0.0
  %2294 = vmatpush1.msra.mxu0 0.0
  %2295 = vmatprep.subr.mxu0 0.0
  %2296 = vmatpush1.msra.mxu0 0.0
  %2297 = vmatprep.subr.mxu0 0.0
  %2298 = vmatpush1.msra.mxu0 0.0
  %2299 = vmatprep.mubr.f32.mxu0 0.0
  %2300 = vmatmul.mubr.f32.gmra.mrb[0].mxu0 %v2188
  %v2301 = vpop.f32.mrb[0].mxu0
  %v2302 = vadd.f32 0.0, %v2301
  %v2303 = vpop.f32.mrb[0].mxu0
  %2304 = vmatprep.mubr.f32.mxu0 0.0
  %2305 = vmatmul.mubr.f32.gmra.mrb[0].mxu0 %v2191
  %v2306 = vpop.f32.mrb[0].mxu0
  %v2307 = vadd.f32 0.0, %v2306
  %v2308 = vpop.f32.mrb[0].mxu0
  %2309 = vmatprep.mubr.f32.mxu0 0.0
  %2310 = vmatmul.mubr.f32.gmra.mrb[0].mxu0 %v2194
  %v2311 = vpop.f32.mrb[0].mxu0
  %v2312 = vadd.f32 0.0, %v2311
  %v2313 = vpop.f32.mrb[0].mxu0
  %2314 = vmatprep.mubr.f32.mxu0 0.0
  %2315 = vmatmul.mubr.f32.gmra.mrb[0].mxu0 %v2197
  %v2316 = vpop.f32.mrb[0].mxu0
  %v2317 = vadd.f32 0.0, %v2316
  %v2318 = vpop.f32.mrb[0].mxu0
  %2319 = vmatprep.mubr.f32.mxu0 0.0
  %2320 = vmatmul.mubr.f32.gmra.mrb[0].mxu0 %v2200
  %v2321 = vpop.f32.mrb[0].mxu0
  %v2322 = vadd.f32 0.0, %v2321
  %v2323 = vpop.f32.mrb[0].mxu0
  %2324 = vmatprep.mubr.f32.mxu0 0.0
  %2325 = vmatmul.mubr.f32.gmra.mrb[0].mxu0 %v2203
  %v2326 = vpop.f32.mrb[0].mxu0
  %v2327 = vadd.f32 0.0, %v2326
  %v2328 = vpop.f32.mrb[0].mxu0
  %2329 = vmatprep.mubr.f32.mxu0 0.0
  %2330 = vmatmul.mubr.f32.gmra.mrb[0].mxu0 %v2206
  %v2331 = vpop.f32.mrb[0].mxu0
  %v2332 = vadd.f32 0.0, %v2331
  %v2333 = vpop.f32.mrb[0].mxu0
  %2334 = vmatprep.mubr.f32.mxu0 0.0
  %2335 = vmatmul.mubr.f32.gmra.mrb[0].mxu0 %v2209
  %v2336 = vpop.f32.mrb[0].mxu0
  %v2337 = vadd.f32 0.0, %v2336
  %v2338 = vpop.f32.mrb[0].mxu0
  %2339 = vmatprep.mubr.f32.mxu0 0.0
  %2340 = vmatmul.mubr.f32.gmra.mrb[0].mxu0 %v2212
  %v2341 = vpop.f32.mrb[0].mxu0
  %v2342 = vadd.f32 0.0, %v2341
  %v2343 = vpop.f32.mrb[0].mxu0
  %2344 = vmatprep.mubr.f32.mxu0 0.0
  %2345 = vmatmul.mubr.f32.gmra.mrb[0].mxu0 %v2215
  %v2346 = vpop.f32.mrb[0].mxu0
  %v2347 = vadd.f32 0.0, %v2346
  %v2348 = vpop.f32.mrb[0].mxu0
  %2349 = vmatprep.mubr.f32.mxu0 0.0
  %2350 = vmatmul.mubr.f32.gmra.mrb[0].mxu0 %v2218
  %v2351 = vpop.f32.mrb[0].mxu0
  %v2352 = vadd.f32 0.0, %v2351
  %v2353 = vpop.f32.mrb[0].mxu0
  %2354 = vmatprep.mubr.f32.mxu0 0.0
  %2355 = vmatmul.mubr.f32.gmra.mrb[0].mxu0 %v2221
  %v2356 = vpop.f32.mrb[0].mxu0
  %v2357 = vadd.f32 0.0, %v2356
  %v2358 = vpop.f32.mrb[0].mxu0
  %2359 = vmatprep.mubr.f32.mxu0 0.0
  %2360 = vmatmul.mubr.f32.gmra.mrb[0].mxu0 %v2224
  %v2361 = vpop.f32.mrb[0].mxu0
  %v2362 = vadd.f32 0.0, %v2361
  %v2363 = vpop.f32.mrb[0].mxu0
  %2364 = vmatprep.mubr.f32.mxu0 0.0
  %2365 = vmatmul.mubr.f32.gmra.mrb[0].mxu0 %v2227
  %v2366 = vpop.f32.mrb[0].mxu0
  %v2367 = vadd.f32 0.0, %v2366
  %v2368 = vpop.f32.mrb[0].mxu0
  %2369 = vmatprep.mubr.f32.mxu0 0.0
  %2370 = vmatmul.mubr.f32.gmra.mrb[0].mxu0 %v2230
  %v2371 = vpop.f32.mrb[0].mxu0
  %v2372 = vadd.f32 0.0, %v2371
  %v2373 = vpop.f32.mrb[0].mxu0
  %2374 = vmatprep.mubr.f32.mxu0 0.0
  %2375 = vmatmul.mubr.f32.gmra.mrb[0].mxu0 %v2233
  %v2376 = vpop.f32.mrb[0].mxu0
  %v2377 = vadd.f32 0.0, %v2376
  %v2378 = vpop.f32.mrb[0].mxu0
  %2379 = vdwg.mxu0
  %v2380 = vadd.f32 %v2058, %v2302
  %v2381 = vadd.f32 %v2059, %v2307
  %v2382 = vadd.f32 %v2060, %v2312
  %v2383 = vadd.f32 %v2061, %v2317
  %v2384 = vadd.f32 %v2062, %v2322
  %v2385 = vadd.f32 %v2063, %v2327
  %v2386 = vadd.f32 %v2064, %v2332
  %v2387 = vadd.f32 %v2065, %v2337
  %v2388 = vadd.f32 %v2066, %v2342
  %v2389 = vadd.f32 %v2067, %v2347
  %v2390 = vadd.f32 %v2068, %v2352
  %v2391 = vadd.f32 %v2069, %v2357
  %v2392 = vadd.f32 %v2070, %v2362
  %v2393 = vadd.f32 %v2071, %v2367
  %v2394 = vadd.f32 %v2072, %v2372
  %v2395 = vadd.f32 %v2073, %v2377
  %v2396 = vld [vmem:[#allocation2 + $0x10] sm:$0xff]
  %v2397 = vld [vmem:[#allocation2 + $0x18] sm:$0xff]
  %v2398 = vld [vmem:[#allocation2 + $0x20] sm:$0xff]
  %v2399 = vld [vmem:[#allocation2 + $0x28] sm:$0xff]
  %v2400 = vld [vmem:[#allocation2 + $0x30] sm:$0xff]
  %v2401 = vld [vmem:[#allocation2 + $0x38] sm:$0xff]
  %v2402 = vld [vmem:[#allocation2 + $0x40] sm:$0xff]
  %v2403 = vld [vmem:[#allocation2 + $0x48] sm:$0xff]
  %v2404 = vld [vmem:[#allocation2 + $0x50] sm:$0xff]
  %v2405 = vld [vmem:[#allocation2 + $0x58] sm:$0xff]
  %v2406 = vld [vmem:[#allocation2 + $0x60] sm:$0xff]
  %v2407 = vld [vmem:[#allocation2 + $0x68] sm:$0xff]
  %v2408 = vld [vmem:[#allocation2 + $0x70] sm:$0xff]
  %v2409 = vld [vmem:[#allocation2 + $0x78] sm:$0xff]
  %v2410 = vld [vmem:[#allocation2 + $0x80] sm:$0xff]
  %v2411 = vld [vmem:[#allocation2 + $0x88] sm:$0xff]
  %vm2412 = vcmp.le.s32.totalorder %v44, 6
  %vm2413 = vcmp.le.s32.totalorder %v45, 6
  %vm2414 = vcmp.le.s32.totalorder %v46, 6
  %vm2415 = vcmp.le.s32.totalorder %v47, 6
  %vm2416 = vcmp.le.s32.totalorder %v48, 6
  %vm2417 = vcmp.le.s32.totalorder %v49, 6
  %vm2418 = vcmp.le.s32.totalorder %v50, 6
  %vm2419 = vcmp.le.s32.totalorder %v51, 6
  %vm2420 = vcmp.le.s32.totalorder %v52, 6
  %vm2421 = vcmp.le.s32.totalorder %v53, 6
  %vm2422 = vcmp.le.s32.totalorder %v54, 6
  %vm2423 = vcmp.le.s32.totalorder %v55, 6
  %vm2424 = vcmp.le.s32.totalorder %v56, 6
  %vm2425 = vcmp.le.s32.totalorder %v57, 6
  %vm2426 = vcmp.le.s32.totalorder %v58, 6
  %vm2427 = vcmp.le.s32.totalorder %v59, 6
  %vm2428 = vmand %vm2412, %vm544
  %vm2429 = vmand %vm2413, %vm545
  %vm2430 = vmand %vm2414, %vm546
  %vm2431 = vmand %vm2415, %vm547
  %vm2432 = vmand %vm2416, %vm548
  %vm2433 = vmand %vm2417, %vm549
  %vm2434 = vmand %vm2418, %vm550
  %vm2435 = vmand %vm2419, %vm551
  %vm2436 = vmand %vm2420, %vm552
  %vm2437 = vmand %vm2421, %vm553
  %vm2438 = vmand %vm2422, %vm554
  %vm2439 = vmand %vm2423, %vm555
  %vm2440 = vmand %vm2424, %vm556
  %vm2441 = vmand %vm2425, %vm557
  %vm2442 = vmand %vm2426, %vm558
  %vm2443 = vmand %vm2427, %vm559
  %v2444 = vsel %vm2428, 1, 0
  %v2445 = vsel %vm2429, 1, 0
  %v2446 = vsel %vm2430, 1, 0
  %v2447 = vsel %vm2431, 1, 0
  %v2448 = vsel %vm2432, 1, 0
  %v2449 = vsel %vm2433, 1, 0
  %v2450 = vsel %vm2434, 1, 0
  %v2451 = vsel %vm2435, 1, 0
  %v2452 = vsel %vm2436, 1, 0
  %v2453 = vsel %vm2437, 1, 0
  %v2454 = vsel %vm2438, 1, 0
  %v2455 = vsel %vm2439, 1, 0
  %v2456 = vsel %vm2440, 1, 0
  %v2457 = vsel %vm2441, 1, 0
  %v2458 = vsel %vm2442, 1, 0
  %v2459 = vsel %vm2443, 1, 0
  %2460 = vset.pattern.permute.xlu0 0
  %2461 = vperm.xlu0 %2460, %v2444
  %v2462 = vpop.permute.xlu0 %2461
  %2463 = vset.pattern.permute.xlu0 0
  %2464 = vperm.xlu0 %2463, %v2445
  %v2465 = vpop.permute.xlu0 %2464
  %2466 = vset.pattern.permute.xlu0 0
  %2467 = vperm.xlu0 %2466, %v2446
  %v2468 = vpop.permute.xlu0 %2467
  %2469 = vset.pattern.permute.xlu0 0
  %2470 = vperm.xlu0 %2469, %v2447
  %v2471 = vpop.permute.xlu0 %2470
  %2472 = vset.pattern.permute.xlu0 0
  %2473 = vperm.xlu0 %2472, %v2448
  %v2474 = vpop.permute.xlu0 %2473
  %2475 = vset.pattern.permute.xlu0 0
  %2476 = vperm.xlu0 %2475, %v2449
  %v2477 = vpop.permute.xlu0 %2476
  %2478 = vset.pattern.permute.xlu0 0
  %2479 = vperm.xlu0 %2478, %v2450
  %v2480 = vpop.permute.xlu0 %2479
  %2481 = vset.pattern.permute.xlu0 0
  %2482 = vperm.xlu0 %2481, %v2451
  %v2483 = vpop.permute.xlu0 %2482
  %2484 = vset.pattern.permute.xlu0 0
  %2485 = vperm.xlu0 %2484, %v2452
  %v2486 = vpop.permute.xlu0 %2485
  %2487 = vset.pattern.permute.xlu0 0
  %2488 = vperm.xlu0 %2487, %v2453
  %v2489 = vpop.permute.xlu0 %2488
  %2490 = vset.pattern.permute.xlu0 0
  %2491 = vperm.xlu0 %2490, %v2454
  %v2492 = vpop.permute.xlu0 %2491
  %2493 = vset.pattern.permute.xlu0 0
  %2494 = vperm.xlu0 %2493, %v2455
  %v2495 = vpop.permute.xlu0 %2494
  %2496 = vset.pattern.permute.xlu0 0
  %2497 = vperm.xlu0 %2496, %v2456
  %v2498 = vpop.permute.xlu0 %2497
  %2499 = vset.pattern.permute.xlu0 0
  %2500 = vperm.xlu0 %2499, %v2457
  %v2501 = vpop.permute.xlu0 %2500
  %2502 = vset.pattern.permute.xlu0 0
  %2503 = vperm.xlu0 %2502, %v2458
  %v2504 = vpop.permute.xlu0 %2503
  %2505 = vset.pattern.permute.xlu0 0
  %2506 = vperm.xlu0 %2505, %v2459
  %v2507 = vpop.permute.xlu0 %2506
  %vm2508 = vcmp.eq.s32.totalorder %v2462, 1
  %vm2509 = vcmp.eq.s32.totalorder %v2465, 1
  %vm2510 = vcmp.eq.s32.totalorder %v2468, 1
  %vm2511 = vcmp.eq.s32.totalorder %v2471, 1
  %vm2512 = vcmp.eq.s32.totalorder %v2474, 1
  %vm2513 = vcmp.eq.s32.totalorder %v2477, 1
  %vm2514 = vcmp.eq.s32.totalorder %v2480, 1
  %vm2515 = vcmp.eq.s32.totalorder %v2483, 1
  %vm2516 = vcmp.eq.s32.totalorder %v2486, 1
  %vm2517 = vcmp.eq.s32.totalorder %v2489, 1
  %vm2518 = vcmp.eq.s32.totalorder %v2492, 1
  %vm2519 = vcmp.eq.s32.totalorder %v2495, 1
  %vm2520 = vcmp.eq.s32.totalorder %v2498, 1
  %vm2521 = vcmp.eq.s32.totalorder %v2501, 1
  %vm2522 = vcmp.eq.s32.totalorder %v2504, 1
  %vm2523 = vcmp.eq.s32.totalorder %v2507, 1
  %v2524 = vsel %vm2508, %v2396, 0.0
  %v2525 = vsel %vm2509, %v2397, 0.0
  %v2526 = vsel %vm2510, %v2398, 0.0
  %v2527 = vsel %vm2511, %v2399, 0.0
  %v2528 = vsel %vm2512, %v2400, 0.0
  %v2529 = vsel %vm2513, %v2401, 0.0
  %v2530 = vsel %vm2514, %v2402, 0.0
  %v2531 = vsel %vm2515, %v2403, 0.0
  %v2532 = vsel %vm2516, %v2404, 0.0
  %v2533 = vsel %vm2517, %v2405, 0.0
  %v2534 = vsel %vm2518, %v2406, 0.0
  %v2535 = vsel %vm2519, %v2407, 0.0
  %v2536 = vsel %vm2520, %v2408, 0.0
  %v2537 = vsel %vm2521, %v2409, 0.0
  %v2538 = vsel %vm2522, %v2410, 0.0
  %v2539 = vsel %vm2523, %v2411, 0.0
  %v2540 = vld [vmem:[%s4 + $0x30] sm:$0xff]
  %v2542 = vsel %vm297, %v2524, 0
  %v2545 = vsel %vm297, %v2525, 0
  %v2548 = vsel %vm297, %v2526, 0
  %v2551 = vsel %vm297, %v2527, 0
  %v2554 = vsel %vm297, %v2528, 0
  %v2557 = vsel %vm297, %v2529, 0
  %v2560 = vsel %vm297, %v2530, 0
  %v2563 = vsel %vm297, %v2531, 0
  %v2566 = vsel %vm297, %v2532, 0
  %v2569 = vsel %vm297, %v2533, 0
  %v2572 = vsel %vm297, %v2534, 0
  %v2575 = vsel %vm297, %v2535, 0
  %v2578 = vsel %vm297, %v2536, 0
  %v2581 = vsel %vm297, %v2537, 0
  %v2584 = vsel %vm297, %v2538, 0
  %v2587 = vsel %vm297, %v2539, 0
  %2589 = vmatprep.subr.mxu0 0.0
  %2590 = vmatpush1.msra.mxu0 %v2540
  %2591 = vmatprep.subr.mxu0 0.0
  %2592 = vmatpush1.msra.mxu0 0.0
  %2593 = vmatprep.subr.mxu0 0.0
  %2594 = vmatpush1.msra.mxu0 0.0
  %2595 = vmatprep.subr.mxu0 0.0
  %2596 = vmatpush1.msra.mxu0 0.0
  %2597 = vmatprep.subr.mxu0 0.0
  %2598 = vmatpush1.msra.mxu0 0.0
  %2599 = vmatprep.subr.mxu0 0.0
  %2600 = vmatpush1.msra.mxu0 0.0
  %2601 = vmatprep.subr.mxu0 0.0
  %2602 = vmatpush1.msra.mxu0 0.0
  %2603 = vmatprep.subr.mxu0 0.0
  %2604 = vmatpush1.msra.mxu0 0.0
  %2605 = vmatprep.subr.mxu0 0.0
  %2606 = vmatpush1.msra.mxu0 0.0
  %2607 = vmatprep.subr.mxu0 0.0
  %2608 = vmatpush1.msra.mxu0 0.0
  %2609 = vmatprep.subr.mxu0 0.0
  %2610 = vmatpush1.msra.mxu0 0.0
  %2611 = vmatprep.subr.mxu0 0.0
  %2612 = vmatpush1.msra.mxu0 0.0
  %2613 = vmatprep.subr.mxu0 0.0
  %2614 = vmatpush1.msra.mxu0 0.0
  %2615 = vmatprep.subr.mxu0 0.0
  %2616 = vmatpush1.msra.mxu0 0.0
  %2617 = vmatprep.subr.mxu0 0.0
  %2618 = vmatpush1.msra.mxu0 0.0
  %2619 = vmatprep.subr.mxu0 0.0
  %2620 = vmatpush1.msra.mxu0 0.0
  %2621 = vmatprep.subr.mxu0 0.0
  %2622 = vmatpush1.msra.mxu0 0.0
  %2623 = vmatprep.subr.mxu0 0.0
  %2624 = vmatpush1.msra.mxu0 0.0
  %2625 = vmatprep.subr.mxu0 0.0
  %2626 = vmatpush1.msra.mxu0 0.0
  %2627 = vmatprep.subr.mxu0 0.0
  %2628 = vmatpush1.msra.mxu0 0.0
  %2629 = vmatprep.subr.mxu0 0.0
  %2630 = vmatpush1.msra.mxu0 0.0
  %2631 = vmatprep.subr.mxu0 0.0
  %2632 = vmatpush1.msra.mxu0 0.0
  %2633 = vmatprep.subr.mxu0 0.0
  %2634 = vmatpush1.msra.mxu0 0.0
  %2635 = vmatprep.subr.mxu0 0.0
  %2636 = vmatpush1.msra.mxu0 0.0
  %2637 = vmatprep.subr.mxu0 0.0
  %2638 = vmatpush1.msra.mxu0 0.0
  %2639 = vmatprep.subr.mxu0 0.0
  %2640 = vmatpush1.msra.mxu0 0.0
  %2641 = vmatprep.subr.mxu0 0.0
  %2642 = vmatpush1.msra.mxu0 0.0
  %2643 = vmatprep.subr.mxu0 0.0
  %2644 = vmatpush1.msra.mxu0 0.0
  %2645 = vmatprep.subr.mxu0 0.0
  %2646 = vmatpush1.msra.mxu0 0.0
  %2647 = vmatprep.subr.mxu0 0.0
  %2648 = vmatpush1.msra.mxu0 0.0
  %2649 = vmatprep.subr.mxu0 0.0
  %2650 = vmatpush1.msra.mxu0 0.0
  %2651 = vmatprep.subr.mxu0 0.0
  %2652 = vmatpush1.msra.mxu0 0.0
  %2653 = vmatprep.mubr.f32.mxu0 0.0
  %2654 = vmatmul.mubr.f32.gmra.mrb[0].mxu0 %v2542
  %v2655 = vpop.f32.mrb[0].mxu0
  %v2656 = vadd.f32 0.0, %v2655
  %v2657 = vpop.f32.mrb[0].mxu0
  %2658 = vmatprep.mubr.f32.mxu0 0.0
  %2659 = vmatmul.mubr.f32.gmra.mrb[0].mxu0 %v2545
  %v2660 = vpop.f32.mrb[0].mxu0
  %v2661 = vadd.f32 0.0, %v2660
  %v2662 = vpop.f32.mrb[0].mxu0
  %2663 = vmatprep.mubr.f32.mxu0 0.0
  %2664 = vmatmul.mubr.f32.gmra.mrb[0].mxu0 %v2548
  %v2665 = vpop.f32.mrb[0].mxu0
  %v2666 = vadd.f32 0.0, %v2665
  %v2667 = vpop.f32.mrb[0].mxu0
  %2668 = vmatprep.mubr.f32.mxu0 0.0
  %2669 = vmatmul.mubr.f32.gmra.mrb[0].mxu0 %v2551
  %v2670 = vpop.f32.mrb[0].mxu0
  %v2671 = vadd.f32 0.0, %v2670
  %v2672 = vpop.f32.mrb[0].mxu0
  %2673 = vmatprep.mubr.f32.mxu0 0.0
  %2674 = vmatmul.mubr.f32.gmra.mrb[0].mxu0 %v2554
  %v2675 = vpop.f32.mrb[0].mxu0
  %v2676 = vadd.f32 0.0, %v2675
  %v2677 = vpop.f32.mrb[0].mxu0
  %2678 = vmatprep.mubr.f32.mxu0 0.0
  %2679 = vmatmul.mubr.f32.gmra.mrb[0].mxu0 %v2557
  %v2680 = vpop.f32.mrb[0].mxu0
  %v2681 = vadd.f32 0.0, %v2680
  %v2682 = vpop.f32.mrb[0].mxu0
  %2683 = vmatprep.mubr.f32.mxu0 0.0
  %2684 = vmatmul.mubr.f32.gmra.mrb[0].mxu0 %v2560
  %v2685 = vpop.f32.mrb[0].mxu0
  %v2686 = vadd.f32 0.0, %v2685
  %v2687 = vpop.f32.mrb[0].mxu0
  %2688 = vmatprep.mubr.f32.mxu0 0.0
  %2689 = vmatmul.mubr.f32.gmra.mrb[0].mxu0 %v2563
  %v2690 = vpop.f32.mrb[0].mxu0
  %v2691 = vadd.f32 0.0, %v2690
  %v2692 = vpop.f32.mrb[0].mxu0
  %2693 = vmatprep.mubr.f32.mxu0 0.0
  %2694 = vmatmul.mubr.f32.gmra.mrb[0].mxu0 %v2566
  %v2695 = vpop.f32.mrb[0].mxu0
  %v2696 = vadd.f32 0.0, %v2695
  %v2697 = vpop.f32.mrb[0].mxu0
  %2698 = vmatprep.mubr.f32.mxu0 0.0
  %2699 = vmatmul.mubr.f32.gmra.mrb[0].mxu0 %v2569
  %v2700 = vpop.f32.mrb[0].mxu0
  %v2701 = vadd.f32 0.0, %v2700
  %v2702 = vpop.f32.mrb[0].mxu0
  %2703 = vmatprep.mubr.f32.mxu0 0.0
  %2704 = vmatmul.mubr.f32.gmra.mrb[0].mxu0 %v2572
  %v2705 = vpop.f32.mrb[0].mxu0
  %v2706 = vadd.f32 0.0, %v2705
  %v2707 = vpop.f32.mrb[0].mxu0
  %2708 = vmatprep.mubr.f32.mxu0 0.0
  %2709 = vmatmul.mubr.f32.gmra.mrb[0].mxu0 %v2575
  %v2710 = vpop.f32.mrb[0].mxu0
  %v2711 = vadd.f32 0.0, %v2710
  %v2712 = vpop.f32.mrb[0].mxu0
  %2713 = vmatprep.mubr.f32.mxu0 0.0
  %2714 = vmatmul.mubr.f32.gmra.mrb[0].mxu0 %v2578
  %v2715 = vpop.f32.mrb[0].mxu0
  %v2716 = vadd.f32 0.0, %v2715
  %v2717 = vpop.f32.mrb[0].mxu0
  %2718 = vmatprep.mubr.f32.mxu0 0.0
  %2719 = vmatmul.mubr.f32.gmra.mrb[0].mxu0 %v2581
  %v2720 = vpop.f32.mrb[0].mxu0
  %v2721 = vadd.f32 0.0, %v2720
  %v2722 = vpop.f32.mrb[0].mxu0
  %2723 = vmatprep.mubr.f32.mxu0 0.0
  %2724 = vmatmul.mubr.f32.gmra.mrb[0].mxu0 %v2584
  %v2725 = vpop.f32.mrb[0].mxu0
  %v2726 = vadd.f32 0.0, %v2725
  %v2727 = vpop.f32.mrb[0].mxu0
  %2728 = vmatprep.mubr.f32.mxu0 0.0
  %2729 = vmatmul.mubr.f32.gmra.mrb[0].mxu0 %v2587
  %v2730 = vpop.f32.mrb[0].mxu0
  %v2731 = vadd.f32 0.0, %v2730
  %v2732 = vpop.f32.mrb[0].mxu0
  %2733 = vdwg.mxu0
  %v2734 = vadd.f32 %v2380, %v2656
  %v2735 = vadd.f32 %v2381, %v2661
  %v2736 = vadd.f32 %v2382, %v2666
  %v2737 = vadd.f32 %v2383, %v2671
  %v2738 = vadd.f32 %v2384, %v2676
  %v2739 = vadd.f32 %v2385, %v2681
  %v2740 = vadd.f32 %v2386, %v2686
  %v2741 = vadd.f32 %v2387, %v2691
  %v2742 = vadd.f32 %v2388, %v2696
  %v2743 = vadd.f32 %v2389, %v2701
  %v2744 = vadd.f32 %v2390, %v2706
  %v2745 = vadd.f32 %v2391, %v2711
  %v2746 = vadd.f32 %v2392, %v2716
  %v2747 = vadd.f32 %v2393, %v2721
  %v2748 = vadd.f32 %v2394, %v2726
  %v2749 = vadd.f32 %v2395, %v2731
  %v2750 = vld [vmem:[#allocation2 + $0x11] sm:$0xff]
  %v2751 = vld [vmem:[#allocation2 + $0x19] sm:$0xff]
  %v2752 = vld [vmem:[#allocation2 + $0x21] sm:$0xff]
  %v2753 = vld [vmem:[#allocation2 + $0x29] sm:$0xff]
  %v2754 = vld [vmem:[#allocation2 + $0x31] sm:$0xff]
  %v2755 = vld [vmem:[#allocation2 + $0x39] sm:$0xff]
  %v2756 = vld [vmem:[#allocation2 + $0x41] sm:$0xff]
  %v2757 = vld [vmem:[#allocation2 + $0x49] sm:$0xff]
  %v2758 = vld [vmem:[#allocation2 + $0x51] sm:$0xff]
  %v2759 = vld [vmem:[#allocation2 + $0x59] sm:$0xff]
  %v2760 = vld [vmem:[#allocation2 + $0x61] sm:$0xff]
  %v2761 = vld [vmem:[#allocation2 + $0x69] sm:$0xff]
  %v2762 = vld [vmem:[#allocation2 + $0x71] sm:$0xff]
  %v2763 = vld [vmem:[#allocation2 + $0x79] sm:$0xff]
  %v2764 = vld [vmem:[#allocation2 + $0x81] sm:$0xff]
  %v2765 = vld [vmem:[#allocation2 + $0x89] sm:$0xff]
  %v2766 = vsel %vm2412, 1, 0
  %v2767 = vsel %vm2413, 1, 0
  %v2768 = vsel %vm2414, 1, 0
  %v2769 = vsel %vm2415, 1, 0
  %v2770 = vsel %vm2416, 1, 0
  %v2771 = vsel %vm2417, 1, 0
  %v2772 = vsel %vm2418, 1, 0
  %v2773 = vsel %vm2419, 1, 0
  %v2774 = vsel %vm2420, 1, 0
  %v2775 = vsel %vm2421, 1, 0
  %v2776 = vsel %vm2422, 1, 0
  %v2777 = vsel %vm2423, 1, 0
  %v2778 = vsel %vm2424, 1, 0
  %v2779 = vsel %vm2425, 1, 0
  %v2780 = vsel %vm2426, 1, 0
  %v2781 = vsel %vm2427, 1, 0
  %2782 = vset.pattern.permute.xlu0 0
  %2783 = vperm.xlu0 %2782, %v2766
  %v2784 = vpop.permute.xlu0 %2783
  %2785 = vset.pattern.permute.xlu0 0
  %2786 = vperm.xlu0 %2785, %v2767
  %v2787 = vpop.permute.xlu0 %2786
  %2788 = vset.pattern.permute.xlu0 0
  %2789 = vperm.xlu0 %2788, %v2768
  %v2790 = vpop.permute.xlu0 %2789
  %2791 = vset.pattern.permute.xlu0 0
  %2792 = vperm.xlu0 %2791, %v2769
  %v2793 = vpop.permute.xlu0 %2792
  %2794 = vset.pattern.permute.xlu0 0
  %2795 = vperm.xlu0 %2794, %v2770
  %v2796 = vpop.permute.xlu0 %2795
  %2797 = vset.pattern.permute.xlu0 0
  %2798 = vperm.xlu0 %2797, %v2771
  %v2799 = vpop.permute.xlu0 %2798
  %2800 = vset.pattern.permute.xlu0 0
  %2801 = vperm.xlu0 %2800, %v2772
  %v2802 = vpop.permute.xlu0 %2801
  %2803 = vset.pattern.permute.xlu0 0
  %2804 = vperm.xlu0 %2803, %v2773
  %v2805 = vpop.permute.xlu0 %2804
  %2806 = vset.pattern.permute.xlu0 0
  %2807 = vperm.xlu0 %2806, %v2774
  %v2808 = vpop.permute.xlu0 %2807
  %2809 = vset.pattern.permute.xlu0 0
  %2810 = vperm.xlu0 %2809, %v2775
  %v2811 = vpop.permute.xlu0 %2810
  %2812 = vset.pattern.permute.xlu0 0
  %2813 = vperm.xlu0 %2812, %v2776
  %v2814 = vpop.permute.xlu0 %2813
  %2815 = vset.pattern.permute.xlu0 0
  %2816 = vperm.xlu0 %2815, %v2777
  %v2817 = vpop.permute.xlu0 %2816
  %2818 = vset.pattern.permute.xlu0 0
  %2819 = vperm.xlu0 %2818, %v2778
  %v2820 = vpop.permute.xlu0 %2819
  %2821 = vset.pattern.permute.xlu0 0
  %2822 = vperm.xlu0 %2821, %v2779
  %v2823 = vpop.permute.xlu0 %2822
  %2824 = vset.pattern.permute.xlu0 0
  %2825 = vperm.xlu0 %2824, %v2780
  %v2826 = vpop.permute.xlu0 %2825
  %2827 = vset.pattern.permute.xlu0 0
  %2828 = vperm.xlu0 %2827, %v2781
  %v2829 = vpop.permute.xlu0 %2828
  %vm2830 = vcmp.eq.s32.totalorder %v2784, 1
  %vm2831 = vcmp.eq.s32.totalorder %v2787, 1
  %vm2832 = vcmp.eq.s32.totalorder %v2790, 1
  %vm2833 = vcmp.eq.s32.totalorder %v2793, 1
  %vm2834 = vcmp.eq.s32.totalorder %v2796, 1
  %vm2835 = vcmp.eq.s32.totalorder %v2799, 1
  %vm2836 = vcmp.eq.s32.totalorder %v2802, 1
  %vm2837 = vcmp.eq.s32.totalorder %v2805, 1
  %vm2838 = vcmp.eq.s32.totalorder %v2808, 1
  %vm2839 = vcmp.eq.s32.totalorder %v2811, 1
  %vm2840 = vcmp.eq.s32.totalorder %v2814, 1
  %vm2841 = vcmp.eq.s32.totalorder %v2817, 1
  %vm2842 = vcmp.eq.s32.totalorder %v2820, 1
  %vm2843 = vcmp.eq.s32.totalorder %v2823, 1
  %vm2844 = vcmp.eq.s32.totalorder %v2826, 1
  %vm2845 = vcmp.eq.s32.totalorder %v2829, 1
  %v2846 = vsel %vm2830, %v2750, 0.0
  %v2847 = vsel %vm2831, %v2751, 0.0
  %v2848 = vsel %vm2832, %v2752, 0.0
  %v2849 = vsel %vm2833, %v2753, 0.0
  %v2850 = vsel %vm2834, %v2754, 0.0
  %v2851 = vsel %vm2835, %v2755, 0.0
  %v2852 = vsel %vm2836, %v2756, 0.0
  %v2853 = vsel %vm2837, %v2757, 0.0
  %v2854 = vsel %vm2838, %v2758, 0.0
  %v2855 = vsel %vm2839, %v2759, 0.0
  %v2856 = vsel %vm2840, %v2760, 0.0
  %v2857 = vsel %vm2841, %v2761, 0.0
  %v2858 = vsel %vm2842, %v2762, 0.0
  %v2859 = vsel %vm2843, %v2763, 0.0
  %v2860 = vsel %vm2844, %v2764, 0.0
  %v2861 = vsel %vm2845, %v2765, 0.0
  %v2862 = vld [vmem:[%s4 + $0x38] sm:$0xff]
  %v2864 = vsel %vm297, %v2846, 0
  %v2867 = vsel %vm297, %v2847, 0
  %v2870 = vsel %vm297, %v2848, 0
  %v2873 = vsel %vm297, %v2849, 0
  %v2876 = vsel %vm297, %v2850, 0
  %v2879 = vsel %vm297, %v2851, 0
  %v2882 = vsel %vm297, %v2852, 0
  %v2885 = vsel %vm297, %v2853, 0
  %v2888 = vsel %vm297, %v2854, 0
  %v2891 = vsel %vm297, %v2855, 0
  %v2894 = vsel %vm297, %v2856, 0
  %v2897 = vsel %vm297, %v2857, 0
  %v2900 = vsel %vm297, %v2858, 0
  %v2903 = vsel %vm297, %v2859, 0
  %v2906 = vsel %vm297, %v2860, 0
  %v2909 = vsel %vm297, %v2861, 0
  %2911 = vmatprep.subr.mxu0 0.0
  %2912 = vmatpush1.msra.mxu0 %v2862
  %2913 = vmatprep.subr.mxu0 0.0
  %2914 = vmatpush1.msra.mxu0 0.0
  %2915 = vmatprep.subr.mxu0 0.0
  %2916 = vmatpush1.msra.mxu0 0.0
  %2917 = vmatprep.subr.mxu0 0.0
  %2918 = vmatpush1.msra.mxu0 0.0
  %2919 = vmatprep.subr.mxu0 0.0
  %2920 = vmatpush1.msra.mxu0 0.0
  %2921 = vmatprep.subr.mxu0 0.0
  %2922 = vmatpush1.msra.mxu0 0.0
  %2923 = vmatprep.subr.mxu0 0.0
  %2924 = vmatpush1.msra.mxu0 0.0
  %2925 = vmatprep.subr.mxu0 0.0
  %2926 = vmatpush1.msra.mxu0 0.0
  %2927 = vmatprep.subr.mxu0 0.0
  %2928 = vmatpush1.msra.mxu0 0.0
  %2929 = vmatprep.subr.mxu0 0.0
  %2930 = vmatpush1.msra.mxu0 0.0
  %2931 = vmatprep.subr.mxu0 0.0
  %2932 = vmatpush1.msra.mxu0 0.0
  %2933 = vmatprep.subr.mxu0 0.0
  %2934 = vmatpush1.msra.mxu0 0.0
  %2935 = vmatprep.subr.mxu0 0.0
  %2936 = vmatpush1.msra.mxu0 0.0
  %2937 = vmatprep.subr.mxu0 0.0
  %2938 = vmatpush1.msra.mxu0 0.0
  %2939 = vmatprep.subr.mxu0 0.0
  %2940 = vmatpush1.msra.mxu0 0.0
  %2941 = vmatprep.subr.mxu0 0.0
  %2942 = vmatpush1.msra.mxu0 0.0
  %2943 = vmatprep.subr.mxu0 0.0
  %2944 = vmatpush1.msra.mxu0 0.0
  %2945 = vmatprep.subr.mxu0 0.0
  %2946 = vmatpush1.msra.mxu0 0.0
  %2947 = vmatprep.subr.mxu0 0.0
  %2948 = vmatpush1.msra.mxu0 0.0
  %2949 = vmatprep.subr.mxu0 0.0
  %2950 = vmatpush1.msra.mxu0 0.0
  %2951 = vmatprep.subr.mxu0 0.0
  %2952 = vmatpush1.msra.mxu0 0.0
  %2953 = vmatprep.subr.mxu0 0.0
  %2954 = vmatpush1.msra.mxu0 0.0
  %2955 = vmatprep.subr.mxu0 0.0
  %2956 = vmatpush1.msra.mxu0 0.0
  %2957 = vmatprep.subr.mxu0 0.0
  %2958 = vmatpush1.msra.mxu0 0.0
  %2959 = vmatprep.subr.mxu0 0.0
  %2960 = vmatpush1.msra.mxu0 0.0
  %2961 = vmatprep.subr.mxu0 0.0
  %2962 = vmatpush1.msra.mxu0 0.0
  %2963 = vmatprep.subr.mxu0 0.0
  %2964 = vmatpush1.msra.mxu0 0.0
  %2965 = vmatprep.subr.mxu0 0.0
  %2966 = vmatpush1.msra.mxu0 0.0
  %2967 = vmatprep.subr.mxu0 0.0
  %2968 = vmatpush1.msra.mxu0 0.0
  %2969 = vmatprep.subr.mxu0 0.0
  %2970 = vmatpush1.msra.mxu0 0.0
  %2971 = vmatprep.subr.mxu0 0.0
  %2972 = vmatpush1.msra.mxu0 0.0
  %2973 = vmatprep.subr.mxu0 0.0
  %2974 = vmatpush1.msra.mxu0 0.0
  %2975 = vmatprep.mubr.f32.mxu0 0.0
  %2976 = vmatmul.mubr.f32.gmra.mrb[0].mxu0 %v2864
  %v2977 = vpop.f32.mrb[0].mxu0
  %v2978 = vadd.f32 0.0, %v2977
  %v2979 = vpop.f32.mrb[0].mxu0
  %2980 = vmatprep.mubr.f32.mxu0 0.0
  %2981 = vmatmul.mubr.f32.gmra.mrb[0].mxu0 %v2867
  %v2982 = vpop.f32.mrb[0].mxu0
  %v2983 = vadd.f32 0.0, %v2982
  %v2984 = vpop.f32.mrb[0].mxu0
  %2985 = vmatprep.mubr.f32.mxu0 0.0
  %2986 = vmatmul.mubr.f32.gmra.mrb[0].mxu0 %v2870
  %v2987 = vpop.f32.mrb[0].mxu0
  %v2988 = vadd.f32 0.0, %v2987
  %v2989 = vpop.f32.mrb[0].mxu0
  %2990 = vmatprep.mubr.f32.mxu0 0.0
  %2991 = vmatmul.mubr.f32.gmra.mrb[0].mxu0 %v2873
  %v2992 = vpop.f32.mrb[0].mxu0
  %v2993 = vadd.f32 0.0, %v2992
  %v2994 = vpop.f32.mrb[0].mxu0
  %2995 = vmatprep.mubr.f32.mxu0 0.0
  %2996 = vmatmul.mubr.f32.gmra.mrb[0].mxu0 %v2876
  %v2997 = vpop.f32.mrb[0].mxu0
  %v2998 = vadd.f32 0.0, %v2997
  %v2999 = vpop.f32.mrb[0].mxu0
  %3000 = vmatprep.mubr.f32.mxu0 0.0
  %3001 = vmatmul.mubr.f32.gmra.mrb[0].mxu0 %v2879
  %v3002 = vpop.f32.mrb[0].mxu0
  %v3003 = vadd.f32 0.0, %v3002
  %v3004 = vpop.f32.mrb[0].mxu0
  %3005 = vmatprep.mubr.f32.mxu0 0.0
  %3006 = vmatmul.mubr.f32.gmra.mrb[0].mxu0 %v2882
  %v3007 = vpop.f32.mrb[0].mxu0
  %v3008 = vadd.f32 0.0, %v3007
  %v3009 = vpop.f32.mrb[0].mxu0
  %3010 = vmatprep.mubr.f32.mxu0 0.0
  %3011 = vmatmul.mubr.f32.gmra.mrb[0].mxu0 %v2885
  %v3012 = vpop.f32.mrb[0].mxu0
  %v3013 = vadd.f32 0.0, %v3012
  %v3014 = vpop.f32.mrb[0].mxu0
  %3015 = vmatprep.mubr.f32.mxu0 0.0
  %3016 = vmatmul.mubr.f32.gmra.mrb[0].mxu0 %v2888
  %v3017 = vpop.f32.mrb[0].mxu0
  %v3018 = vadd.f32 0.0, %v3017
  %v3019 = vpop.f32.mrb[0].mxu0
  %3020 = vmatprep.mubr.f32.mxu0 0.0
  %3021 = vmatmul.mubr.f32.gmra.mrb[0].mxu0 %v2891
  %v3022 = vpop.f32.mrb[0].mxu0
  %v3023 = vadd.f32 0.0, %v3022
  %v3024 = vpop.f32.mrb[0].mxu0
  %3025 = vmatprep.mubr.f32.mxu0 0.0
  %3026 = vmatmul.mubr.f32.gmra.mrb[0].mxu0 %v2894
  %v3027 = vpop.f32.mrb[0].mxu0
  %v3028 = vadd.f32 0.0, %v3027
  %v3029 = vpop.f32.mrb[0].mxu0
  %3030 = vmatprep.mubr.f32.mxu0 0.0
  %3031 = vmatmul.mubr.f32.gmra.mrb[0].mxu0 %v2897
  %v3032 = vpop.f32.mrb[0].mxu0
  %v3033 = vadd.f32 0.0, %v3032
  %v3034 = vpop.f32.mrb[0].mxu0
  %3035 = vmatprep.mubr.f32.mxu0 0.0
  %3036 = vmatmul.mubr.f32.gmra.mrb[0].mxu0 %v2900
  %v3037 = vpop.f32.mrb[0].mxu0
  %v3038 = vadd.f32 0.0, %v3037
  %v3039 = vpop.f32.mrb[0].mxu0
  %3040 = vmatprep.mubr.f32.mxu0 0.0
  %3041 = vmatmul.mubr.f32.gmra.mrb[0].mxu0 %v2903
  %v3042 = vpop.f32.mrb[0].mxu0
  %v3043 = vadd.f32 0.0, %v3042
  %v3044 = vpop.f32.mrb[0].mxu0
  %3045 = vmatprep.mubr.f32.mxu0 0.0
  %3046 = vmatmul.mubr.f32.gmra.mrb[0].mxu0 %v2906
  %v3047 = vpop.f32.mrb[0].mxu0
  %v3048 = vadd.f32 0.0, %v3047
  %v3049 = vpop.f32.mrb[0].mxu0
  %3050 = vmatprep.mubr.f32.mxu0 0.0
  %3051 = vmatmul.mubr.f32.gmra.mrb[0].mxu0 %v2909
  %v3052 = vpop.f32.mrb[0].mxu0
  %v3053 = vadd.f32 0.0, %v3052
  %v3054 = vpop.f32.mrb[0].mxu0
  %3055 = vdwg.mxu0
  %v3056 = vadd.f32 %v2734, %v2978
  %v3057 = vadd.f32 %v2735, %v2983
  %v3058 = vadd.f32 %v2736, %v2988
  %v3059 = vadd.f32 %v2737, %v2993
  %v3060 = vadd.f32 %v2738, %v2998
  %v3061 = vadd.f32 %v2739, %v3003
  %v3062 = vadd.f32 %v2740, %v3008
  %v3063 = vadd.f32 %v2741, %v3013
  %v3064 = vadd.f32 %v2742, %v3018
  %v3065 = vadd.f32 %v2743, %v3023
  %v3066 = vadd.f32 %v2744, %v3028
  %v3067 = vadd.f32 %v2745, %v3033
  %v3068 = vadd.f32 %v2746, %v3038
  %v3069 = vadd.f32 %v2747, %v3043
  %v3070 = vadd.f32 %v2748, %v3048
  %v3071 = vadd.f32 %v2749, %v3053
  %v3072 = vld [vmem:[#allocation2 + $0x12] sm:$0xff]
  %v3073 = vld [vmem:[#allocation2 + $0x1a] sm:$0xff]
  %v3074 = vld [vmem:[#allocation2 + $0x22] sm:$0xff]
  %v3075 = vld [vmem:[#allocation2 + $0x2a] sm:$0xff]
  %v3076 = vld [vmem:[#allocation2 + $0x32] sm:$0xff]
  %v3077 = vld [vmem:[#allocation2 + $0x3a] sm:$0xff]
  %v3078 = vld [vmem:[#allocation2 + $0x42] sm:$0xff]
  %v3079 = vld [vmem:[#allocation2 + $0x4a] sm:$0xff]
  %v3080 = vld [vmem:[#allocation2 + $0x52] sm:$0xff]
  %v3081 = vld [vmem:[#allocation2 + $0x5a] sm:$0xff]
  %v3082 = vld [vmem:[#allocation2 + $0x62] sm:$0xff]
  %v3083 = vld [vmem:[#allocation2 + $0x6a] sm:$0xff]
  %v3084 = vld [vmem:[#allocation2 + $0x72] sm:$0xff]
  %v3085 = vld [vmem:[#allocation2 + $0x7a] sm:$0xff]
  %v3086 = vld [vmem:[#allocation2 + $0x82] sm:$0xff]
  %v3087 = vld [vmem:[#allocation2 + $0x8a] sm:$0xff]
  %vm3088 = vmand %vm2412, %vm1188
  %vm3089 = vmand %vm2413, %vm1189
  %vm3090 = vmand %vm2414, %vm1190
  %vm3091 = vmand %vm2415, %vm1191
  %vm3092 = vmand %vm2416, %vm1192
  %vm3093 = vmand %vm2417, %vm1193
  %vm3094 = vmand %vm2418, %vm1194
  %vm3095 = vmand %vm2419, %vm1195
  %vm3096 = vmand %vm2420, %vm1196
  %vm3097 = vmand %vm2421, %vm1197
  %vm3098 = vmand %vm2422, %vm1198
  %vm3099 = vmand %vm2423, %vm1199
  %vm3100 = vmand %vm2424, %vm1200
  %vm3101 = vmand %vm2425, %vm1201
  %vm3102 = vmand %vm2426, %vm1202
  %vm3103 = vmand %vm2427, %vm1203
  %v3104 = vsel %vm3088, 1, 0
  %v3105 = vsel %vm3089, 1, 0
  %v3106 = vsel %vm3090, 1, 0
  %v3107 = vsel %vm3091, 1, 0
  %v3108 = vsel %vm3092, 1, 0
  %v3109 = vsel %vm3093, 1, 0
  %v3110 = vsel %vm3094, 1, 0
  %v3111 = vsel %vm3095, 1, 0
  %v3112 = vsel %vm3096, 1, 0
  %v3113 = vsel %vm3097, 1, 0
  %v3114 = vsel %vm3098, 1, 0
  %v3115 = vsel %vm3099, 1, 0
  %v3116 = vsel %vm3100, 1, 0
  %v3117 = vsel %vm3101, 1, 0
  %v3118 = vsel %vm3102, 1, 0
  %v3119 = vsel %vm3103, 1, 0
  %3120 = vset.pattern.permute.xlu0 0
  %3121 = vperm.xlu0 %3120, %v3104
  %v3122 = vpop.permute.xlu0 %3121
  %3123 = vset.pattern.permute.xlu0 0
  %3124 = vperm.xlu0 %3123, %v3105
  %v3125 = vpop.permute.xlu0 %3124
  %3126 = vset.pattern.permute.xlu0 0
  %3127 = vperm.xlu0 %3126, %v3106
  %v3128 = vpop.permute.xlu0 %3127
  %3129 = vset.pattern.permute.xlu0 0
  %3130 = vperm.xlu0 %3129, %v3107
  %v3131 = vpop.permute.xlu0 %3130
  %3132 = vset.pattern.permute.xlu0 0
  %3133 = vperm.xlu0 %3132, %v3108
  %v3134 = vpop.permute.xlu0 %3133
  %3135 = vset.pattern.permute.xlu0 0
  %3136 = vperm.xlu0 %3135, %v3109
  %v3137 = vpop.permute.xlu0 %3136
  %3138 = vset.pattern.permute.xlu0 0
  %3139 = vperm.xlu0 %3138, %v3110
  %v3140 = vpop.permute.xlu0 %3139
  %3141 = vset.pattern.permute.xlu0 0
  %3142 = vperm.xlu0 %3141, %v3111
  %v3143 = vpop.permute.xlu0 %3142
  %3144 = vset.pattern.permute.xlu0 0
  %3145 = vperm.xlu0 %3144, %v3112
  %v3146 = vpop.permute.xlu0 %3145
  %3147 = vset.pattern.permute.xlu0 0
  %3148 = vperm.xlu0 %3147, %v3113
  %v3149 = vpop.permute.xlu0 %3148
  %3150 = vset.pattern.permute.xlu0 0
  %3151 = vperm.xlu0 %3150, %v3114
  %v3152 = vpop.permute.xlu0 %3151
  %3153 = vset.pattern.permute.xlu0 0
  %3154 = vperm.xlu0 %3153, %v3115
  %v3155 = vpop.permute.xlu0 %3154
  %3156 = vset.pattern.permute.xlu0 0
  %3157 = vperm.xlu0 %3156, %v3116
  %v3158 = vpop.permute.xlu0 %3157
  %3159 = vset.pattern.permute.xlu0 0
  %3160 = vperm.xlu0 %3159, %v3117
  %v3161 = vpop.permute.xlu0 %3160
  %3162 = vset.pattern.permute.xlu0 0
  %3163 = vperm.xlu0 %3162, %v3118
  %v3164 = vpop.permute.xlu0 %3163
  %3165 = vset.pattern.permute.xlu0 0
  %3166 = vperm.xlu0 %3165, %v3119
  %v3167 = vpop.permute.xlu0 %3166
  %vm3168 = vcmp.eq.s32.totalorder %v3122, 1
  %vm3169 = vcmp.eq.s32.totalorder %v3125, 1
  %vm3170 = vcmp.eq.s32.totalorder %v3128, 1
  %vm3171 = vcmp.eq.s32.totalorder %v3131, 1
  %vm3172 = vcmp.eq.s32.totalorder %v3134, 1
  %vm3173 = vcmp.eq.s32.totalorder %v3137, 1
  %vm3174 = vcmp.eq.s32.totalorder %v3140, 1
  %vm3175 = vcmp.eq.s32.totalorder %v3143, 1
  %vm3176 = vcmp.eq.s32.totalorder %v3146, 1
  %vm3177 = vcmp.eq.s32.totalorder %v3149, 1
  %vm3178 = vcmp.eq.s32.totalorder %v3152, 1
  %vm3179 = vcmp.eq.s32.totalorder %v3155, 1
  %vm3180 = vcmp.eq.s32.totalorder %v3158, 1
  %vm3181 = vcmp.eq.s32.totalorder %v3161, 1
  %vm3182 = vcmp.eq.s32.totalorder %v3164, 1
  %vm3183 = vcmp.eq.s32.totalorder %v3167, 1
  %v3184 = vsel %vm3168, %v3072, 0.0
  %v3185 = vsel %vm3169, %v3073, 0.0
  %v3186 = vsel %vm3170, %v3074, 0.0
  %v3187 = vsel %vm3171, %v3075, 0.0
  %v3188 = vsel %vm3172, %v3076, 0.0
  %v3189 = vsel %vm3173, %v3077, 0.0
  %v3190 = vsel %vm3174, %v3078, 0.0
  %v3191 = vsel %vm3175, %v3079, 0.0
  %v3192 = vsel %vm3176, %v3080, 0.0
  %v3193 = vsel %vm3177, %v3081, 0.0
  %v3194 = vsel %vm3178, %v3082, 0.0
  %v3195 = vsel %vm3179, %v3083, 0.0
  %v3196 = vsel %vm3180, %v3084, 0.0
  %v3197 = vsel %vm3181, %v3085, 0.0
  %v3198 = vsel %vm3182, %v3086, 0.0
  %v3199 = vsel %vm3183, %v3087, 0.0
  %v3200 = vld [vmem:[%s4 + $0x40] sm:$0xff]
  %v3202 = vsel %vm297, %v3184, 0
  %v3205 = vsel %vm297, %v3185, 0
  %v3208 = vsel %vm297, %v3186, 0
  %v3211 = vsel %vm297, %v3187, 0
  %v3214 = vsel %vm297, %v3188, 0
  %v3217 = vsel %vm297, %v3189, 0
  %v3220 = vsel %vm297, %v3190, 0
  %v3223 = vsel %vm297, %v3191, 0
  %v3226 = vsel %vm297, %v3192, 0
  %v3229 = vsel %vm297, %v3193, 0
  %v3232 = vsel %vm297, %v3194, 0
  %v3235 = vsel %vm297, %v3195, 0
  %v3238 = vsel %vm297, %v3196, 0
  %v3241 = vsel %vm297, %v3197, 0
  %v3244 = vsel %vm297, %v3198, 0
  %v3247 = vsel %vm297, %v3199, 0
  %3249 = vmatprep.subr.mxu0 0.0
  %3250 = vmatpush1.msra.mxu0 %v3200
  %3251 = vmatprep.subr.mxu0 0.0
  %3252 = vmatpush1.msra.mxu0 0.0
  %3253 = vmatprep.subr.mxu0 0.0
  %3254 = vmatpush1.msra.mxu0 0.0
  %3255 = vmatprep.subr.mxu0 0.0
  %3256 = vmatpush1.msra.mxu0 0.0
  %3257 = vmatprep.subr.mxu0 0.0
  %3258 = vmatpush1.msra.mxu0 0.0
  %3259 = vmatprep.subr.mxu0 0.0
  %3260 = vmatpush1.msra.mxu0 0.0
  %3261 = vmatprep.subr.mxu0 0.0
  %3262 = vmatpush1.msra.mxu0 0.0
  %3263 = vmatprep.subr.mxu0 0.0
  %3264 = vmatpush1.msra.mxu0 0.0
  %3265 = vmatprep.subr.mxu0 0.0
  %3266 = vmatpush1.msra.mxu0 0.0
  %3267 = vmatprep.subr.mxu0 0.0
  %3268 = vmatpush1.msra.mxu0 0.0
  %3269 = vmatprep.subr.mxu0 0.0
  %3270 = vmatpush1.msra.mxu0 0.0
  %3271 = vmatprep.subr.mxu0 0.0
  %3272 = vmatpush1.msra.mxu0 0.0
  %3273 = vmatprep.subr.mxu0 0.0
  %3274 = vmatpush1.msra.mxu0 0.0
  %3275 = vmatprep.subr.mxu0 0.0
  %3276 = vmatpush1.msra.mxu0 0.0
  %3277 = vmatprep.subr.mxu0 0.0
  %3278 = vmatpush1.msra.mxu0 0.0
  %3279 = vmatprep.subr.mxu0 0.0
  %3280 = vmatpush1.msra.mxu0 0.0
  %3281 = vmatprep.subr.mxu0 0.0
  %3282 = vmatpush1.msra.mxu0 0.0
  %3283 = vmatprep.subr.mxu0 0.0
  %3284 = vmatpush1.msra.mxu0 0.0
  %3285 = vmatprep.subr.mxu0 0.0
  %3286 = vmatpush1.msra.mxu0 0.0
  %3287 = vmatprep.subr.mxu0 0.0
  %3288 = vmatpush1.msra.mxu0 0.0
  %3289 = vmatprep.subr.mxu0 0.0
  %3290 = vmatpush1.msra.mxu0 0.0
  %3291 = vmatprep.subr.mxu0 0.0
  %3292 = vmatpush1.msra.mxu0 0.0
  %3293 = vmatprep.subr.mxu0 0.0
  %3294 = vmatpush1.msra.mxu0 0.0
  %3295 = vmatprep.subr.mxu0 0.0
  %3296 = vmatpush1.msra.mxu0 0.0
  %3297 = vmatprep.subr.mxu0 0.0
  %3298 = vmatpush1.msra.mxu0 0.0
  %3299 = vmatprep.subr.mxu0 0.0
  %3300 = vmatpush1.msra.mxu0 0.0
  %3301 = vmatprep.subr.mxu0 0.0
  %3302 = vmatpush1.msra.mxu0 0.0
  %3303 = vmatprep.subr.mxu0 0.0
  %3304 = vmatpush1.msra.mxu0 0.0
  %3305 = vmatprep.subr.mxu0 0.0
  %3306 = vmatpush1.msra.mxu0 0.0
  %3307 = vmatprep.subr.mxu0 0.0
  %3308 = vmatpush1.msra.mxu0 0.0
  %3309 = vmatprep.subr.mxu0 0.0
  %3310 = vmatpush1.msra.mxu0 0.0
  %3311 = vmatprep.subr.mxu0 0.0
  %3312 = vmatpush1.msra.mxu0 0.0
  %3313 = vmatprep.mubr.f32.mxu0 0.0
  %3314 = vmatmul.mubr.f32.gmra.mrb[0].mxu0 %v3202
  %v3315 = vpop.f32.mrb[0].mxu0
  %v3316 = vadd.f32 0.0, %v3315
  %v3317 = vpop.f32.mrb[0].mxu0
  %3318 = vmatprep.mubr.f32.mxu0 0.0
  %3319 = vmatmul.mubr.f32.gmra.mrb[0].mxu0 %v3205
  %v3320 = vpop.f32.mrb[0].mxu0
  %v3321 = vadd.f32 0.0, %v3320
  %v3322 = vpop.f32.mrb[0].mxu0
  %3323 = vmatprep.mubr.f32.mxu0 0.0
  %3324 = vmatmul.mubr.f32.gmra.mrb[0].mxu0 %v3208
  %v3325 = vpop.f32.mrb[0].mxu0
  %v3326 = vadd.f32 0.0, %v3325
  %v3327 = vpop.f32.mrb[0].mxu0
  %3328 = vmatprep.mubr.f32.mxu0 0.0
  %3329 = vmatmul.mubr.f32.gmra.mrb[0].mxu0 %v3211
  %v3330 = vpop.f32.mrb[0].mxu0
  %v3331 = vadd.f32 0.0, %v3330
  %v3332 = vpop.f32.mrb[0].mxu0
  %3333 = vmatprep.mubr.f32.mxu0 0.0
  %3334 = vmatmul.mubr.f32.gmra.mrb[0].mxu0 %v3214
  %v3335 = vpop.f32.mrb[0].mxu0
  %v3336 = vadd.f32 0.0, %v3335
  %v3337 = vpop.f32.mrb[0].mxu0
  %3338 = vmatprep.mubr.f32.mxu0 0.0
  %3339 = vmatmul.mubr.f32.gmra.mrb[0].mxu0 %v3217
  %v3340 = vpop.f32.mrb[0].mxu0
  %v3341 = vadd.f32 0.0, %v3340
  %v3342 = vpop.f32.mrb[0].mxu0
  %3343 = vmatprep.mubr.f32.mxu0 0.0
  %3344 = vmatmul.mubr.f32.gmra.mrb[0].mxu0 %v3220
  %v3345 = vpop.f32.mrb[0].mxu0
  %v3346 = vadd.f32 0.0, %v3345
  %v3347 = vpop.f32.mrb[0].mxu0
  %3348 = vmatprep.mubr.f32.mxu0 0.0
  %3349 = vmatmul.mubr.f32.gmra.mrb[0].mxu0 %v3223
  %v3350 = vpop.f32.mrb[0].mxu0
  %v3351 = vadd.f32 0.0, %v3350
  %v3352 = vpop.f32.mrb[0].mxu0
  %3353 = vmatprep.mubr.f32.mxu0 0.0
  %3354 = vmatmul.mubr.f32.gmra.mrb[0].mxu0 %v3226
  %v3355 = vpop.f32.mrb[0].mxu0
  %v3356 = vadd.f32 0.0, %v3355
  %v3357 = vpop.f32.mrb[0].mxu0
  %3358 = vmatprep.mubr.f32.mxu0 0.0
  %3359 = vmatmul.mubr.f32.gmra.mrb[0].mxu0 %v3229
  %v3360 = vpop.f32.mrb[0].mxu0
  %v3361 = vadd.f32 0.0, %v3360
  %v3362 = vpop.f32.mrb[0].mxu0
  %3363 = vmatprep.mubr.f32.mxu0 0.0
  %3364 = vmatmul.mubr.f32.gmra.mrb[0].mxu0 %v3232
  %v3365 = vpop.f32.mrb[0].mxu0
  %v3366 = vadd.f32 0.0, %v3365
  %v3367 = vpop.f32.mrb[0].mxu0
  %3368 = vmatprep.mubr.f32.mxu0 0.0
  %3369 = vmatmul.mubr.f32.gmra.mrb[0].mxu0 %v3235
  %v3370 = vpop.f32.mrb[0].mxu0
  %v3371 = vadd.f32 0.0, %v3370
  %v3372 = vpop.f32.mrb[0].mxu0
  %3373 = vmatprep.mubr.f32.mxu0 0.0
  %3374 = vmatmul.mubr.f32.gmra.mrb[0].mxu0 %v3238
  %v3375 = vpop.f32.mrb[0].mxu0
  %v3376 = vadd.f32 0.0, %v3375
  %v3377 = vpop.f32.mrb[0].mxu0
  %3378 = vmatprep.mubr.f32.mxu0 0.0
  %3379 = vmatmul.mubr.f32.gmra.mrb[0].mxu0 %v3241
  %v3380 = vpop.f32.mrb[0].mxu0
  %v3381 = vadd.f32 0.0, %v3380
  %v3382 = vpop.f32.mrb[0].mxu0
  %3383 = vmatprep.mubr.f32.mxu0 0.0
  %3384 = vmatmul.mubr.f32.gmra.mrb[0].mxu0 %v3244
  %v3385 = vpop.f32.mrb[0].mxu0
  %v3386 = vadd.f32 0.0, %v3385
  %v3387 = vpop.f32.mrb[0].mxu0
  %3388 = vmatprep.mubr.f32.mxu0 0.0
  %3389 = vmatmul.mubr.f32.gmra.mrb[0].mxu0 %v3247
  %v3390 = vpop.f32.mrb[0].mxu0
  %v3391 = vadd.f32 0.0, %v3390
  %v3392 = vpop.f32.mrb[0].mxu0
  %3393 = vdwg.mxu0
  %v3394 = vadd.f32 %v3056, %v3316
  %v3395 = vadd.f32 %v3057, %v3321
  %v3396 = vadd.f32 %v3058, %v3326
  %v3397 = vadd.f32 %v3059, %v3331
  %v3398 = vadd.f32 %v3060, %v3336
  %v3399 = vadd.f32 %v3061, %v3341
  %v3400 = vadd.f32 %v3062, %v3346
  %v3401 = vadd.f32 %v3063, %v3351
  %v3402 = vadd.f32 %v3064, %v3356
  %v3403 = vadd.f32 %v3065, %v3361
  %v3404 = vadd.f32 %v3066, %v3366
  %v3405 = vadd.f32 %v3067, %v3371
  %v3406 = vadd.f32 %v3068, %v3376
  %v3407 = vadd.f32 %v3069, %v3381
  %v3408 = vadd.f32 %v3070, %v3386
  %v3409 = vadd.f32 %v3071, %v3391
  %v3410 = vld [vmem:[%s7] sm:$0x1]
  %v3411 = vld [vmem:[%s8] sm:$0x1]
  %v3412 = vsel %vm297, %v3394, 0.0
  %v3413 = vsel %vm297, %v3395, 0.0
  %v3414 = vadd.f32 %v3412, %v3413
  %v3415 = vsel %vm297, %v3396, 0.0
  %v3416 = vadd.f32 %v3414, %v3415
  %v3417 = vsel %vm297, %v3397, 0.0
  %v3418 = vadd.f32 %v3416, %v3417
  %v3419 = vsel %vm297, %v3398, 0.0
  %v3420 = vadd.f32 %v3418, %v3419
  %v3421 = vsel %vm297, %v3399, 0.0
  %v3422 = vadd.f32 %v3420, %v3421
  %v3423 = vsel %vm297, %v3400, 0.0
  %v3424 = vadd.f32 %v3422, %v3423
  %v3425 = vsel %vm297, %v3401, 0.0
  %v3426 = vadd.f32 %v3424, %v3425
  %v3427 = vsel %vm297, %v3402, 0.0
  %v3428 = vadd.f32 %v3426, %v3427
  %v3429 = vsel %vm297, %v3403, 0.0
  %v3430 = vadd.f32 %v3428, %v3429
  %v3431 = vsel %vm297, %v3404, 0.0
  %v3432 = vadd.f32 %v3430, %v3431
  %v3433 = vsel %vm297, %v3405, 0.0
  %v3434 = vadd.f32 %v3432, %v3433
  %v3435 = vsel %vm297, %v3406, 0.0
  %v3436 = vadd.f32 %v3434, %v3435
  %v3437 = vsel %vm297, %v3407, 0.0
  %v3438 = vadd.f32 %v3436, %v3437
  %v3439 = vsel %vm297, %v3408, 0.0
  %v3440 = vadd.f32 %v3438, %v3439
  %v3441 = vsel %vm297, %v3409, 0.0
  %v3442 = vadd.f32 %v3440, %v3441
  %v3443 = vrot.slane %v3442, 4
  %v3444 = vadd.f32 %v3442, %v3443
  %v3445 = vrot.slane %v3444, 2
  %v3446 = vadd.f32 %v3444, %v3445
  %v3447 = vrot.slane %v3446, 1
  %v3448 = vadd.f32 %v3446, %v3447
  %v3449 = vmul.f32 %v3448, 0.0078125
  %v3450 = vsub.f32 %v3394, %v3449
  %v3451 = vsub.f32 %v3395, %v3449
  %v3452 = vsub.f32 %v3396, %v3449
  %v3453 = vsub.f32 %v3397, %v3449
  %v3454 = vsub.f32 %v3398, %v3449
  %v3455 = vsub.f32 %v3399, %v3449
  %v3456 = vsub.f32 %v3400, %v3449
  %v3457 = vsub.f32 %v3401, %v3449
  %v3458 = vsub.f32 %v3402, %v3449
  %v3459 = vsub.f32 %v3403, %v3449
  %v3460 = vsub.f32 %v3404, %v3449
  %v3461 = vsub.f32 %v3405, %v3449
  %v3462 = vsub.f32 %v3406, %v3449
  %v3463 = vsub.f32 %v3407, %v3449
  %v3464 = vsub.f32 %v3408, %v3449
  %v3465 = vsub.f32 %v3409, %v3449
  %v3466 = vmul.f32 %v3450, %v3450
  %v3467 = vmul.f32 %v3451, %v3451
  %v3468 = vmul.f32 %v3452, %v3452
  %v3469 = vmul.f32 %v3453, %v3453
  %v3470 = vmul.f32 %v3454, %v3454
  %v3471 = vmul.f32 %v3455, %v3455
  %v3472 = vmul.f32 %v3456, %v3456
  %v3473 = vmul.f32 %v3457, %v3457
  %v3474 = vmul.f32 %v3458, %v3458
  %v3475 = vmul.f32 %v3459, %v3459
  %v3476 = vmul.f32 %v3460, %v3460
  %v3477 = vmul.f32 %v3461, %v3461
  %v3478 = vmul.f32 %v3462, %v3462
  %v3479 = vmul.f32 %v3463, %v3463
  %v3480 = vmul.f32 %v3464, %v3464
  %v3481 = vmul.f32 %v3465, %v3465
  %v3482 = vsel %vm297, %v3466, 0.0
  %v3483 = vsel %vm297, %v3467, 0.0
  %v3484 = vadd.f32 %v3482, %v3483
  %v3485 = vsel %vm297, %v3468, 0.0
  %v3486 = vadd.f32 %v3484, %v3485
  %v3487 = vsel %vm297, %v3469, 0.0
  %v3488 = vadd.f32 %v3486, %v3487
  %v3489 = vsel %vm297, %v3470, 0.0
  %v3490 = vadd.f32 %v3488, %v3489
  %v3491 = vsel %vm297, %v3471, 0.0
  %v3492 = vadd.f32 %v3490, %v3491
  %v3493 = vsel %vm297, %v3472, 0.0
  %v3494 = vadd.f32 %v3492, %v3493
  %v3495 = vsel %vm297, %v3473, 0.0
  %v3496 = vadd.f32 %v3494, %v3495
  %v3497 = vsel %vm297, %v3474, 0.0
  %v3498 = vadd.f32 %v3496, %v3497
  %v3499 = vsel %vm297, %v3475, 0.0
  %v3500 = vadd.f32 %v3498, %v3499
  %v3501 = vsel %vm297, %v3476, 0.0
  %v3502 = vadd.f32 %v3500, %v3501
  %v3503 = vsel %vm297, %v3477, 0.0
  %v3504 = vadd.f32 %v3502, %v3503
  %v3505 = vsel %vm297, %v3478, 0.0
  %v3506 = vadd.f32 %v3504, %v3505
  %v3507 = vsel %vm297, %v3479, 0.0
  %v3508 = vadd.f32 %v3506, %v3507
  %v3509 = vsel %vm297, %v3480, 0.0
  %v3510 = vadd.f32 %v3508, %v3509
  %v3511 = vsel %vm297, %v3481, 0.0
  %v3512 = vadd.f32 %v3510, %v3511
  %v3513 = vrot.slane %v3512, 4
  %v3514 = vadd.f32 %v3512, %v3513
  %v3515 = vrot.slane %v3514, 2
  %v3516 = vadd.f32 %v3514, %v3515
  %v3517 = vrot.slane %v3516, 1
  %v3518 = vadd.f32 %v3516, %v3517
  %v3519 = vmul.f32 %v3518, 0.0078125
  %v3520 = vadd.f32 %v3519, 1e-05
  %v3521 = vrsqrt.pop %v3520
  %v3522 = vmul.f32 %v3520, %v3521
  %vm3523 = vcmp.eq.f32.partialorder %v3520, inf
  %v3524 = vsel %vm3523, %v3520, %v3522
  %vm3525 = vcmp.eq.f32.partialorder %v3520, 0.0
  %v3526 = vand.u32 %v3520, 2147483648
  %v3527 = vsel %vm3525, %v3526, %v3524
  %v3528 = vrcp.pop %v3527
  %v3529 = vmul.f32 %v3410, %v3528
  %v3531 = vlaneseq
  %v3532 = vshrl.u32 %v3531, 7
  %v3533 = vsub.s32 0, %v3532
  %v3534 = vrot.slane %v3529, %v3533
  %v3536 = vmul.f32 %v3450, %v3534
  %v3537 = vmul.f32 %v3451, %v3534
  %v3538 = vmul.f32 %v3452, %v3534
  %v3539 = vmul.f32 %v3453, %v3534
  %v3540 = vmul.f32 %v3454, %v3534
  %v3541 = vmul.f32 %v3455, %v3534
  %v3542 = vmul.f32 %v3456, %v3534
  %v3543 = vmul.f32 %v3457, %v3534
  %v3544 = vmul.f32 %v3458, %v3534
  %v3545 = vmul.f32 %v3459, %v3534
  %v3546 = vmul.f32 %v3460, %v3534
  %v3547 = vmul.f32 %v3461, %v3534
  %v3548 = vmul.f32 %v3462, %v3534
  %v3549 = vmul.f32 %v3463, %v3534
  %v3550 = vmul.f32 %v3464, %v3534
  %v3551 = vmul.f32 %v3465, %v3534
  %v3553 = vlaneseq
  %v3554 = vshrl.u32 %v3553, 7
  %v3555 = vsub.s32 0, %v3554
  %v3556 = vrot.slane %v3411, %v3555
  %v3558 = vadd.f32 %v3536, %v3556
  %v3559 = vadd.f32 %v3537, %v3556
  %v3560 = vadd.f32 %v3538, %v3556
  %v3561 = vadd.f32 %v3539, %v3556
  %v3562 = vadd.f32 %v3540, %v3556
  %v3563 = vadd.f32 %v3541, %v3556
  %v3564 = vadd.f32 %v3542, %v3556
  %v3565 = vadd.f32 %v3543, %v3556
  %v3566 = vadd.f32 %v3544, %v3556
  %v3567 = vadd.f32 %v3545, %v3556
  %v3568 = vadd.f32 %v3546, %v3556
  %v3569 = vadd.f32 %v3547, %v3556
  %v3570 = vadd.f32 %v3548, %v3556
  %v3571 = vadd.f32 %v3549, %v3556
  %v3572 = vadd.f32 %v3550, %v3556
  %v3573 = vadd.f32 %v3551, %v3556
  %v3574 = vmax.f32 %v3558, 0.0
  %v3575 = vmax.f32 %v3559, 0.0
  %v3576 = vmax.f32 %v3560, 0.0
  %v3577 = vmax.f32 %v3561, 0.0
  %v3578 = vmax.f32 %v3562, 0.0
  %v3579 = vmax.f32 %v3563, 0.0
  %v3580 = vmax.f32 %v3564, 0.0
  %v3581 = vmax.f32 %v3565, 0.0
  %v3582 = vmax.f32 %v3566, 0.0
  %v3583 = vmax.f32 %v3567, 0.0
  %v3584 = vmax.f32 %v3568, 0.0
  %v3585 = vmax.f32 %v3569, 0.0
  %v3586 = vmax.f32 %v3570, 0.0
  %v3587 = vmax.f32 %v3571, 0.0
  %v3588 = vmax.f32 %v3572, 0.0
  %v3589 = vmax.f32 %v3573, 0.0
  %v3590 = vld [vmem:[%s2] sm:$0xff]
  %v3591 = vld [vmem:[%s2 + $0x8] sm:$0xff]
  %v3592 = vld [vmem:[%s2 + $0x10] sm:$0xff]
  %v3593 = vld [vmem:[%s2 + $0x18] sm:$0xff]
  %v3594 = vld [vmem:[%s2 + $0x20] sm:$0xff]
  %v3595 = vld [vmem:[%s2 + $0x28] sm:$0xff]
  %v3596 = vld [vmem:[%s2 + $0x30] sm:$0xff]
  %v3597 = vld [vmem:[%s2 + $0x38] sm:$0xff]
  %v3598 = vld [vmem:[%s2 + $0x40] sm:$0xff]
  %v3599 = vld [vmem:[%s2 + $0x48] sm:$0xff]
  %v3600 = vld [vmem:[%s2 + $0x50] sm:$0xff]
  %v3601 = vld [vmem:[%s2 + $0x58] sm:$0xff]
  %v3602 = vld [vmem:[%s2 + $0x60] sm:$0xff]
  %v3603 = vld [vmem:[%s2 + $0x68] sm:$0xff]
  %v3604 = vld [vmem:[%s2 + $0x70] sm:$0xff]
  %v3605 = vld [vmem:[%s2 + $0x78] sm:$0xff]
  %v3606 = vld [vmem:[%s3] sm:$0xf]
  %vm3607 = vcmask 31744
  %v3609 = vsel %vm3607, %v3590, 0
  %v3612 = vsel %vm3607, %v3591, 0
  %v3615 = vsel %vm3607, %v3592, 0
  %v3618 = vsel %vm3607, %v3593, 0
  %v3621 = vsel %vm3607, %v3594, 0
  %v3624 = vsel %vm3607, %v3595, 0
  %v3627 = vsel %vm3607, %v3596, 0
  %v3630 = vsel %vm3607, %v3597, 0
  %v3633 = vsel %vm3607, %v3598, 0
  %v3636 = vsel %vm3607, %v3599, 0
  %v3639 = vsel %vm3607, %v3600, 0
  %v3642 = vsel %vm3607, %v3601, 0
  %v3645 = vsel %vm3607, %v3602, 0
  %v3648 = vsel %vm3607, %v3603, 0
  %v3651 = vsel %vm3607, %v3604, 0
  %v3654 = vsel %vm3607, %v3605, 0
  %v3657 = vsel %vm146, %v3606, 0
  %3659 = vmatprep.subr.mxu0 0.0
  %3660 = vmatpush1.msra.mxu0 %v3657
  %3661 = vmatprep.subr.mxu0 0.0
  %3662 = vmatpush1.msra.mxu0 0.0
  %3663 = vmatprep.subr.mxu0 0.0
  %3664 = vmatpush1.msra.mxu0 0.0
  %3665 = vmatprep.subr.mxu0 0.0
  %3666 = vmatpush1.msra.mxu0 0.0
  %3667 = vmatprep.subr.mxu0 0.0
  %3668 = vmatpush1.msra.mxu0 0.0
  %3669 = vmatprep.subr.mxu0 0.0
  %3670 = vmatpush1.msra.mxu0 0.0
  %3671 = vmatprep.subr.mxu0 0.0
  %3672 = vmatpush1.msra.mxu0 0.0
  %3673 = vmatprep.subr.mxu0 0.0
  %3674 = vmatpush1.msra.mxu0 0.0
  %3675 = vmatprep.subr.mxu0 0.0
  %3676 = vmatpush1.msra.mxu0 0.0
  %3677 = vmatprep.subr.mxu0 0.0
  %3678 = vmatpush1.msra.mxu0 0.0
  %3679 = vmatprep.subr.mxu0 0.0
  %3680 = vmatpush1.msra.mxu0 0.0
  %3681 = vmatprep.subr.mxu0 0.0
  %3682 = vmatpush1.msra.mxu0 0.0
  %3683 = vmatprep.subr.mxu0 0.0
  %3684 = vmatpush1.msra.mxu0 0.0
  %3685 = vmatprep.subr.mxu0 0.0
  %3686 = vmatpush1.msra.mxu0 0.0
  %3687 = vmatprep.subr.mxu0 0.0
  %3688 = vmatpush1.msra.mxu0 0.0
  %3689 = vmatprep.subr.mxu0 0.0
  %3690 = vmatpush1.msra.mxu0 0.0
  %3691 = vmatprep.subr.mxu0 0.0
  %3692 = vmatpush1.msra.mxu0 0.0
  %3693 = vmatprep.subr.mxu0 0.0
  %3694 = vmatpush1.msra.mxu0 0.0
  %3695 = vmatprep.subr.mxu0 0.0
  %3696 = vmatpush1.msra.mxu0 0.0
  %3697 = vmatprep.subr.mxu0 0.0
  %3698 = vmatpush1.msra.mxu0 0.0
  %3699 = vmatprep.subr.mxu0 0.0
  %3700 = vmatpush1.msra.mxu0 0.0
  %3701 = vmatprep.subr.mxu0 0.0
  %3702 = vmatpush1.msra.mxu0 0.0
  %3703 = vmatprep.subr.mxu0 0.0
  %3704 = vmatpush1.msra.mxu0 0.0
  %3705 = vmatprep.subr.mxu0 0.0
  %3706 = vmatpush1.msra.mxu0 0.0
  %3707 = vmatprep.subr.mxu0 0.0
  %3708 = vmatpush1.msra.mxu0 0.0
  %3709 = vmatprep.subr.mxu0 0.0
  %3710 = vmatpush1.msra.mxu0 0.0
  %3711 = vmatprep.subr.mxu0 0.0
  %3712 = vmatpush1.msra.mxu0 0.0
  %3713 = vmatprep.subr.mxu0 0.0
  %3714 = vmatpush1.msra.mxu0 0.0
  %3715 = vmatprep.subr.mxu0 0.0
  %3716 = vmatpush1.msra.mxu0 0.0
  %3717 = vmatprep.subr.mxu0 0.0
  %3718 = vmatpush1.msra.mxu0 0.0
  %3719 = vmatprep.subr.mxu0 0.0
  %3720 = vmatpush1.msra.mxu0 0.0
  %3721 = vmatprep.subr.mxu0 0.0
  %3722 = vmatpush1.msra.mxu0 0.0
  %3723 = vmatprep.mubr.f32.mxu0 0.0
  %3724 = vmatmul.mubr.f32.gmra.mrb[0].mxu0 %v3609
  %v3725 = vpop.f32.mrb[0].mxu0
  %v3726 = vadd.f32 0.0, %v3725
  %v3727 = vpop.f32.mrb[0].mxu0
  %3728 = vmatprep.mubr.f32.mxu0 0.0
  %3729 = vmatmul.mubr.f32.gmra.mrb[0].mxu0 %v3612
  %v3730 = vpop.f32.mrb[0].mxu0
  %v3731 = vadd.f32 0.0, %v3730
  %v3732 = vpop.f32.mrb[0].mxu0
  %3733 = vmatprep.mubr.f32.mxu0 0.0
  %3734 = vmatmul.mubr.f32.gmra.mrb[0].mxu0 %v3615
  %v3735 = vpop.f32.mrb[0].mxu0
  %v3736 = vadd.f32 0.0, %v3735
  %v3737 = vpop.f32.mrb[0].mxu0
  %3738 = vmatprep.mubr.f32.mxu0 0.0
  %3739 = vmatmul.mubr.f32.gmra.mrb[0].mxu0 %v3618
  %v3740 = vpop.f32.mrb[0].mxu0
  %v3741 = vadd.f32 0.0, %v3740
  %v3742 = vpop.f32.mrb[0].mxu0
  %3743 = vmatprep.mubr.f32.mxu0 0.0
  %3744 = vmatmul.mubr.f32.gmra.mrb[0].mxu0 %v3621
  %v3745 = vpop.f32.mrb[0].mxu0
  %v3746 = vadd.f32 0.0, %v3745
  %v3747 = vpop.f32.mrb[0].mxu0
  %3748 = vmatprep.mubr.f32.mxu0 0.0
  %3749 = vmatmul.mubr.f32.gmra.mrb[0].mxu0 %v3624
  %v3750 = vpop.f32.mrb[0].mxu0
  %v3751 = vadd.f32 0.0, %v3750
  %v3752 = vpop.f32.mrb[0].mxu0
  %3753 = vmatprep.mubr.f32.mxu0 0.0
  %3754 = vmatmul.mubr.f32.gmra.mrb[0].mxu0 %v3627
  %v3755 = vpop.f32.mrb[0].mxu0
  %v3756 = vadd.f32 0.0, %v3755
  %v3757 = vpop.f32.mrb[0].mxu0
  %3758 = vmatprep.mubr.f32.mxu0 0.0
  %3759 = vmatmul.mubr.f32.gmra.mrb[0].mxu0 %v3630
  %v3760 = vpop.f32.mrb[0].mxu0
  %v3761 = vadd.f32 0.0, %v3760
  %v3762 = vpop.f32.mrb[0].mxu0
  %3763 = vmatprep.mubr.f32.mxu0 0.0
  %3764 = vmatmul.mubr.f32.gmra.mrb[0].mxu0 %v3633
  %v3765 = vpop.f32.mrb[0].mxu0
  %v3766 = vadd.f32 0.0, %v3765
  %v3767 = vpop.f32.mrb[0].mxu0
  %3768 = vmatprep.mubr.f32.mxu0 0.0
  %3769 = vmatmul.mubr.f32.gmra.mrb[0].mxu0 %v3636
  %v3770 = vpop.f32.mrb[0].mxu0
  %v3771 = vadd.f32 0.0, %v3770
  %v3772 = vpop.f32.mrb[0].mxu0
  %3773 = vmatprep.mubr.f32.mxu0 0.0
  %3774 = vmatmul.mubr.f32.gmra.mrb[0].mxu0 %v3639
  %v3775 = vpop.f32.mrb[0].mxu0
  %v3776 = vadd.f32 0.0, %v3775
  %v3777 = vpop.f32.mrb[0].mxu0
  %3778 = vmatprep.mubr.f32.mxu0 0.0
  %3779 = vmatmul.mubr.f32.gmra.mrb[0].mxu0 %v3642
  %v3780 = vpop.f32.mrb[0].mxu0
  %v3781 = vadd.f32 0.0, %v3780
  %v3782 = vpop.f32.mrb[0].mxu0
  %3783 = vmatprep.mubr.f32.mxu0 0.0
  %3784 = vmatmul.mubr.f32.gmra.mrb[0].mxu0 %v3645
  %v3785 = vpop.f32.mrb[0].mxu0
  %v3786 = vadd.f32 0.0, %v3785
  %v3787 = vpop.f32.mrb[0].mxu0
  %3788 = vmatprep.mubr.f32.mxu0 0.0
  %3789 = vmatmul.mubr.f32.gmra.mrb[0].mxu0 %v3648
  %v3790 = vpop.f32.mrb[0].mxu0
  %v3791 = vadd.f32 0.0, %v3790
  %v3792 = vpop.f32.mrb[0].mxu0
  %3793 = vmatprep.mubr.f32.mxu0 0.0
  %3794 = vmatmul.mubr.f32.gmra.mrb[0].mxu0 %v3651
  %v3795 = vpop.f32.mrb[0].mxu0
  %v3796 = vadd.f32 0.0, %v3795
  %v3797 = vpop.f32.mrb[0].mxu0
  %3798 = vmatprep.mubr.f32.mxu0 0.0
  %3799 = vmatmul.mubr.f32.gmra.mrb[0].mxu0 %v3654
  %v3800 = vpop.f32.mrb[0].mxu0
  %v3801 = vadd.f32 0.0, %v3800
  %v3802 = vpop.f32.mrb[0].mxu0
  %3803 = vdwg.mxu0
  %v3804 = vld [vmem:[%s9] sm:$0x1]
  %v3805 = vld [vmem:[%s10] sm:$0x1]
  %v3806 = vsel %vm297, %v3726, 0.0
  %v3807 = vsel %vm297, %v3731, 0.0
  %v3808 = vadd.f32 %v3806, %v3807
  %v3809 = vsel %vm297, %v3736, 0.0
  %v3810 = vadd.f32 %v3808, %v3809
  %v3811 = vsel %vm297, %v3741, 0.0
  %v3812 = vadd.f32 %v3810, %v3811
  %v3813 = vsel %vm297, %v3746, 0.0
  %v3814 = vadd.f32 %v3812, %v3813
  %v3815 = vsel %vm297, %v3751, 0.0
  %v3816 = vadd.f32 %v3814, %v3815
  %v3817 = vsel %vm297, %v3756, 0.0
  %v3818 = vadd.f32 %v3816, %v3817
  %v3819 = vsel %vm297, %v3761, 0.0
  %v3820 = vadd.f32 %v3818, %v3819
  %v3821 = vsel %vm297, %v3766, 0.0
  %v3822 = vadd.f32 %v3820, %v3821
  %v3823 = vsel %vm297, %v3771, 0.0
  %v3824 = vadd.f32 %v3822, %v3823
  %v3825 = vsel %vm297, %v3776, 0.0
  %v3826 = vadd.f32 %v3824, %v3825
  %v3827 = vsel %vm297, %v3781, 0.0
  %v3828 = vadd.f32 %v3826, %v3827
  %v3829 = vsel %vm297, %v3786, 0.0
  %v3830 = vadd.f32 %v3828, %v3829
  %v3831 = vsel %vm297, %v3791, 0.0
  %v3832 = vadd.f32 %v3830, %v3831
  %v3833 = vsel %vm297, %v3796, 0.0
  %v3834 = vadd.f32 %v3832, %v3833
  %v3835 = vsel %vm297, %v3801, 0.0
  %v3836 = vadd.f32 %v3834, %v3835
  %v3837 = vrot.slane %v3836, 4
  %v3838 = vadd.f32 %v3836, %v3837
  %v3839 = vrot.slane %v3838, 2
  %v3840 = vadd.f32 %v3838, %v3839
  %v3841 = vrot.slane %v3840, 1
  %v3842 = vadd.f32 %v3840, %v3841
  %v3843 = vmul.f32 %v3842, 0.0078125
  %v3844 = vsub.f32 %v3726, %v3843
  %v3845 = vsub.f32 %v3731, %v3843
  %v3846 = vsub.f32 %v3736, %v3843
  %v3847 = vsub.f32 %v3741, %v3843
  %v3848 = vsub.f32 %v3746, %v3843
  %v3849 = vsub.f32 %v3751, %v3843
  %v3850 = vsub.f32 %v3756, %v3843
  %v3851 = vsub.f32 %v3761, %v3843
  %v3852 = vsub.f32 %v3766, %v3843
  %v3853 = vsub.f32 %v3771, %v3843
  %v3854 = vsub.f32 %v3776, %v3843
  %v3855 = vsub.f32 %v3781, %v3843
  %v3856 = vsub.f32 %v3786, %v3843
  %v3857 = vsub.f32 %v3791, %v3843
  %v3858 = vsub.f32 %v3796, %v3843
  %v3859 = vsub.f32 %v3801, %v3843
  %v3860 = vmul.f32 %v3844, %v3844
  %v3861 = vmul.f32 %v3845, %v3845
  %v3862 = vmul.f32 %v3846, %v3846
  %v3863 = vmul.f32 %v3847, %v3847
  %v3864 = vmul.f32 %v3848, %v3848
  %v3865 = vmul.f32 %v3849, %v3849
  %v3866 = vmul.f32 %v3850, %v3850
  %v3867 = vmul.f32 %v3851, %v3851
  %v3868 = vmul.f32 %v3852, %v3852
  %v3869 = vmul.f32 %v3853, %v3853
  %v3870 = vmul.f32 %v3854, %v3854
  %v3871 = vmul.f32 %v3855, %v3855
  %v3872 = vmul.f32 %v3856, %v3856
  %v3873 = vmul.f32 %v3857, %v3857
  %v3874 = vmul.f32 %v3858, %v3858
  %v3875 = vmul.f32 %v3859, %v3859
  %v3876 = vsel %vm297, %v3860, 0.0
  %v3877 = vsel %vm297, %v3861, 0.0
  %v3878 = vadd.f32 %v3876, %v3877
  %v3879 = vsel %vm297, %v3862, 0.0
  %v3880 = vadd.f32 %v3878, %v3879
  %v3881 = vsel %vm297, %v3863, 0.0
  %v3882 = vadd.f32 %v3880, %v3881
  %v3883 = vsel %vm297, %v3864, 0.0
  %v3884 = vadd.f32 %v3882, %v3883
  %v3885 = vsel %vm297, %v3865, 0.0
  %v3886 = vadd.f32 %v3884, %v3885
  %v3887 = vsel %vm297, %v3866, 0.0
  %v3888 = vadd.f32 %v3886, %v3887
  %v3889 = vsel %vm297, %v3867, 0.0
  %v3890 = vadd.f32 %v3888, %v3889
  %v3891 = vsel %vm297, %v3868, 0.0
  %v3892 = vadd.f32 %v3890, %v3891
  %v3893 = vsel %vm297, %v3869, 0.0
  %v3894 = vadd.f32 %v3892, %v3893
  %v3895 = vsel %vm297, %v3870, 0.0
  %v3896 = vadd.f32 %v3894, %v3895
  %v3897 = vsel %vm297, %v3871, 0.0
  %v3898 = vadd.f32 %v3896, %v3897
  %v3899 = vsel %vm297, %v3872, 0.0
  %v3900 = vadd.f32 %v3898, %v3899
  %v3901 = vsel %vm297, %v3873, 0.0
  %v3902 = vadd.f32 %v3900, %v3901
  %v3903 = vsel %vm297, %v3874, 0.0
  %v3904 = vadd.f32 %v3902, %v3903
  %v3905 = vsel %vm297, %v3875, 0.0
  %v3906 = vadd.f32 %v3904, %v3905
  %v3907 = vrot.slane %v3906, 4
  %v3908 = vadd.f32 %v3906, %v3907
  %v3909 = vrot.slane %v3908, 2
  %v3910 = vadd.f32 %v3908, %v3909
  %v3911 = vrot.slane %v3910, 1
  %v3912 = vadd.f32 %v3910, %v3911
  %v3913 = vmul.f32 %v3912, 0.0078125
  %v3914 = vadd.f32 %v3913, 1e-05
  %v3915 = vrsqrt.pop %v3914
  %v3916 = vmul.f32 %v3914, %v3915
  %vm3917 = vcmp.eq.f32.partialorder %v3914, inf
  %v3918 = vsel %vm3917, %v3914, %v3916
  %vm3919 = vcmp.eq.f32.partialorder %v3914, 0.0
  %v3920 = vand.u32 %v3914, 2147483648
  %v3921 = vsel %vm3919, %v3920, %v3918
  %v3922 = vrcp.pop %v3921
  %v3923 = vmul.f32 %v3804, %v3922
  %v3925 = vlaneseq
  %v3926 = vshrl.u32 %v3925, 7
  %v3927 = vsub.s32 0, %v3926
  %v3928 = vrot.slane %v3923, %v3927
  %v3930 = vmul.f32 %v3844, %v3928
  %v3931 = vmul.f32 %v3845, %v3928
  %v3932 = vmul.f32 %v3846, %v3928
  %v3933 = vmul.f32 %v3847, %v3928
  %v3934 = vmul.f32 %v3848, %v3928
  %v3935 = vmul.f32 %v3849, %v3928
  %v3936 = vmul.f32 %v3850, %v3928
  %v3937 = vmul.f32 %v3851, %v3928
  %v3938 = vmul.f32 %v3852, %v3928
  %v3939 = vmul.f32 %v3853, %v3928
  %v3940 = vmul.f32 %v3854, %v3928
  %v3941 = vmul.f32 %v3855, %v3928
  %v3942 = vmul.f32 %v3856, %v3928
  %v3943 = vmul.f32 %v3857, %v3928
  %v3944 = vmul.f32 %v3858, %v3928
  %v3945 = vmul.f32 %v3859, %v3928
  %v3947 = vlaneseq
  %v3948 = vshrl.u32 %v3947, 7
  %v3949 = vsub.s32 0, %v3948
  %v3950 = vrot.slane %v3805, %v3949
  %v3952 = vadd.f32 %v3930, %v3950
  %v3953 = vadd.f32 %v3931, %v3950
  %v3954 = vadd.f32 %v3932, %v3950
  %v3955 = vadd.f32 %v3933, %v3950
  %v3956 = vadd.f32 %v3934, %v3950
  %v3957 = vadd.f32 %v3935, %v3950
  %v3958 = vadd.f32 %v3936, %v3950
  %v3959 = vadd.f32 %v3937, %v3950
  %v3960 = vadd.f32 %v3938, %v3950
  %v3961 = vadd.f32 %v3939, %v3950
  %v3962 = vadd.f32 %v3940, %v3950
  %v3963 = vadd.f32 %v3941, %v3950
  %v3964 = vadd.f32 %v3942, %v3950
  %v3965 = vadd.f32 %v3943, %v3950
  %v3966 = vadd.f32 %v3944, %v3950
  %v3967 = vadd.f32 %v3945, %v3950
  %v3968 = vmax.f32 %v3952, 0.0
  %v3969 = vmax.f32 %v3953, 0.0
  %v3970 = vmax.f32 %v3954, 0.0
  %v3971 = vmax.f32 %v3955, 0.0
  %v3972 = vmax.f32 %v3956, 0.0
  %v3973 = vmax.f32 %v3957, 0.0
  %v3974 = vmax.f32 %v3958, 0.0
  %v3975 = vmax.f32 %v3959, 0.0
  %v3976 = vmax.f32 %v3960, 0.0
  %v3977 = vmax.f32 %v3961, 0.0
  %v3978 = vmax.f32 %v3962, 0.0
  %v3979 = vmax.f32 %v3963, 0.0
  %v3980 = vmax.f32 %v3964, 0.0
  %v3981 = vmax.f32 %v3965, 0.0
  %v3982 = vmax.f32 %v3966, 0.0
  %v3983 = vmax.f32 %v3967, 0.0
  %v3984 = vadd.f32 %v3968, %v3574
  %v3985 = vadd.f32 %v3969, %v3575
  %v3986 = vadd.f32 %v3970, %v3576
  %v3987 = vadd.f32 %v3971, %v3577
  %v3988 = vadd.f32 %v3972, %v3578
  %v3989 = vadd.f32 %v3973, %v3579
  %v3990 = vadd.f32 %v3974, %v3580
  %v3991 = vadd.f32 %v3975, %v3581
  %v3992 = vadd.f32 %v3976, %v3582
  %v3993 = vadd.f32 %v3977, %v3583
  %v3994 = vadd.f32 %v3978, %v3584
  %v3995 = vadd.f32 %v3979, %v3585
  %v3996 = vadd.f32 %v3980, %v3586
  %v3997 = vadd.f32 %v3981, %v3587
  %v3998 = vadd.f32 %v3982, %v3588
  %v3999 = vadd.f32 %v3983, %v3589
  %4000 = vst.msk [vmem:[%s13] sm:$0xff] %vm297, %v3984
  %4001 = vst.msk [vmem:[%s13 + $0x8] sm:$0xff] %vm297, %v3985
  %4002 = vst.msk [vmem:[%s13 + $0x10] sm:$0xff] %vm297, %v3986
  %4003 = vst.msk [vmem:[%s13 + $0x18] sm:$0xff] %vm297, %v3987
  %4004 = vst.msk [vmem:[%s13 + $0x20] sm:$0xff] %vm297, %v3988
  %4005 = vst.msk [vmem:[%s13 + $0x28] sm:$0xff] %vm297, %v3989
  %4006 = vst.msk [vmem:[%s13 + $0x30] sm:$0xff] %vm297, %v3990
  %4007 = vst.msk [vmem:[%s13 + $0x38] sm:$0xff] %vm297, %v3991
  %4008 = vst.msk [vmem:[%s13 + $0x40] sm:$0xff] %vm297, %v3992
  %4009 = vst.msk [vmem:[%s13 + $0x48] sm:$0xff] %vm297, %v3993
  %4010 = vst.msk [vmem:[%s13 + $0x50] sm:$0xff] %vm297, %v3994
  %4011 = vst.msk [vmem:[%s13 + $0x58] sm:$0xff] %vm297, %v3995
  %4012 = vst.msk [vmem:[%s13 + $0x60] sm:$0xff] %vm297, %v3996
  %4013 = vst.msk [vmem:[%s13 + $0x68] sm:$0xff] %vm297, %v3997
  %4014 = vst.msk [vmem:[%s13 + $0x70] sm:$0xff] %vm297, %v3998
  %4015 = vst.msk [vmem:[%s13 + $0x78] sm:$0xff] %vm297, %v3999
  // Predicated region
  $region54: #{resblock2_forward.1} parent=0 // pred_check
    _
  $region55: #{resblock2_forward.1} parent=0 // pred_check_branch
    %4017 = sbr.rel (0) target = $region57
  $region56: #{resblock2_forward.1} parent=0 // pred_region
    _
  $region57: #{resblock2_forward.1} parent=0 // pred_fallthru
    _
  // Predicated region
  $region58: #{resblock2_forward.1} parent=0 // pred_check
    _
  $region59: #{resblock2_forward.1} parent=0 // pred_check_branch
    %4019 = sbr.rel (0) target = $region61
  $region60: #{resblock2_forward.1} parent=0 // pred_region
    _
  $region61: #{resblock2_forward.1} parent=0 // pred_fallthru
    _

</llo_original>
